<compile_context>
chip_gen: v7x
topology: tpu7x:2x2x1
jax: 0.10.0
libtpu: 0.0.40
codegen_flags: <defaults>
</compile_context>

<pallas_src>
import functools

import jax
import jax.numpy as jnp
from jax import lax
from jax.experimental import pallas as pl
from jax.experimental.pallas import tpu as pltpu

# ---------------- synthetic config (RNNDText.__init__ kwargs) ----------------
EMB_DIM = 32
VOCAB = 64          # must be a multiple of the kernel's lane slicing (64 here)
HID = 32            # hid_dim  (decoder hidden size is 2*HID)
N_LAYERS = 1
SOS, EOS, PAD = 1, 2, 0

# Matmul operand dtype (accumulation stays f32).  bf16 shortens every MXU push
# on the serial recurrences; use jnp.float32 for closer-to-reference numerics.
MXU_DTYPE = jnp.bfloat16


# ---------------- fused encoder + greedy decoder kernel -----------------------
def _ae_kernel(cls_ref, len2_ref, table_enc_ref, whh_enc_ref,
               fb_ref, wdec_ref, bout_ref,
               logits_ref, idx_ref, *, sos):
    f32 = jnp.float32
    mm = table_enc_ref.dtype        # matmul operand dtype (bf16 or f32)

    B2 = len2_ref.shape[0]          # 2*B  (rows: fwd direction | bwd direction)
    B = B2 // 2
    T = cls_ref.shape[0] // B2
    V = bout_ref.shape[1]
    H = whh_enc_ref.shape[0]        # encoder hidden per direction
    H2 = wdec_ref.shape[0]          # decoder hidden (= 2*H)
    G = 4 * H2

    lens2 = len2_ref[...]           # (2B, 1) int32

    # ======================= encoder ==========================================
    # Prologue: ONE one-hot @ pre-folded-table matmul gives the input-gate
    # contributions for both directions, already time-major & direction-stacked:
    #   row t*2B + r :  r <  B -> W_ih_f @ emb[tok[r, t]]       + b_f
    #                   r >= B -> W_ih_b @ emb[tok[r-B, T-1-t]] + b_b
    cls = cls_ref[...]                                             # (T*2B, 1)
    iota2v = lax.broadcasted_iota(jnp.int32, (T * B2, 2 * V), 1)
    onehot_enc = (cls == iota2v).astype(mm)                        # (T*2B, 2V)
    xw = jnp.dot(onehot_enc, table_enc_ref[...],
                 preferred_element_type=f32)                       # (T*2B, 4H) f32

    whh_enc = whh_enc_ref[...]                                     # (H, 8H) = [Whh_f | Whh_b]

    # Precomputed (once) masks: which rows are the forward direction, and which
    # (row, t) pairs lie inside each row's length (packed-sequence emulation).
    rowmask = lax.broadcasted_iota(jnp.int32, (B2, 1), 0) < B      # (2B, 1) bool
    tcol = lax.broadcasted_iota(jnp.int32, (B2, T), 1)
    rrow = lax.broadcasted_iota(jnp.int32, (B2, T), 0)
    pos = jnp.where(rrow < B, tcol, T - 1 - tcol)
    vmask = (pos < lens2).astype(f32)                              # (2B, T) in {0,1}
    nvmask = 1.0 - vmask

    hfb = jnp.zeros((B2, H), f32)
    cfb = jnp.zeros((B2, H), f32)
    m = jnp.full((B2, H), -jnp.inf, f32)   # precondition: text_length >= 1 per row

    # Fully unrolled (T small & static) -> all slices below are static & aligned.
    for t in range(T):
        y = jnp.dot(hfb.astype(mm), whh_enc,
                    preferred_element_type=f32)                    # (2B, 8H)
        y_sel = jnp.where(rowmask, y[:, :4 * H], y[:, 4 * H:])     # (2B, 4H)
        gates = xw[t * B2:(t + 1) * B2, :] + y_sel                 # one f32 vreg
        sg = jax.nn.sigmoid(gates)                                 # whole-tile: 1 vreg
        th = jnp.tanh(gates)
        i_g = sg[:, 0 * H:1 * H]
        f_g = sg[:, 1 * H:2 * H]
        g_g = th[:, 2 * H:3 * H]
        o_g = sg[:, 3 * H:4 * H]
        c_new = f_g * cfb + i_g * g_g
        h_new = o_g * jnp.tanh(c_new)
        # freeze state past each row's length; padded positions contribute 0 to
        # the max (pad_packed zero rows).  v in {0,1} -> blend is exact.
        v = vmask[:, t:t + 1]
        nv = nvmask[:, t:t + 1]
        hfb = v * h_new + nv * hfb
        cfb = v * c_new + nv * cfb
        m = jnp.maximum(m, v * h_new)

    h_enc = jnp.concatenate([m[0:B, :], m[B:B2, :]], axis=1)       # (B, 2H)

    # ======================= greedy decoder ====================================
    wdec = wdec_ref[...]                     # (H2, 4*H2 + V) = [Whh_d | W_out]
    fb_table = fb_ref[...]                   # (V, 4*H2 + V) = [emb@Wih_d + b | idx col | 0]
    bout_b = jnp.broadcast_to(bout_ref[...], (B, V))

    # <sos> feedback (input-gate contribution incl. merged biases) from the table.
    gx = jnp.broadcast_to(fb_table[sos:sos + 1, :G].astype(f32), (B, G))
    h = h_enc
    c = jnp.zeros((B, H2), f32)
    # Recurrent contribution of h0 (= h_enc); the logits columns of this first
    # fused matmul are discarded (outputs[0] / argmax_indices[0] stay zero).
    rec = jnp.dot(h.astype(mm), wdec, preferred_element_type=f32)[:, :G]

    logits_ref[:, 0:V] = jnp.zeros((B, V), f32)
    idx_ref[:, 0:1] = jnp.zeros((B, 1), f32)

    for t in range(1, T):
        gates = gx + rec                                    # (B, 4*H2) = 2 vregs
        sg_if = jax.nn.sigmoid(gates[:, :2 * H2])           # i,f  (vreg-aligned)
        go = gates[:, 2 * H2:]                              # g,o  (vreg-aligned)
        th_g = jnp.tanh(go)
        sg_o = jax.nn.sigmoid(go)
        i_g = sg_if[:, :H2]
        f_g = sg_if[:, H2:]
        g_g = th_g[:, :H2]
        o_g = sg_o[:, H2:]
        c = f_g * c + i_g * g_g
        h = o_g * jnp.tanh(c)

        # ONE fused MXU push: [recurrent gates | logits]
        md = jnp.dot(h.astype(mm), wdec, preferred_element_type=f32)   # (B, 4*H2 + V)
        rec = md[:, :G]
        logits = md[:, G:] + bout_b                         # (B, V)
        logits_ref[:, t * V:(t + 1) * V] = logits           # per-step store

        # Greedy argmax with a single cross-lane reduce; the index is recovered
        # through the feedback matmul (index column folded into fb_table).
        # (Exact float ties would sum rows -- measure-zero with these logits.)
        maxval = jnp.max(logits, axis=-1, keepdims=True)
        onehot = (logits == maxval).astype(mm)              # (B, V)
        fb = jnp.dot(onehot, fb_table, preferred_element_type=f32)     # (B, 4*H2 + V)
        gx = fb[:, :G]                                      # feedback input gates
        idx_ref[:, t:t + 1] = fb[:, G:G + 1]                # argmax index (f32)


# ---------------- wrapper ------------------------------------------------------
def _vmem():
    return pl.BlockSpec(memory_space=pltpu.MemorySpace.VMEM)


def auto_encoder_d(batch_positions, text_length, kparams):
    """Forward of AutoEncoderD: (o, i) = (logits (B,T,V), argmax indices (B,T) f32)."""
    B, T = batch_positions.shape
    V = VOCAB

    # tiny int glue done outside the kernel:
    #   encoder "class ids": forward rows read tokens in time order, backward
    #   rows in reversed time order with ids offset by V (picks the bwd table).
    toks = batch_positions.astype(jnp.int32)
    cls = jnp.concatenate([toks, toks[:, ::-1] + V], axis=0)          # (2B, T)
    cls_flat = jnp.transpose(cls).reshape(T * 2 * B, 1)               # time-major
    lens2 = jnp.tile(text_length.reshape(B, 1).astype(jnp.int32), (2, 1))   # (2B, 1)

    kernel = functools.partial(_ae_kernel, sos=SOS)
    logits_flat, idx = pl.pallas_call(
        kernel,
        out_shape=(jax.ShapeDtypeStruct((B, T * V), jnp.float32),
                   jax.ShapeDtypeStruct((B, T), jnp.float32)),
        in_specs=[_vmem()] * 7,
        out_specs=(_vmem(), _vmem()),
    )(cls_flat, lens2, kparams["table_enc"], kparams["whh_enc"],
      kparams["fb_table"], kparams["w_dec"], kparams["bout"])
    return logits_flat.reshape(B, T, V), idx


# ---------------- parameters ---------------------------------------------------
def init_params(key):
    """Raw parameters, PyTorch-style init (weights pre-transposed for x @ W)."""
    H, E, V = HID, EMB_DIM, VOCAB
    H2 = 2 * H
    ks = jax.random.split(key, 16)

    def u(k, shape, bound):
        return jax.random.uniform(k, shape, jnp.float32, -bound, bound)

    emb = jax.random.normal(ks[0], (V, E), jnp.float32)
    emb = emb.at[PAD].set(0.0)                       # nn.Embedding padding_idx row

    kb = float(1.0 / (H ** 0.5))                     # PyTorch LSTM init scale
    wih_f = u(ks[1], (E, 4 * H), kb); whh_f = u(ks[2], (H, 4 * H), kb)
    b_f = u(ks[3], (1, 4 * H), kb) + u(ks[4], (1, 4 * H), kb)       # b_ih + b_hh
    wih_b = u(ks[5], (E, 4 * H), kb); whh_b = u(ks[6], (H, 4 * H), kb)
    b_b = u(ks[7], (1, 4 * H), kb) + u(ks[8], (1, 4 * H), kb)

    kb2 = float(1.0 / (H2 ** 0.5))
    wih_d = u(ks[9], (E, 4 * H2), kb2); whh_d = u(ks[10], (H2, 4 * H2), kb2)
    b_d = u(ks[11], (1, 4 * H2), kb2) + u(ks[12], (1, 4 * H2), kb2)
    wout = u(ks[13], (H2, V), kb2); bout = u(ks[14], (1, V), kb2)   # nn.Linear(2*hid, vocab)

    return {"emb": emb,
            "enc": (wih_f, whh_f, b_f, wih_b, whh_b, b_b),
            "dec": (wih_d, whh_d, b_d, wout, bout)}


def prepare_params(raw):
    """One-time checkpoint plumbing: pre-fold parameter-only contractions and
    merge weights into the layouts the fused kernel consumes."""
    emb = raw["emb"]
    wih_f, whh_f, b_f, wih_b, whh_b, b_b = raw["enc"]
    wih_d, whh_d, b_d, wout, bout = raw["dec"]
    V = emb.shape[0]

    # encoder: per-token input-gate tables, fwd stacked over bwd -> (2V, 4H)
    table_enc = jnp.concatenate([emb @ wih_f + b_f, emb @ wih_b + b_b], axis=0)
    whh_enc = jnp.concatenate([whh_f, whh_b], axis=1)               # (H, 8H)

    # decoder: feedback table [emb @ Wih_d + b | argmax-index column | zeros]
    emb_wihd = emb @ wih_d + b_d                                    # (V, 4*H2)
    idx_block = jnp.zeros((V, V), jnp.float32).at[:, 0].set(
        jnp.arange(V, dtype=jnp.float32))
    fb_table = jnp.concatenate([emb_wihd, idx_block], axis=1)       # (V, 4*H2 + V)
    w_dec = jnp.concatenate([whh_d, wout], axis=1)                  # (H2, 4*H2 + V)

    return {"table_enc": table_enc.astype(MXU_DTYPE),
            "whh_enc": whh_enc.astype(MXU_DTYPE),
            "fb_table": fb_table.astype(MXU_DTYPE),
            "w_dec": w_dec.astype(MXU_DTYPE),
            "bout": bout}                                           # stays f32


# ---------------- main ----------------------------------------------------------
if __name__ == "__main__":
    key = jax.random.PRNGKey(0)
    pkey, dkey = jax.random.split(key)
    params = prepare_params(init_params(pkey))

    B, T = 4, 8
    batch_positions = jax.random.randint(dkey, (B, T), 0, VOCAB, dtype=jnp.int32)
    text_length = jnp.array([T, T - 2, T - 1, T - 3], dtype=jnp.int32)  # max == T, all >= 1

    fwd = jax.jit(auto_encoder_d)
    o, i = fwd(batch_positions, text_length, params)
    jax.block_until_ready((o, i))

    assert o.shape == (B, T, VOCAB) and o.dtype == jnp.float32
    assert i.shape == (B, T) and i.dtype == jnp.float32
    print("KERNEL_OK")
</pallas_src>

<mosaic_0001>
module attributes {stable_mosaic.version = 11 : i64} {
  func.func @_ae_kernel(%arg0: memref<64x1xi32, #tpu.memory_space<vmem>>, %arg1: memref<8x1xi32, #tpu.memory_space<vmem>>, %arg2: memref<128x128xbf16, #tpu.memory_space<vmem>>, %arg3: memref<32x256xbf16, #tpu.memory_space<vmem>>, %arg4: memref<64x320xbf16, #tpu.memory_space<vmem>>, %arg5: memref<64x320xbf16, #tpu.memory_space<vmem>>, %arg6: memref<1x64xf32, #tpu.memory_space<vmem>>, %arg7: memref<4x512xf32, #tpu.memory_space<vmem>>, %arg8: memref<4x8xf32, #tpu.memory_space<vmem>>) attributes {dimension_semantics = [], scalar_prefetch = 0 : i64, scratch_operands = 0 : i64, tpu.core_type = #tpu.core_type<tc>} {
    %c0 = arith.constant 0 : index
    %c0_0 = arith.constant 0 : index
    %0 = vector.load %arg1[%c0, %c0_0] : memref<8x1xi32, #tpu.memory_space<vmem>>, vector<8x1xi32>
    %c0_1 = arith.constant 0 : index
    %c0_2 = arith.constant 0 : index
    %1 = vector.load %arg0[%c0_1, %c0_2] : memref<64x1xi32, #tpu.memory_space<vmem>>, vector<64x1xi32>
    %2 = tpu.iota {dimensions = array<i32: 1>} : vector<64x128xi32>
    %3 = vector.broadcast %1 : vector<64x1xi32> to vector<64x128xi32>
    %4 = arith.cmpi eq, %3, %2 : vector<64x128xi32>
    %5 = arith.extui %4 : vector<64x128xi1> to vector<64x128xi32>
    %6 = arith.sitofp %5 : vector<64x128xi32> to vector<64x128xf32>
    %7 = arith.truncf %6 : vector<64x128xf32> to vector<64x128xbf16>
    %c0_3 = arith.constant 0 : index
    %c0_4 = arith.constant 0 : index
    %8 = vector.load %arg2[%c0_3, %c0_4] : memref<128x128xbf16, #tpu.memory_space<vmem>>, vector<128x128xbf16>
    %cst = arith.constant dense<0.000000e+00> : vector<64x128xf32>
    %9 = tpu.matmul %7, %8, %cst {dimension_numbers = #tpu.dot_dimension_numbers<[1], [0], [0], [1], [0, 0, 1, 1], [], []>} : vector<64x128xbf16>, vector<128x128xbf16>, vector<64x128xf32> -> vector<64x128xf32>
    %c0_5 = arith.constant 0 : index
    %c0_6 = arith.constant 0 : index
    %10 = vector.load %arg3[%c0_5, %c0_6] : memref<32x256xbf16, #tpu.memory_space<vmem>>, vector<32x256xbf16>
    %11 = tpu.iota {dimensions = array<i32: 0>} : vector<8x1xi32>
    %c4_i32 = arith.constant 4 : i32
    %12 = vector.broadcast %c4_i32 : i32 to vector<8x1xi32>
    %13 = arith.cmpi slt, %11, %12 : vector<8x1xi32>
    %14 = tpu.iota {dimensions = array<i32: 1>} : vector<8x8xi32>
    %15 = tpu.iota {dimensions = array<i32: 0>} : vector<8x8xi32>
    %c4_i32_7 = arith.constant 4 : i32
    %16 = vector.broadcast %c4_i32_7 : i32 to vector<8x8xi32>
    %17 = arith.cmpi slt, %15, %16 : vector<8x8xi32>
    %c7_i32 = arith.constant 7 : i32
    %18 = vector.broadcast %c7_i32 : i32 to vector<8x8xi32>
    %19 = arith.subi %18, %14 : vector<8x8xi32>
    %20 = arith.select %17, %14, %19 : vector<8x8xi1>, vector<8x8xi32>
    %21 = vector.broadcast %0 : vector<8x1xi32> to vector<8x8xi32>
    %22 = arith.cmpi slt, %20, %21 : vector<8x8xi32>
    %23 = arith.extui %22 : vector<8x8xi1> to vector<8x8xi32>
    %24 = arith.sitofp %23 : vector<8x8xi32> to vector<8x8xf32>
    %cst_8 = arith.constant 1.000000e+00 : f32
    %25 = vector.broadcast %cst_8 : f32 to vector<8x8xf32>
    %26 = arith.subf %25, %24 : vector<8x8xf32>
    %cst_9 = arith.constant 0.000000e+00 : f32
    %27 = vector.broadcast %cst_9 : f32 to vector<8x32xf32>
    %cst_10 = arith.constant 0.000000e+00 : f32
    %28 = vector.broadcast %cst_10 : f32 to vector<8x32xf32>
    %cst_11 = arith.constant 0xFF800000 : f32
    %29 = vector.broadcast %cst_11 : f32 to vector<8x32xf32>
    %30 = arith.truncf %27 : vector<8x32xf32> to vector<8x32xbf16>
    %cst_12 = arith.constant dense<0.000000e+00> : vector<8x256xf32>
    %31 = tpu.matmul %30, %10, %cst_12 {dimension_numbers = #tpu.dot_dimension_numbers<[1], [0], [0], [1], [0, 0, 1, 1], [], []>} : vector<8x32xbf16>, vector<32x256xbf16>, vector<8x256xf32> -> vector<8x256xf32>
    %32 = vector.extract_strided_slice %31 {offsets = [0, 0], sizes = [8, 128], strides = [1, 1]} : vector<8x256xf32> to vector<8x128xf32>
    %33 = vector.extract_strided_slice %31 {offsets = [0, 128], sizes = [8, 128], strides = [1, 1]} : vector<8x256xf32> to vector<8x128xf32>
    %34 = vector.shape_cast %13 : vector<8x1xi1> to vector<8x1xi1>
    %35 = vector.broadcast %34 : vector<8x1xi1> to vector<8x128xi1>
    %36 = arith.select %35, %32, %33 : vector<8x128xi1>, vector<8x128xf32>
    %37 = vector.extract_strided_slice %9 {offsets = [0, 0], sizes = [8, 128], strides = [1, 1]} : vector<64x128xf32> to vector<8x128xf32>
    %38 = arith.addf %37, %36 : vector<8x128xf32>
    %39 = arith.negf %38 : vector<8x128xf32>
    %40 = math.exp %39 : vector<8x128xf32>
    %cst_13 = arith.constant 1.000000e+00 : f32
    %41 = vector.broadcast %cst_13 : f32 to vector<8x128xf32>
    %42 = arith.addf %41, %40 : vector<8x128xf32>
    %43 = arith.divf %41, %42 : vector<8x128xf32>
    %44 = math.tanh %38 : vector<8x128xf32>
    %45 = vector.extract_strided_slice %43 {offsets = [0, 0], sizes = [8, 32], strides = [1, 1]} : vector<8x128xf32> to vector<8x32xf32>
    %46 = vector.extract_strided_slice %43 {offsets = [0, 32], sizes = [8, 32], strides = [1, 1]} : vector<8x128xf32> to vector<8x32xf32>
    %47 = vector.extract_strided_slice %44 {offsets = [0, 64], sizes = [8, 32], strides = [1, 1]} : vector<8x128xf32> to vector<8x32xf32>
    %48 = vector.extract_strided_slice %43 {offsets = [0, 96], sizes = [8, 32], strides = [1, 1]} : vector<8x128xf32> to vector<8x32xf32>
    %49 = arith.mulf %46, %28 : vector<8x32xf32>
    %50 = arith.mulf %45, %47 : vector<8x32xf32>
    %51 = arith.addf %49, %50 : vector<8x32xf32>
    %52 = math.tanh %51 : vector<8x32xf32>
    %53 = arith.mulf %48, %52 : vector<8x32xf32>
    %54 = vector.extract_strided_slice %24 {offsets = [0, 0], sizes = [8, 1], strides = [1, 1]} : vector<8x8xf32> to vector<8x1xf32>
    %55 = vector.extract_strided_slice %26 {offsets = [0, 0], sizes = [8, 1], strides = [1, 1]} : vector<8x8xf32> to vector<8x1xf32>
    %56 = vector.broadcast %54 : vector<8x1xf32> to vector<8x32xf32>
    %57 = arith.mulf %56, %53 : vector<8x32xf32>
    %58 = vector.broadcast %55 : vector<8x1xf32> to vector<8x32xf32>
    %59 = arith.mulf %58, %27 : vector<8x32xf32>
    %60 = arith.addf %57, %59 : vector<8x32xf32>
    %61 = vector.broadcast %54 : vector<8x1xf32> to vector<8x32xf32>
    %62 = arith.mulf %61, %51 : vector<8x32xf32>
    %63 = vector.broadcast %55 : vector<8x1xf32> to vector<8x32xf32>
    %64 = arith.mulf %63, %28 : vector<8x32xf32>
    %65 = arith.addf %62, %64 : vector<8x32xf32>
    %66 = vector.broadcast %54 : vector<8x1xf32> to vector<8x32xf32>
    %67 = arith.mulf %66, %53 : vector<8x32xf32>
    %68 = arith.maximumf %29, %67 : vector<8x32xf32>
    %69 = arith.truncf %60 : vector<8x32xf32> to vector<8x32xbf16>
    %cst_14 = arith.constant dense<0.000000e+00> : vector<8x256xf32>
    %70 = tpu.matmul %69, %10, %cst_14 {dimension_numbers = #tpu.dot_dimension_numbers<[1], [0], [0], [1], [0, 0, 1, 1], [], []>} : vector<8x32xbf16>, vector<32x256xbf16>, vector<8x256xf32> -> vector<8x256xf32>
    %71 = vector.extract_strided_slice %70 {offsets = [0, 0], sizes = [8, 128], strides = [1, 1]} : vector<8x256xf32> to vector<8x128xf32>
    %72 = vector.extract_strided_slice %70 {offsets = [0, 128], sizes = [8, 128], strides = [1, 1]} : vector<8x256xf32> to vector<8x128xf32>
    %73 = vector.shape_cast %13 : vector<8x1xi1> to vector<8x1xi1>
    %74 = vector.broadcast %73 : vector<8x1xi1> to vector<8x128xi1>
    %75 = arith.select %74, %71, %72 : vector<8x128xi1>, vector<8x128xf32>
    %76 = vector.extract_strided_slice %9 {offsets = [8, 0], sizes = [8, 128], strides = [1, 1]} : vector<64x128xf32> to vector<8x128xf32>
    %77 = arith.addf %76, %75 : vector<8x128xf32>
    %78 = arith.negf %77 : vector<8x128xf32>
    %79 = math.exp %78 : vector<8x128xf32>
    %cst_15 = arith.constant 1.000000e+00 : f32
    %80 = vector.broadcast %cst_15 : f32 to vector<8x128xf32>
    %81 = arith.addf %80, %79 : vector<8x128xf32>
    %82 = arith.divf %80, %81 : vector<8x128xf32>
    %83 = math.tanh %77 : vector<8x128xf32>
    %84 = vector.extract_strided_slice %82 {offsets = [0, 0], sizes = [8, 32], strides = [1, 1]} : vector<8x128xf32> to vector<8x32xf32>
    %85 = vector.extract_strided_slice %82 {offsets = [0, 32], sizes = [8, 32], strides = [1, 1]} : vector<8x128xf32> to vector<8x32xf32>
    %86 = vector.extract_strided_slice %83 {offsets = [0, 64], sizes = [8, 32], strides = [1, 1]} : vector<8x128xf32> to vector<8x32xf32>
    %87 = vector.extract_strided_slice %82 {offsets = [0, 96], sizes = [8, 32], strides = [1, 1]} : vector<8x128xf32> to vector<8x32xf32>
    %88 = arith.mulf %85, %65 : vector<8x32xf32>
    %89 = arith.mulf %84, %86 : vector<8x32xf32>
    %90 = arith.addf %88, %89 : vector<8x32xf32>
    %91 = math.tanh %90 : vector<8x32xf32>
    %92 = arith.mulf %87, %91 : vector<8x32xf32>
    %93 = vector.extract_strided_slice %24 {offsets = [0, 1], sizes = [8, 1], strides = [1, 1]} : vector<8x8xf32> to vector<8x1xf32>
    %94 = vector.extract_strided_slice %26 {offsets = [0, 1], sizes = [8, 1], strides = [1, 1]} : vector<8x8xf32> to vector<8x1xf32>
    %95 = vector.broadcast %93 : vector<8x1xf32> to vector<8x32xf32>
    %96 = arith.mulf %95, %92 : vector<8x32xf32>
    %97 = vector.broadcast %94 : vector<8x1xf32> to vector<8x32xf32>
    %98 = arith.mulf %97, %60 : vector<8x32xf32>
    %99 = arith.addf %96, %98 : vector<8x32xf32>
    %100 = vector.broadcast %93 : vector<8x1xf32> to vector<8x32xf32>
    %101 = arith.mulf %100, %90 : vector<8x32xf32>
    %102 = vector.broadcast %94 : vector<8x1xf32> to vector<8x32xf32>
    %103 = arith.mulf %102, %65 : vector<8x32xf32>
    %104 = arith.addf %101, %103 : vector<8x32xf32>
    %105 = vector.broadcast %93 : vector<8x1xf32> to vector<8x32xf32>
    %106 = arith.mulf %105, %92 : vector<8x32xf32>
    %107 = arith.maximumf %68, %106 : vector<8x32xf32>
    %108 = arith.truncf %99 : vector<8x32xf32> to vector<8x32xbf16>
    %cst_16 = arith.constant dense<0.000000e+00> : vector<8x256xf32>
    %109 = tpu.matmul %108, %10, %cst_16 {dimension_numbers = #tpu.dot_dimension_numbers<[1], [0], [0], [1], [0, 0, 1, 1], [], []>} : vector<8x32xbf16>, vector<32x256xbf16>, vector<8x256xf32> -> vector<8x256xf32>
    %110 = vector.extract_strided_slice %109 {offsets = [0, 0], sizes = [8, 128], strides = [1, 1]} : vector<8x256xf32> to vector<8x128xf32>
    %111 = vector.extract_strided_slice %109 {offsets = [0, 128], sizes = [8, 128], strides = [1, 1]} : vector<8x256xf32> to vector<8x128xf32>
    %112 = vector.shape_cast %13 : vector<8x1xi1> to vector<8x1xi1>
    %113 = vector.broadcast %112 : vector<8x1xi1> to vector<8x128xi1>
    %114 = arith.select %113, %110, %111 : vector<8x128xi1>, vector<8x128xf32>
    %115 = vector.extract_strided_slice %9 {offsets = [16, 0], sizes = [8, 128], strides = [1, 1]} : vector<64x128xf32> to vector<8x128xf32>
    %116 = arith.addf %115, %114 : vector<8x128xf32>
    %117 = arith.negf %116 : vector<8x128xf32>
    %118 = math.exp %117 : vector<8x128xf32>
    %cst_17 = arith.constant 1.000000e+00 : f32
    %119 = vector.broadcast %cst_17 : f32 to vector<8x128xf32>
    %120 = arith.addf %119, %118 : vector<8x128xf32>
    %121 = arith.divf %119, %120 : vector<8x128xf32>
    %122 = math.tanh %116 : vector<8x128xf32>
    %123 = vector.extract_strided_slice %121 {offsets = [0, 0], sizes = [8, 32], strides = [1, 1]} : vector<8x128xf32> to vector<8x32xf32>
    %124 = vector.extract_strided_slice %121 {offsets = [0, 32], sizes = [8, 32], strides = [1, 1]} : vector<8x128xf32> to vector<8x32xf32>
    %125 = vector.extract_strided_slice %122 {offsets = [0, 64], sizes = [8, 32], strides = [1, 1]} : vector<8x128xf32> to vector<8x32xf32>
    %126 = vector.extract_strided_slice %121 {offsets = [0, 96], sizes = [8, 32], strides = [1, 1]} : vector<8x128xf32> to vector<8x32xf32>
    %127 = arith.mulf %124, %104 : vector<8x32xf32>
    %128 = arith.mulf %123, %125 : vector<8x32xf32>
    %129 = arith.addf %127, %128 : vector<8x32xf32>
    %130 = math.tanh %129 : vector<8x32xf32>
    %131 = arith.mulf %126, %130 : vector<8x32xf32>
    %132 = vector.extract_strided_slice %24 {offsets = [0, 2], sizes = [8, 1], strides = [1, 1]} : vector<8x8xf32> to vector<8x1xf32>
    %133 = vector.extract_strided_slice %26 {offsets = [0, 2], sizes = [8, 1], strides = [1, 1]} : vector<8x8xf32> to vector<8x1xf32>
    %134 = vector.broadcast %132 : vector<8x1xf32> to vector<8x32xf32>
    %135 = arith.mulf %134, %131 : vector<8x32xf32>
    %136 = vector.broadcast %133 : vector<8x1xf32> to vector<8x32xf32>
    %137 = arith.mulf %136, %99 : vector<8x32xf32>
    %138 = arith.addf %135, %137 : vector<8x32xf32>
    %139 = vector.broadcast %132 : vector<8x1xf32> to vector<8x32xf32>
    %140 = arith.mulf %139, %129 : vector<8x32xf32>
    %141 = vector.broadcast %133 : vector<8x1xf32> to vector<8x32xf32>
    %142 = arith.mulf %141, %104 : vector<8x32xf32>
    %143 = arith.addf %140, %142 : vector<8x32xf32>
    %144 = vector.broadcast %132 : vector<8x1xf32> to vector<8x32xf32>
    %145 = arith.mulf %144, %131 : vector<8x32xf32>
    %146 = arith.maximumf %107, %145 : vector<8x32xf32>
    %147 = arith.truncf %138 : vector<8x32xf32> to vector<8x32xbf16>
    %cst_18 = arith.constant dense<0.000000e+00> : vector<8x256xf32>
    %148 = tpu.matmul %147, %10, %cst_18 {dimension_numbers = #tpu.dot_dimension_numbers<[1], [0], [0], [1], [0, 0, 1, 1], [], []>} : vector<8x32xbf16>, vector<32x256xbf16>, vector<8x256xf32> -> vector<8x256xf32>
    %149 = vector.extract_strided_slice %148 {offsets = [0, 0], sizes = [8, 128], strides = [1, 1]} : vector<8x256xf32> to vector<8x128xf32>
    %150 = vector.extract_strided_slice %148 {offsets = [0, 128], sizes = [8, 128], strides = [1, 1]} : vector<8x256xf32> to vector<8x128xf32>
    %151 = vector.shape_cast %13 : vector<8x1xi1> to vector<8x1xi1>
    %152 = vector.broadcast %151 : vector<8x1xi1> to vector<8x128xi1>
    %153 = arith.select %152, %149, %150 : vector<8x128xi1>, vector<8x128xf32>
    %154 = vector.extract_strided_slice %9 {offsets = [24, 0], sizes = [8, 128], strides = [1, 1]} : vector<64x128xf32> to vector<8x128xf32>
    %155 = arith.addf %154, %153 : vector<8x128xf32>
    %156 = arith.negf %155 : vector<8x128xf32>
    %157 = math.exp %156 : vector<8x128xf32>
    %cst_19 = arith.constant 1.000000e+00 : f32
    %158 = vector.broadcast %cst_19 : f32 to vector<8x128xf32>
    %159 = arith.addf %158, %157 : vector<8x128xf32>
    %160 = arith.divf %158, %159 : vector<8x128xf32>
    %161 = math.tanh %155 : vector<8x128xf32>
    %162 = vector.extract_strided_slice %160 {offsets = [0, 0], sizes = [8, 32], strides = [1, 1]} : vector<8x128xf32> to vector<8x32xf32>
    %163 = vector.extract_strided_slice %160 {offsets = [0, 32], sizes = [8, 32], strides = [1, 1]} : vector<8x128xf32> to vector<8x32xf32>
    %164 = vector.extract_strided_slice %161 {offsets = [0, 64], sizes = [8, 32], strides = [1, 1]} : vector<8x128xf32> to vector<8x32xf32>
    %165 = vector.extract_strided_slice %160 {offsets = [0, 96], sizes = [8, 32], strides = [1, 1]} : vector<8x128xf32> to vector<8x32xf32>
    %166 = arith.mulf %163, %143 : vector<8x32xf32>
    %167 = arith.mulf %162, %164 : vector<8x32xf32>
    %168 = arith.addf %166, %167 : vector<8x32xf32>
    %169 = math.tanh %168 : vector<8x32xf32>
    %170 = arith.mulf %165, %169 : vector<8x32xf32>
    %171 = vector.extract_strided_slice %24 {offsets = [0, 3], sizes = [8, 1], strides = [1, 1]} : vector<8x8xf32> to vector<8x1xf32>
    %172 = vector.extract_strided_slice %26 {offsets = [0, 3], sizes = [8, 1], strides = [1, 1]} : vector<8x8xf32> to vector<8x1xf32>
    %173 = vector.broadcast %171 : vector<8x1xf32> to vector<8x32xf32>
    %174 = arith.mulf %173, %170 : vector<8x32xf32>
    %175 = vector.broadcast %172 : vector<8x1xf32> to vector<8x32xf32>
    %176 = arith.mulf %175, %138 : vector<8x32xf32>
    %177 = arith.addf %174, %176 : vector<8x32xf32>
    %178 = vector.broadcast %171 : vector<8x1xf32> to vector<8x32xf32>
    %179 = arith.mulf %178, %168 : vector<8x32xf32>
    %180 = vector.broadcast %172 : vector<8x1xf32> to vector<8x32xf32>
    %181 = arith.mulf %180, %143 : vector<8x32xf32>
    %182 = arith.addf %179, %181 : vector<8x32xf32>
    %183 = vector.broadcast %171 : vector<8x1xf32> to vector<8x32xf32>
    %184 = arith.mulf %183, %170 : vector<8x32xf32>
    %185 = arith.maximumf %146, %184 : vector<8x32xf32>
    %186 = arith.truncf %177 : vector<8x32xf32> to vector<8x32xbf16>
    %cst_20 = arith.constant dense<0.000000e+00> : vector<8x256xf32>
    %187 = tpu.matmul %186, %10, %cst_20 {dimension_numbers = #tpu.dot_dimension_numbers<[1], [0], [0], [1], [0, 0, 1, 1], [], []>} : vector<8x32xbf16>, vector<32x256xbf16>, vector<8x256xf32> -> vector<8x256xf32>
    %188 = vector.extract_strided_slice %187 {offsets = [0, 0], sizes = [8, 128], strides = [1, 1]} : vector<8x256xf32> to vector<8x128xf32>
    %189 = vector.extract_strided_slice %187 {offsets = [0, 128], sizes = [8, 128], strides = [1, 1]} : vector<8x256xf32> to vector<8x128xf32>
    %190 = vector.shape_cast %13 : vector<8x1xi1> to vector<8x1xi1>
    %191 = vector.broadcast %190 : vector<8x1xi1> to vector<8x128xi1>
    %192 = arith.select %191, %188, %189 : vector<8x128xi1>, vector<8x128xf32>
    %193 = vector.extract_strided_slice %9 {offsets = [32, 0], sizes = [8, 128], strides = [1, 1]} : vector<64x128xf32> to vector<8x128xf32>
    %194 = arith.addf %193, %192 : vector<8x128xf32>
    %195 = arith.negf %194 : vector<8x128xf32>
    %196 = math.exp %195 : vector<8x128xf32>
    %cst_21 = arith.constant 1.000000e+00 : f32
    %197 = vector.broadcast %cst_21 : f32 to vector<8x128xf32>
    %198 = arith.addf %197, %196 : vector<8x128xf32>
    %199 = arith.divf %197, %198 : vector<8x128xf32>
    %200 = math.tanh %194 : vector<8x128xf32>
    %201 = vector.extract_strided_slice %199 {offsets = [0, 0], sizes = [8, 32], strides = [1, 1]} : vector<8x128xf32> to vector<8x32xf32>
    %202 = vector.extract_strided_slice %199 {offsets = [0, 32], sizes = [8, 32], strides = [1, 1]} : vector<8x128xf32> to vector<8x32xf32>
    %203 = vector.extract_strided_slice %200 {offsets = [0, 64], sizes = [8, 32], strides = [1, 1]} : vector<8x128xf32> to vector<8x32xf32>
    %204 = vector.extract_strided_slice %199 {offsets = [0, 96], sizes = [8, 32], strides = [1, 1]} : vector<8x128xf32> to vector<8x32xf32>
    %205 = arith.mulf %202, %182 : vector<8x32xf32>
    %206 = arith.mulf %201, %203 : vector<8x32xf32>
    %207 = arith.addf %205, %206 : vector<8x32xf32>
    %208 = math.tanh %207 : vector<8x32xf32>
    %209 = arith.mulf %204, %208 : vector<8x32xf32>
    %210 = vector.extract_strided_slice %24 {offsets = [0, 4], sizes = [8, 1], strides = [1, 1]} : vector<8x8xf32> to vector<8x1xf32>
    %211 = vector.extract_strided_slice %26 {offsets = [0, 4], sizes = [8, 1], strides = [1, 1]} : vector<8x8xf32> to vector<8x1xf32>
    %212 = vector.broadcast %210 : vector<8x1xf32> to vector<8x32xf32>
    %213 = arith.mulf %212, %209 : vector<8x32xf32>
    %214 = vector.broadcast %211 : vector<8x1xf32> to vector<8x32xf32>
    %215 = arith.mulf %214, %177 : vector<8x32xf32>
    %216 = arith.addf %213, %215 : vector<8x32xf32>
    %217 = vector.broadcast %210 : vector<8x1xf32> to vector<8x32xf32>
    %218 = arith.mulf %217, %207 : vector<8x32xf32>
    %219 = vector.broadcast %211 : vector<8x1xf32> to vector<8x32xf32>
    %220 = arith.mulf %219, %182 : vector<8x32xf32>
    %221 = arith.addf %218, %220 : vector<8x32xf32>
    %222 = vector.broadcast %210 : vector<8x1xf32> to vector<8x32xf32>
    %223 = arith.mulf %222, %209 : vector<8x32xf32>
    %224 = arith.maximumf %185, %223 : vector<8x32xf32>
    %225 = arith.truncf %216 : vector<8x32xf32> to vector<8x32xbf16>
    %cst_22 = arith.constant dense<0.000000e+00> : vector<8x256xf32>
    %226 = tpu.matmul %225, %10, %cst_22 {dimension_numbers = #tpu.dot_dimension_numbers<[1], [0], [0], [1], [0, 0, 1, 1], [], []>} : vector<8x32xbf16>, vector<32x256xbf16>, vector<8x256xf32> -> vector<8x256xf32>
    %227 = vector.extract_strided_slice %226 {offsets = [0, 0], sizes = [8, 128], strides = [1, 1]} : vector<8x256xf32> to vector<8x128xf32>
    %228 = vector.extract_strided_slice %226 {offsets = [0, 128], sizes = [8, 128], strides = [1, 1]} : vector<8x256xf32> to vector<8x128xf32>
    %229 = vector.shape_cast %13 : vector<8x1xi1> to vector<8x1xi1>
    %230 = vector.broadcast %229 : vector<8x1xi1> to vector<8x128xi1>
    %231 = arith.select %230, %227, %228 : vector<8x128xi1>, vector<8x128xf32>
    %232 = vector.extract_strided_slice %9 {offsets = [40, 0], sizes = [8, 128], strides = [1, 1]} : vector<64x128xf32> to vector<8x128xf32>
    %233 = arith.addf %232, %231 : vector<8x128xf32>
    %234 = arith.negf %233 : vector<8x128xf32>
    %235 = math.exp %234 : vector<8x128xf32>
    %cst_23 = arith.constant 1.000000e+00 : f32
    %236 = vector.broadcast %cst_23 : f32 to vector<8x128xf32>
    %237 = arith.addf %236, %235 : vector<8x128xf32>
    %238 = arith.divf %236, %237 : vector<8x128xf32>
    %239 = math.tanh %233 : vector<8x128xf32>
    %240 = vector.extract_strided_slice %238 {offsets = [0, 0], sizes = [8, 32], strides = [1, 1]} : vector<8x128xf32> to vector<8x32xf32>
    %241 = vector.extract_strided_slice %238 {offsets = [0, 32], sizes = [8, 32], strides = [1, 1]} : vector<8x128xf32> to vector<8x32xf32>
    %242 = vector.extract_strided_slice %239 {offsets = [0, 64], sizes = [8, 32], strides = [1, 1]} : vector<8x128xf32> to vector<8x32xf32>
    %243 = vector.extract_strided_slice %238 {offsets = [0, 96], sizes = [8, 32], strides = [1, 1]} : vector<8x128xf32> to vector<8x32xf32>
    %244 = arith.mulf %241, %221 : vector<8x32xf32>
    %245 = arith.mulf %240, %242 : vector<8x32xf32>
    %246 = arith.addf %244, %245 : vector<8x32xf32>
    %247 = math.tanh %246 : vector<8x32xf32>
    %248 = arith.mulf %243, %247 : vector<8x32xf32>
    %249 = vector.extract_strided_slice %24 {offsets = [0, 5], sizes = [8, 1], strides = [1, 1]} : vector<8x8xf32> to vector<8x1xf32>
    %250 = vector.extract_strided_slice %26 {offsets = [0, 5], sizes = [8, 1], strides = [1, 1]} : vector<8x8xf32> to vector<8x1xf32>
    %251 = vector.broadcast %249 : vector<8x1xf32> to vector<8x32xf32>
    %252 = arith.mulf %251, %248 : vector<8x32xf32>
    %253 = vector.broadcast %250 : vector<8x1xf32> to vector<8x32xf32>
    %254 = arith.mulf %253, %216 : vector<8x32xf32>
    %255 = arith.addf %252, %254 : vector<8x32xf32>
    %256 = vector.broadcast %249 : vector<8x1xf32> to vector<8x32xf32>
    %257 = arith.mulf %256, %246 : vector<8x32xf32>
    %258 = vector.broadcast %250 : vector<8x1xf32> to vector<8x32xf32>
    %259 = arith.mulf %258, %221 : vector<8x32xf32>
    %260 = arith.addf %257, %259 : vector<8x32xf32>
    %261 = vector.broadcast %249 : vector<8x1xf32> to vector<8x32xf32>
    %262 = arith.mulf %261, %248 : vector<8x32xf32>
    %263 = arith.maximumf %224, %262 : vector<8x32xf32>
    %264 = arith.truncf %255 : vector<8x32xf32> to vector<8x32xbf16>
    %cst_24 = arith.constant dense<0.000000e+00> : vector<8x256xf32>
    %265 = tpu.matmul %264, %10, %cst_24 {dimension_numbers = #tpu.dot_dimension_numbers<[1], [0], [0], [1], [0, 0, 1, 1], [], []>} : vector<8x32xbf16>, vector<32x256xbf16>, vector<8x256xf32> -> vector<8x256xf32>
    %266 = vector.extract_strided_slice %265 {offsets = [0, 0], sizes = [8, 128], strides = [1, 1]} : vector<8x256xf32> to vector<8x128xf32>
    %267 = vector.extract_strided_slice %265 {offsets = [0, 128], sizes = [8, 128], strides = [1, 1]} : vector<8x256xf32> to vector<8x128xf32>
    %268 = vector.shape_cast %13 : vector<8x1xi1> to vector<8x1xi1>
    %269 = vector.broadcast %268 : vector<8x1xi1> to vector<8x128xi1>
    %270 = arith.select %269, %266, %267 : vector<8x128xi1>, vector<8x128xf32>
    %271 = vector.extract_strided_slice %9 {offsets = [48, 0], sizes = [8, 128], strides = [1, 1]} : vector<64x128xf32> to vector<8x128xf32>
    %272 = arith.addf %271, %270 : vector<8x128xf32>
    %273 = arith.negf %272 : vector<8x128xf32>
    %274 = math.exp %273 : vector<8x128xf32>
    %cst_25 = arith.constant 1.000000e+00 : f32
    %275 = vector.broadcast %cst_25 : f32 to vector<8x128xf32>
    %276 = arith.addf %275, %274 : vector<8x128xf32>
    %277 = arith.divf %275, %276 : vector<8x128xf32>
    %278 = math.tanh %272 : vector<8x128xf32>
    %279 = vector.extract_strided_slice %277 {offsets = [0, 0], sizes = [8, 32], strides = [1, 1]} : vector<8x128xf32> to vector<8x32xf32>
    %280 = vector.extract_strided_slice %277 {offsets = [0, 32], sizes = [8, 32], strides = [1, 1]} : vector<8x128xf32> to vector<8x32xf32>
    %281 = vector.extract_strided_slice %278 {offsets = [0, 64], sizes = [8, 32], strides = [1, 1]} : vector<8x128xf32> to vector<8x32xf32>
    %282 = vector.extract_strided_slice %277 {offsets = [0, 96], sizes = [8, 32], strides = [1, 1]} : vector<8x128xf32> to vector<8x32xf32>
    %283 = arith.mulf %280, %260 : vector<8x32xf32>
    %284 = arith.mulf %279, %281 : vector<8x32xf32>
    %285 = arith.addf %283, %284 : vector<8x32xf32>
    %286 = math.tanh %285 : vector<8x32xf32>
    %287 = arith.mulf %282, %286 : vector<8x32xf32>
    %288 = vector.extract_strided_slice %24 {offsets = [0, 6], sizes = [8, 1], strides = [1, 1]} : vector<8x8xf32> to vector<8x1xf32>
    %289 = vector.extract_strided_slice %26 {offsets = [0, 6], sizes = [8, 1], strides = [1, 1]} : vector<8x8xf32> to vector<8x1xf32>
    %290 = vector.broadcast %288 : vector<8x1xf32> to vector<8x32xf32>
    %291 = arith.mulf %290, %287 : vector<8x32xf32>
    %292 = vector.broadcast %289 : vector<8x1xf32> to vector<8x32xf32>
    %293 = arith.mulf %292, %255 : vector<8x32xf32>
    %294 = arith.addf %291, %293 : vector<8x32xf32>
    %295 = vector.broadcast %288 : vector<8x1xf32> to vector<8x32xf32>
    %296 = arith.mulf %295, %285 : vector<8x32xf32>
    %297 = vector.broadcast %289 : vector<8x1xf32> to vector<8x32xf32>
    %298 = arith.mulf %297, %260 : vector<8x32xf32>
    %299 = arith.addf %296, %298 : vector<8x32xf32>
    %300 = vector.broadcast %288 : vector<8x1xf32> to vector<8x32xf32>
    %301 = arith.mulf %300, %287 : vector<8x32xf32>
    %302 = arith.maximumf %263, %301 : vector<8x32xf32>
    %303 = arith.truncf %294 : vector<8x32xf32> to vector<8x32xbf16>
    %cst_26 = arith.constant dense<0.000000e+00> : vector<8x256xf32>
    %304 = tpu.matmul %303, %10, %cst_26 {dimension_numbers = #tpu.dot_dimension_numbers<[1], [0], [0], [1], [0, 0, 1, 1], [], []>} : vector<8x32xbf16>, vector<32x256xbf16>, vector<8x256xf32> -> vector<8x256xf32>
    %305 = vector.extract_strided_slice %304 {offsets = [0, 0], sizes = [8, 128], strides = [1, 1]} : vector<8x256xf32> to vector<8x128xf32>
    %306 = vector.extract_strided_slice %304 {offsets = [0, 128], sizes = [8, 128], strides = [1, 1]} : vector<8x256xf32> to vector<8x128xf32>
    %307 = vector.shape_cast %13 : vector<8x1xi1> to vector<8x1xi1>
    %308 = vector.broadcast %307 : vector<8x1xi1> to vector<8x128xi1>
    %309 = arith.select %308, %305, %306 : vector<8x128xi1>, vector<8x128xf32>
    %310 = vector.extract_strided_slice %9 {offsets = [56, 0], sizes = [8, 128], strides = [1, 1]} : vector<64x128xf32> to vector<8x128xf32>
    %311 = arith.addf %310, %309 : vector<8x128xf32>
    %312 = arith.negf %311 : vector<8x128xf32>
    %313 = math.exp %312 : vector<8x128xf32>
    %cst_27 = arith.constant 1.000000e+00 : f32
    %314 = vector.broadcast %cst_27 : f32 to vector<8x128xf32>
    %315 = arith.addf %314, %313 : vector<8x128xf32>
    %316 = arith.divf %314, %315 : vector<8x128xf32>
    %317 = math.tanh %311 : vector<8x128xf32>
    %318 = vector.extract_strided_slice %316 {offsets = [0, 0], sizes = [8, 32], strides = [1, 1]} : vector<8x128xf32> to vector<8x32xf32>
    %319 = vector.extract_strided_slice %316 {offsets = [0, 32], sizes = [8, 32], strides = [1, 1]} : vector<8x128xf32> to vector<8x32xf32>
    %320 = vector.extract_strided_slice %317 {offsets = [0, 64], sizes = [8, 32], strides = [1, 1]} : vector<8x128xf32> to vector<8x32xf32>
    %321 = vector.extract_strided_slice %316 {offsets = [0, 96], sizes = [8, 32], strides = [1, 1]} : vector<8x128xf32> to vector<8x32xf32>
    %322 = arith.mulf %319, %299 : vector<8x32xf32>
    %323 = arith.mulf %318, %320 : vector<8x32xf32>
    %324 = arith.addf %322, %323 : vector<8x32xf32>
    %325 = math.tanh %324 : vector<8x32xf32>
    %326 = arith.mulf %321, %325 : vector<8x32xf32>
    %327 = vector.extract_strided_slice %24 {offsets = [0, 7], sizes = [8, 1], strides = [1, 1]} : vector<8x8xf32> to vector<8x1xf32>
    %328 = vector.broadcast %327 : vector<8x1xf32> to vector<8x32xf32>
    %329 = arith.mulf %328, %326 : vector<8x32xf32>
    %330 = arith.maximumf %302, %329 : vector<8x32xf32>
    %331 = vector.extract_strided_slice %330 {offsets = [0, 0], sizes = [4, 32], strides = [1, 1]} : vector<8x32xf32> to vector<4x32xf32>
    %332 = vector.extract_strided_slice %330 {offsets = [4, 0], sizes = [4, 32], strides = [1, 1]} : vector<8x32xf32> to vector<4x32xf32>
    %333 = tpu.concatenate %331, %332 in 1 : vector<4x32xf32>, vector<4x32xf32> -> vector<4x64xf32>
    %c0_28 = arith.constant 0 : index
    %c0_29 = arith.constant 0 : index
    %334 = vector.load %arg5[%c0_28, %c0_29] : memref<64x320xbf16, #tpu.memory_space<vmem>>, vector<64x320xbf16>
    %c0_30 = arith.constant 0 : index
    %c0_31 = arith.constant 0 : index
    %335 = vector.load %arg4[%c0_30, %c0_31] : memref<64x320xbf16, #tpu.memory_space<vmem>>, vector<64x320xbf16>
    %c0_32 = arith.constant 0 : index
    %c0_33 = arith.constant 0 : index
    %336 = vector.load %arg6[%c0_32, %c0_33] : memref<1x64xf32, #tpu.memory_space<vmem>>, vector<1x64xf32>
    %337 = vector.shape_cast %336 : vector<1x64xf32> to vector<1x64xf32>
    %338 = vector.broadcast %337 : vector<1x64xf32> to vector<4x64xf32>
    %339 = vector.extract_strided_slice %335 {offsets = [1, 0], sizes = [1, 256], strides = [1, 1]} : vector<64x320xbf16> to vector<1x256xbf16>
    %340 = arith.extf %339 : vector<1x256xbf16> to vector<1x256xf32>
    %341 = vector.shape_cast %340 : vector<1x256xf32> to vector<1x256xf32>
    %342 = vector.broadcast %341 : vector<1x256xf32> to vector<4x256xf32>
    %cst_34 = arith.constant 0.000000e+00 : f32
    %343 = vector.broadcast %cst_34 : f32 to vector<4x64xf32>
    %344 = arith.truncf %333 : vector<4x64xf32> to vector<4x64xbf16>
    %cst_35 = arith.constant dense<0.000000e+00> : vector<4x320xf32>
    %345 = tpu.matmul %344, %334, %cst_35 {dimension_numbers = #tpu.dot_dimension_numbers<[1], [0], [0], [1], [0, 0, 1, 1], [], []>} : vector<4x64xbf16>, vector<64x320xbf16>, vector<4x320xf32> -> vector<4x320xf32>
    %346 = vector.extract_strided_slice %345 {offsets = [0, 0], sizes = [4, 256], strides = [1, 1]} : vector<4x320xf32> to vector<4x256xf32>
    %cst_36 = arith.constant 0.000000e+00 : f32
    %347 = vector.broadcast %cst_36 : f32 to vector<4x64xf32>
    %c0_37 = arith.constant 0 : index
    %c0_38 = arith.constant 0 : index
    %348 = vector.load %arg7[%c0_37, %c0_38] : memref<4x512xf32, #tpu.memory_space<vmem>>, vector<4x64xf32>
    tpu.vector_store %arg7[%c0_37, %c0_38], %347 {strides = array<i32>} : memref<4x512xf32, #tpu.memory_space<vmem>>, vector<4x64xf32>,
    %cst_39 = arith.constant 0.000000e+00 : f32
    %349 = vector.broadcast %cst_39 : f32 to vector<4x1xf32>
    %c0_40 = arith.constant 0 : index
    %c0_41 = arith.constant 0 : index
    %350 = vector.load %arg8[%c0_40, %c0_41] : memref<4x8xf32, #tpu.memory_space<vmem>>, vector<4x1xf32>
    tpu.vector_store %arg8[%c0_40, %c0_41], %349 {strides = array<i32>} : memref<4x8xf32, #tpu.memory_space<vmem>>, vector<4x1xf32>,
    %351 = arith.addf %342, %346 : vector<4x256xf32>
    %352 = vector.extract_strided_slice %351 {offsets = [0, 0], sizes = [4, 128], strides = [1, 1]} : vector<4x256xf32> to vector<4x128xf32>
    %353 = arith.negf %352 : vector<4x128xf32>
    %354 = math.exp %353 : vector<4x128xf32>
    %cst_42 = arith.constant 1.000000e+00 : f32
    %355 = vector.broadcast %cst_42 : f32 to vector<4x128xf32>
    %356 = arith.addf %355, %354 : vector<4x128xf32>
    %357 = arith.divf %355, %356 : vector<4x128xf32>
    %358 = vector.extract_strided_slice %351 {offsets = [0, 128], sizes = [4, 128], strides = [1, 1]} : vector<4x256xf32> to vector<4x128xf32>
    %359 = math.tanh %358 : vector<4x128xf32>
    %360 = arith.negf %358 : vector<4x128xf32>
    %361 = math.exp %360 : vector<4x128xf32>
    %cst_43 = arith.constant 1.000000e+00 : f32
    %362 = vector.broadcast %cst_43 : f32 to vector<4x128xf32>
    %363 = arith.addf %362, %361 : vector<4x128xf32>
    %364 = arith.divf %362, %363 : vector<4x128xf32>
    %365 = vector.extract_strided_slice %357 {offsets = [0, 0], sizes = [4, 64], strides = [1, 1]} : vector<4x128xf32> to vector<4x64xf32>
    %366 = vector.extract_strided_slice %357 {offsets = [0, 64], sizes = [4, 64], strides = [1, 1]} : vector<4x128xf32> to vector<4x64xf32>
    %367 = vector.extract_strided_slice %359 {offsets = [0, 0], sizes = [4, 64], strides = [1, 1]} : vector<4x128xf32> to vector<4x64xf32>
    %368 = vector.extract_strided_slice %364 {offsets = [0, 64], sizes = [4, 64], strides = [1, 1]} : vector<4x128xf32> to vector<4x64xf32>
    %369 = arith.mulf %366, %343 : vector<4x64xf32>
    %370 = arith.mulf %365, %367 : vector<4x64xf32>
    %371 = arith.addf %369, %370 : vector<4x64xf32>
    %372 = math.tanh %371 : vector<4x64xf32>
    %373 = arith.mulf %368, %372 : vector<4x64xf32>
    %374 = arith.truncf %373 : vector<4x64xf32> to vector<4x64xbf16>
    %cst_44 = arith.constant dense<0.000000e+00> : vector<4x320xf32>
    %375 = tpu.matmul %374, %334, %cst_44 {dimension_numbers = #tpu.dot_dimension_numbers<[1], [0], [0], [1], [0, 0, 1, 1], [], []>} : vector<4x64xbf16>, vector<64x320xbf16>, vector<4x320xf32> -> vector<4x320xf32>
    %376 = vector.extract_strided_slice %375 {offsets = [0, 0], sizes = [4, 256], strides = [1, 1]} : vector<4x320xf32> to vector<4x256xf32>
    %377 = vector.extract_strided_slice %375 {offsets = [0, 256], sizes = [4, 64], strides = [1, 1]} : vector<4x320xf32> to vector<4x64xf32>
    %378 = arith.addf %377, %338 : vector<4x64xf32>
    %c0_45 = arith.constant 0 : index
    %c64 = arith.constant 64 : index
    %379 = vector.load %arg7[%c0_45, %c64] : memref<4x512xf32, #tpu.memory_space<vmem>>, vector<4x64xf32>
    tpu.vector_store %arg7[%c0_45, %c64], %378 {strides = array<i32>} : memref<4x512xf32, #tpu.memory_space<vmem>>, vector<4x64xf32>,
    %cst_46 = arith.constant dense<0xFF800000> : vector<4xf32>
    %380 = vector.multi_reduction <maximumf>, %378, %cst_46 [1] : vector<4x64xf32> to vector<4xf32>
    %381 = vector.shape_cast %380 : vector<4xf32> to vector<4x1xf32>
    %382 = vector.broadcast %381 : vector<4x1xf32> to vector<4x64xf32>
    %383 = arith.cmpf oeq, %378, %382 : vector<4x64xf32>
    %384 = arith.extui %383 : vector<4x64xi1> to vector<4x64xi32>
    %385 = arith.sitofp %384 : vector<4x64xi32> to vector<4x64xf32>
    %386 = arith.truncf %385 : vector<4x64xf32> to vector<4x64xbf16>
    %cst_47 = arith.constant dense<0.000000e+00> : vector<4x320xf32>
    %387 = tpu.matmul %386, %335, %cst_47 {dimension_numbers = #tpu.dot_dimension_numbers<[1], [0], [0], [1], [0, 0, 1, 1], [], []>} : vector<4x64xbf16>, vector<64x320xbf16>, vector<4x320xf32> -> vector<4x320xf32>
    %388 = vector.extract_strided_slice %387 {offsets = [0, 0], sizes = [4, 256], strides = [1, 1]} : vector<4x320xf32> to vector<4x256xf32>
    %389 = vector.extract_strided_slice %387 {offsets = [0, 256], sizes = [4, 1], strides = [1, 1]} : vector<4x320xf32> to vector<4x1xf32>
    %c0_48 = arith.constant 0 : index
    %c1 = arith.constant 1 : index
    %390 = vector.load %arg8[%c0_48, %c1] : memref<4x8xf32, #tpu.memory_space<vmem>>, vector<4x1xf32>
    tpu.vector_store %arg8[%c0_48, %c1], %389 {strides = array<i32>} : memref<4x8xf32, #tpu.memory_space<vmem>>, vector<4x1xf32>,
    %391 = arith.addf %388, %376 : vector<4x256xf32>
    %392 = vector.extract_strided_slice %391 {offsets = [0, 0], sizes = [4, 128], strides = [1, 1]} : vector<4x256xf32> to vector<4x128xf32>
    %393 = arith.negf %392 : vector<4x128xf32>
    %394 = math.exp %393 : vector<4x128xf32>
    %cst_49 = arith.constant 1.000000e+00 : f32
    %395 = vector.broadcast %cst_49 : f32 to vector<4x128xf32>
    %396 = arith.addf %395, %394 : vector<4x128xf32>
    %397 = arith.divf %395, %396 : vector<4x128xf32>
    %398 = vector.extract_strided_slice %391 {offsets = [0, 128], sizes = [4, 128], strides = [1, 1]} : vector<4x256xf32> to vector<4x128xf32>
    %399 = math.tanh %398 : vector<4x128xf32>
    %400 = arith.negf %398 : vector<4x128xf32>
    %401 = math.exp %400 : vector<4x128xf32>
    %cst_50 = arith.constant 1.000000e+00 : f32
    %402 = vector.broadcast %cst_50 : f32 to vector<4x128xf32>
    %403 = arith.addf %402, %401 : vector<4x128xf32>
    %404 = arith.divf %402, %403 : vector<4x128xf32>
    %405 = vector.extract_strided_slice %397 {offsets = [0, 0], sizes = [4, 64], strides = [1, 1]} : vector<4x128xf32> to vector<4x64xf32>
    %406 = vector.extract_strided_slice %397 {offsets = [0, 64], sizes = [4, 64], strides = [1, 1]} : vector<4x128xf32> to vector<4x64xf32>
    %407 = vector.extract_strided_slice %399 {offsets = [0, 0], sizes = [4, 64], strides = [1, 1]} : vector<4x128xf32> to vector<4x64xf32>
    %408 = vector.extract_strided_slice %404 {offsets = [0, 64], sizes = [4, 64], strides = [1, 1]} : vector<4x128xf32> to vector<4x64xf32>
    %409 = arith.mulf %406, %371 : vector<4x64xf32>
    %410 = arith.mulf %405, %407 : vector<4x64xf32>
    %411 = arith.addf %409, %410 : vector<4x64xf32>
    %412 = math.tanh %411 : vector<4x64xf32>
    %413 = arith.mulf %408, %412 : vector<4x64xf32>
    %414 = arith.truncf %413 : vector<4x64xf32> to vector<4x64xbf16>
    %cst_51 = arith.constant dense<0.000000e+00> : vector<4x320xf32>
    %415 = tpu.matmul %414, %334, %cst_51 {dimension_numbers = #tpu.dot_dimension_numbers<[1], [0], [0], [1], [0, 0, 1, 1], [], []>} : vector<4x64xbf16>, vector<64x320xbf16>, vector<4x320xf32> -> vector<4x320xf32>
    %416 = vector.extract_strided_slice %415 {offsets = [0, 0], sizes = [4, 256], strides = [1, 1]} : vector<4x320xf32> to vector<4x256xf32>
    %417 = vector.extract_strided_slice %415 {offsets = [0, 256], sizes = [4, 64], strides = [1, 1]} : vector<4x320xf32> to vector<4x64xf32>
    %418 = arith.addf %417, %338 : vector<4x64xf32>
    %c0_52 = arith.constant 0 : index
    %c128 = arith.constant 128 : index
    %419 = vector.load %arg7[%c0_52, %c128] : memref<4x512xf32, #tpu.memory_space<vmem>>, vector<4x64xf32>
    tpu.vector_store %arg7[%c0_52, %c128], %418 {strides = array<i32>} : memref<4x512xf32, #tpu.memory_space<vmem>>, vector<4x64xf32>,
    %cst_53 = arith.constant dense<0xFF800000> : vector<4xf32>
    %420 = vector.multi_reduction <maximumf>, %418, %cst_53 [1] : vector<4x64xf32> to vector<4xf32>
    %421 = vector.shape_cast %420 : vector<4xf32> to vector<4x1xf32>
    %422 = vector.broadcast %421 : vector<4x1xf32> to vector<4x64xf32>
    %423 = arith.cmpf oeq, %418, %422 : vector<4x64xf32>
    %424 = arith.extui %423 : vector<4x64xi1> to vector<4x64xi32>
    %425 = arith.sitofp %424 : vector<4x64xi32> to vector<4x64xf32>
    %426 = arith.truncf %425 : vector<4x64xf32> to vector<4x64xbf16>
    %cst_54 = arith.constant dense<0.000000e+00> : vector<4x320xf32>
    %427 = tpu.matmul %426, %335, %cst_54 {dimension_numbers = #tpu.dot_dimension_numbers<[1], [0], [0], [1], [0, 0, 1, 1], [], []>} : vector<4x64xbf16>, vector<64x320xbf16>, vector<4x320xf32> -> vector<4x320xf32>
    %428 = vector.extract_strided_slice %427 {offsets = [0, 0], sizes = [4, 256], strides = [1, 1]} : vector<4x320xf32> to vector<4x256xf32>
    %429 = vector.extract_strided_slice %427 {offsets = [0, 256], sizes = [4, 1], strides = [1, 1]} : vector<4x320xf32> to vector<4x1xf32>
    %c0_55 = arith.constant 0 : index
    %c2 = arith.constant 2 : index
    %430 = vector.load %arg8[%c0_55, %c2] : memref<4x8xf32, #tpu.memory_space<vmem>>, vector<4x1xf32>
    tpu.vector_store %arg8[%c0_55, %c2], %429 {strides = array<i32>} : memref<4x8xf32, #tpu.memory_space<vmem>>, vector<4x1xf32>,
    %431 = arith.addf %428, %416 : vector<4x256xf32>
    %432 = vector.extract_strided_slice %431 {offsets = [0, 0], sizes = [4, 128], strides = [1, 1]} : vector<4x256xf32> to vector<4x128xf32>
    %433 = arith.negf %432 : vector<4x128xf32>
    %434 = math.exp %433 : vector<4x128xf32>
    %cst_56 = arith.constant 1.000000e+00 : f32
    %435 = vector.broadcast %cst_56 : f32 to vector<4x128xf32>
    %436 = arith.addf %435, %434 : vector<4x128xf32>
    %437 = arith.divf %435, %436 : vector<4x128xf32>
    %438 = vector.extract_strided_slice %431 {offsets = [0, 128], sizes = [4, 128], strides = [1, 1]} : vector<4x256xf32> to vector<4x128xf32>
    %439 = math.tanh %438 : vector<4x128xf32>
    %440 = arith.negf %438 : vector<4x128xf32>
    %441 = math.exp %440 : vector<4x128xf32>
    %cst_57 = arith.constant 1.000000e+00 : f32
    %442 = vector.broadcast %cst_57 : f32 to vector<4x128xf32>
    %443 = arith.addf %442, %441 : vector<4x128xf32>
    %444 = arith.divf %442, %443 : vector<4x128xf32>
    %445 = vector.extract_strided_slice %437 {offsets = [0, 0], sizes = [4, 64], strides = [1, 1]} : vector<4x128xf32> to vector<4x64xf32>
    %446 = vector.extract_strided_slice %437 {offsets = [0, 64], sizes = [4, 64], strides = [1, 1]} : vector<4x128xf32> to vector<4x64xf32>
    %447 = vector.extract_strided_slice %439 {offsets = [0, 0], sizes = [4, 64], strides = [1, 1]} : vector<4x128xf32> to vector<4x64xf32>
    %448 = vector.extract_strided_slice %444 {offsets = [0, 64], sizes = [4, 64], strides = [1, 1]} : vector<4x128xf32> to vector<4x64xf32>
    %449 = arith.mulf %446, %411 : vector<4x64xf32>
    %450 = arith.mulf %445, %447 : vector<4x64xf32>
    %451 = arith.addf %449, %450 : vector<4x64xf32>
    %452 = math.tanh %451 : vector<4x64xf32>
    %453 = arith.mulf %448, %452 : vector<4x64xf32>
    %454 = arith.truncf %453 : vector<4x64xf32> to vector<4x64xbf16>
    %cst_58 = arith.constant dense<0.000000e+00> : vector<4x320xf32>
    %455 = tpu.matmul %454, %334, %cst_58 {dimension_numbers = #tpu.dot_dimension_numbers<[1], [0], [0], [1], [0, 0, 1, 1], [], []>} : vector<4x64xbf16>, vector<64x320xbf16>, vector<4x320xf32> -> vector<4x320xf32>
    %456 = vector.extract_strided_slice %455 {offsets = [0, 0], sizes = [4, 256], strides = [1, 1]} : vector<4x320xf32> to vector<4x256xf32>
    %457 = vector.extract_strided_slice %455 {offsets = [0, 256], sizes = [4, 64], strides = [1, 1]} : vector<4x320xf32> to vector<4x64xf32>
    %458 = arith.addf %457, %338 : vector<4x64xf32>
    %c0_59 = arith.constant 0 : index
    %c192 = arith.constant 192 : index
    %459 = vector.load %arg7[%c0_59, %c192] : memref<4x512xf32, #tpu.memory_space<vmem>>, vector<4x64xf32>
    tpu.vector_store %arg7[%c0_59, %c192], %458 {strides = array<i32>} : memref<4x512xf32, #tpu.memory_space<vmem>>, vector<4x64xf32>,
    %cst_60 = arith.constant dense<0xFF800000> : vector<4xf32>
    %460 = vector.multi_reduction <maximumf>, %458, %cst_60 [1] : vector<4x64xf32> to vector<4xf32>
    %461 = vector.shape_cast %460 : vector<4xf32> to vector<4x1xf32>
    %462 = vector.broadcast %461 : vector<4x1xf32> to vector<4x64xf32>
    %463 = arith.cmpf oeq, %458, %462 : vector<4x64xf32>
    %464 = arith.extui %463 : vector<4x64xi1> to vector<4x64xi32>
    %465 = arith.sitofp %464 : vector<4x64xi32> to vector<4x64xf32>
    %466 = arith.truncf %465 : vector<4x64xf32> to vector<4x64xbf16>
    %cst_61 = arith.constant dense<0.000000e+00> : vector<4x320xf32>
    %467 = tpu.matmul %466, %335, %cst_61 {dimension_numbers = #tpu.dot_dimension_numbers<[1], [0], [0], [1], [0, 0, 1, 1], [], []>} : vector<4x64xbf16>, vector<64x320xbf16>, vector<4x320xf32> -> vector<4x320xf32>
    %468 = vector.extract_strided_slice %467 {offsets = [0, 0], sizes = [4, 256], strides = [1, 1]} : vector<4x320xf32> to vector<4x256xf32>
    %469 = vector.extract_strided_slice %467 {offsets = [0, 256], sizes = [4, 1], strides = [1, 1]} : vector<4x320xf32> to vector<4x1xf32>
    %c0_62 = arith.constant 0 : index
    %c3 = arith.constant 3 : index
    %470 = vector.load %arg8[%c0_62, %c3] : memref<4x8xf32, #tpu.memory_space<vmem>>, vector<4x1xf32>
    tpu.vector_store %arg8[%c0_62, %c3], %469 {strides = array<i32>} : memref<4x8xf32, #tpu.memory_space<vmem>>, vector<4x1xf32>,
    %471 = arith.addf %468, %456 : vector<4x256xf32>
    %472 = vector.extract_strided_slice %471 {offsets = [0, 0], sizes = [4, 128], strides = [1, 1]} : vector<4x256xf32> to vector<4x128xf32>
    %473 = arith.negf %472 : vector<4x128xf32>
    %474 = math.exp %473 : vector<4x128xf32>
    %cst_63 = arith.constant 1.000000e+00 : f32
    %475 = vector.broadcast %cst_63 : f32 to vector<4x128xf32>
    %476 = arith.addf %475, %474 : vector<4x128xf32>
    %477 = arith.divf %475, %476 : vector<4x128xf32>
    %478 = vector.extract_strided_slice %471 {offsets = [0, 128], sizes = [4, 128], strides = [1, 1]} : vector<4x256xf32> to vector<4x128xf32>
    %479 = math.tanh %478 : vector<4x128xf32>
    %480 = arith.negf %478 : vector<4x128xf32>
    %481 = math.exp %480 : vector<4x128xf32>
    %cst_64 = arith.constant 1.000000e+00 : f32
    %482 = vector.broadcast %cst_64 : f32 to vector<4x128xf32>
    %483 = arith.addf %482, %481 : vector<4x128xf32>
    %484 = arith.divf %482, %483 : vector<4x128xf32>
    %485 = vector.extract_strided_slice %477 {offsets = [0, 0], sizes = [4, 64], strides = [1, 1]} : vector<4x128xf32> to vector<4x64xf32>
    %486 = vector.extract_strided_slice %477 {offsets = [0, 64], sizes = [4, 64], strides = [1, 1]} : vector<4x128xf32> to vector<4x64xf32>
    %487 = vector.extract_strided_slice %479 {offsets = [0, 0], sizes = [4, 64], strides = [1, 1]} : vector<4x128xf32> to vector<4x64xf32>
    %488 = vector.extract_strided_slice %484 {offsets = [0, 64], sizes = [4, 64], strides = [1, 1]} : vector<4x128xf32> to vector<4x64xf32>
    %489 = arith.mulf %486, %451 : vector<4x64xf32>
    %490 = arith.mulf %485, %487 : vector<4x64xf32>
    %491 = arith.addf %489, %490 : vector<4x64xf32>
    %492 = math.tanh %491 : vector<4x64xf32>
    %493 = arith.mulf %488, %492 : vector<4x64xf32>
    %494 = arith.truncf %493 : vector<4x64xf32> to vector<4x64xbf16>
    %cst_65 = arith.constant dense<0.000000e+00> : vector<4x320xf32>
    %495 = tpu.matmul %494, %334, %cst_65 {dimension_numbers = #tpu.dot_dimension_numbers<[1], [0], [0], [1], [0, 0, 1, 1], [], []>} : vector<4x64xbf16>, vector<64x320xbf16>, vector<4x320xf32> -> vector<4x320xf32>
    %496 = vector.extract_strided_slice %495 {offsets = [0, 0], sizes = [4, 256], strides = [1, 1]} : vector<4x320xf32> to vector<4x256xf32>
    %497 = vector.extract_strided_slice %495 {offsets = [0, 256], sizes = [4, 64], strides = [1, 1]} : vector<4x320xf32> to vector<4x64xf32>
    %498 = arith.addf %497, %338 : vector<4x64xf32>
    %c0_66 = arith.constant 0 : index
    %c256 = arith.constant 256 : index
    %499 = vector.load %arg7[%c0_66, %c256] : memref<4x512xf32, #tpu.memory_space<vmem>>, vector<4x64xf32>
    tpu.vector_store %arg7[%c0_66, %c256], %498 {strides = array<i32>} : memref<4x512xf32, #tpu.memory_space<vmem>>, vector<4x64xf32>,
    %cst_67 = arith.constant dense<0xFF800000> : vector<4xf32>
    %500 = vector.multi_reduction <maximumf>, %498, %cst_67 [1] : vector<4x64xf32> to vector<4xf32>
    %501 = vector.shape_cast %500 : vector<4xf32> to vector<4x1xf32>
    %502 = vector.broadcast %501 : vector<4x1xf32> to vector<4x64xf32>
    %503 = arith.cmpf oeq, %498, %502 : vector<4x64xf32>
    %504 = arith.extui %503 : vector<4x64xi1> to vector<4x64xi32>
    %505 = arith.sitofp %504 : vector<4x64xi32> to vector<4x64xf32>
    %506 = arith.truncf %505 : vector<4x64xf32> to vector<4x64xbf16>
    %cst_68 = arith.constant dense<0.000000e+00> : vector<4x320xf32>
    %507 = tpu.matmul %506, %335, %cst_68 {dimension_numbers = #tpu.dot_dimension_numbers<[1], [0], [0], [1], [0, 0, 1, 1], [], []>} : vector<4x64xbf16>, vector<64x320xbf16>, vector<4x320xf32> -> vector<4x320xf32>
    %508 = vector.extract_strided_slice %507 {offsets = [0, 0], sizes = [4, 256], strides = [1, 1]} : vector<4x320xf32> to vector<4x256xf32>
    %509 = vector.extract_strided_slice %507 {offsets = [0, 256], sizes = [4, 1], strides = [1, 1]} : vector<4x320xf32> to vector<4x1xf32>
    %c0_69 = arith.constant 0 : index
    %c4 = arith.constant 4 : index
    %510 = vector.load %arg8[%c0_69, %c4] : memref<4x8xf32, #tpu.memory_space<vmem>>, vector<4x1xf32>
    tpu.vector_store %arg8[%c0_69, %c4], %509 {strides = array<i32>} : memref<4x8xf32, #tpu.memory_space<vmem>>, vector<4x1xf32>,
    %511 = arith.addf %508, %496 : vector<4x256xf32>
    %512 = vector.extract_strided_slice %511 {offsets = [0, 0], sizes = [4, 128], strides = [1, 1]} : vector<4x256xf32> to vector<4x128xf32>
    %513 = arith.negf %512 : vector<4x128xf32>
    %514 = math.exp %513 : vector<4x128xf32>
    %cst_70 = arith.constant 1.000000e+00 : f32
    %515 = vector.broadcast %cst_70 : f32 to vector<4x128xf32>
    %516 = arith.addf %515, %514 : vector<4x128xf32>
    %517 = arith.divf %515, %516 : vector<4x128xf32>
    %518 = vector.extract_strided_slice %511 {offsets = [0, 128], sizes = [4, 128], strides = [1, 1]} : vector<4x256xf32> to vector<4x128xf32>
    %519 = math.tanh %518 : vector<4x128xf32>
    %520 = arith.negf %518 : vector<4x128xf32>
    %521 = math.exp %520 : vector<4x128xf32>
    %cst_71 = arith.constant 1.000000e+00 : f32
    %522 = vector.broadcast %cst_71 : f32 to vector<4x128xf32>
    %523 = arith.addf %522, %521 : vector<4x128xf32>
    %524 = arith.divf %522, %523 : vector<4x128xf32>
    %525 = vector.extract_strided_slice %517 {offsets = [0, 0], sizes = [4, 64], strides = [1, 1]} : vector<4x128xf32> to vector<4x64xf32>
    %526 = vector.extract_strided_slice %517 {offsets = [0, 64], sizes = [4, 64], strides = [1, 1]} : vector<4x128xf32> to vector<4x64xf32>
    %527 = vector.extract_strided_slice %519 {offsets = [0, 0], sizes = [4, 64], strides = [1, 1]} : vector<4x128xf32> to vector<4x64xf32>
    %528 = vector.extract_strided_slice %524 {offsets = [0, 64], sizes = [4, 64], strides = [1, 1]} : vector<4x128xf32> to vector<4x64xf32>
    %529 = arith.mulf %526, %491 : vector<4x64xf32>
    %530 = arith.mulf %525, %527 : vector<4x64xf32>
    %531 = arith.addf %529, %530 : vector<4x64xf32>
    %532 = math.tanh %531 : vector<4x64xf32>
    %533 = arith.mulf %528, %532 : vector<4x64xf32>
    %534 = arith.truncf %533 : vector<4x64xf32> to vector<4x64xbf16>
    %cst_72 = arith.constant dense<0.000000e+00> : vector<4x320xf32>
    %535 = tpu.matmul %534, %334, %cst_72 {dimension_numbers = #tpu.dot_dimension_numbers<[1], [0], [0], [1], [0, 0, 1, 1], [], []>} : vector<4x64xbf16>, vector<64x320xbf16>, vector<4x320xf32> -> vector<4x320xf32>
    %536 = vector.extract_strided_slice %535 {offsets = [0, 0], sizes = [4, 256], strides = [1, 1]} : vector<4x320xf32> to vector<4x256xf32>
    %537 = vector.extract_strided_slice %535 {offsets = [0, 256], sizes = [4, 64], strides = [1, 1]} : vector<4x320xf32> to vector<4x64xf32>
    %538 = arith.addf %537, %338 : vector<4x64xf32>
    %c0_73 = arith.constant 0 : index
    %c320 = arith.constant 320 : index
    %539 = vector.load %arg7[%c0_73, %c320] : memref<4x512xf32, #tpu.memory_space<vmem>>, vector<4x64xf32>
    tpu.vector_store %arg7[%c0_73, %c320], %538 {strides = array<i32>} : memref<4x512xf32, #tpu.memory_space<vmem>>, vector<4x64xf32>,
    %cst_74 = arith.constant dense<0xFF800000> : vector<4xf32>
    %540 = vector.multi_reduction <maximumf>, %538, %cst_74 [1] : vector<4x64xf32> to vector<4xf32>
    %541 = vector.shape_cast %540 : vector<4xf32> to vector<4x1xf32>
    %542 = vector.broadcast %541 : vector<4x1xf32> to vector<4x64xf32>
    %543 = arith.cmpf oeq, %538, %542 : vector<4x64xf32>
    %544 = arith.extui %543 : vector<4x64xi1> to vector<4x64xi32>
    %545 = arith.sitofp %544 : vector<4x64xi32> to vector<4x64xf32>
    %546 = arith.truncf %545 : vector<4x64xf32> to vector<4x64xbf16>
    %cst_75 = arith.constant dense<0.000000e+00> : vector<4x320xf32>
    %547 = tpu.matmul %546, %335, %cst_75 {dimension_numbers = #tpu.dot_dimension_numbers<[1], [0], [0], [1], [0, 0, 1, 1], [], []>} : vector<4x64xbf16>, vector<64x320xbf16>, vector<4x320xf32> -> vector<4x320xf32>
    %548 = vector.extract_strided_slice %547 {offsets = [0, 0], sizes = [4, 256], strides = [1, 1]} : vector<4x320xf32> to vector<4x256xf32>
    %549 = vector.extract_strided_slice %547 {offsets = [0, 256], sizes = [4, 1], strides = [1, 1]} : vector<4x320xf32> to vector<4x1xf32>
    %c0_76 = arith.constant 0 : index
    %c5 = arith.constant 5 : index
    %550 = vector.load %arg8[%c0_76, %c5] : memref<4x8xf32, #tpu.memory_space<vmem>>, vector<4x1xf32>
    tpu.vector_store %arg8[%c0_76, %c5], %549 {strides = array<i32>} : memref<4x8xf32, #tpu.memory_space<vmem>>, vector<4x1xf32>,
    %551 = arith.addf %548, %536 : vector<4x256xf32>
    %552 = vector.extract_strided_slice %551 {offsets = [0, 0], sizes = [4, 128], strides = [1, 1]} : vector<4x256xf32> to vector<4x128xf32>
    %553 = arith.negf %552 : vector<4x128xf32>
    %554 = math.exp %553 : vector<4x128xf32>
    %cst_77 = arith.constant 1.000000e+00 : f32
    %555 = vector.broadcast %cst_77 : f32 to vector<4x128xf32>
    %556 = arith.addf %555, %554 : vector<4x128xf32>
    %557 = arith.divf %555, %556 : vector<4x128xf32>
    %558 = vector.extract_strided_slice %551 {offsets = [0, 128], sizes = [4, 128], strides = [1, 1]} : vector<4x256xf32> to vector<4x128xf32>
    %559 = math.tanh %558 : vector<4x128xf32>
    %560 = arith.negf %558 : vector<4x128xf32>
    %561 = math.exp %560 : vector<4x128xf32>
    %cst_78 = arith.constant 1.000000e+00 : f32
    %562 = vector.broadcast %cst_78 : f32 to vector<4x128xf32>
    %563 = arith.addf %562, %561 : vector<4x128xf32>
    %564 = arith.divf %562, %563 : vector<4x128xf32>
    %565 = vector.extract_strided_slice %557 {offsets = [0, 0], sizes = [4, 64], strides = [1, 1]} : vector<4x128xf32> to vector<4x64xf32>
    %566 = vector.extract_strided_slice %557 {offsets = [0, 64], sizes = [4, 64], strides = [1, 1]} : vector<4x128xf32> to vector<4x64xf32>
    %567 = vector.extract_strided_slice %559 {offsets = [0, 0], sizes = [4, 64], strides = [1, 1]} : vector<4x128xf32> to vector<4x64xf32>
    %568 = vector.extract_strided_slice %564 {offsets = [0, 64], sizes = [4, 64], strides = [1, 1]} : vector<4x128xf32> to vector<4x64xf32>
    %569 = arith.mulf %566, %531 : vector<4x64xf32>
    %570 = arith.mulf %565, %567 : vector<4x64xf32>
    %571 = arith.addf %569, %570 : vector<4x64xf32>
    %572 = math.tanh %571 : vector<4x64xf32>
    %573 = arith.mulf %568, %572 : vector<4x64xf32>
    %574 = arith.truncf %573 : vector<4x64xf32> to vector<4x64xbf16>
    %cst_79 = arith.constant dense<0.000000e+00> : vector<4x320xf32>
    %575 = tpu.matmul %574, %334, %cst_79 {dimension_numbers = #tpu.dot_dimension_numbers<[1], [0], [0], [1], [0, 0, 1, 1], [], []>} : vector<4x64xbf16>, vector<64x320xbf16>, vector<4x320xf32> -> vector<4x320xf32>
    %576 = vector.extract_strided_slice %575 {offsets = [0, 0], sizes = [4, 256], strides = [1, 1]} : vector<4x320xf32> to vector<4x256xf32>
    %577 = vector.extract_strided_slice %575 {offsets = [0, 256], sizes = [4, 64], strides = [1, 1]} : vector<4x320xf32> to vector<4x64xf32>
    %578 = arith.addf %577, %338 : vector<4x64xf32>
    %c0_80 = arith.constant 0 : index
    %c384 = arith.constant 384 : index
    %579 = vector.load %arg7[%c0_80, %c384] : memref<4x512xf32, #tpu.memory_space<vmem>>, vector<4x64xf32>
    tpu.vector_store %arg7[%c0_80, %c384], %578 {strides = array<i32>} : memref<4x512xf32, #tpu.memory_space<vmem>>, vector<4x64xf32>,
    %cst_81 = arith.constant dense<0xFF800000> : vector<4xf32>
    %580 = vector.multi_reduction <maximumf>, %578, %cst_81 [1] : vector<4x64xf32> to vector<4xf32>
    %581 = vector.shape_cast %580 : vector<4xf32> to vector<4x1xf32>
    %582 = vector.broadcast %581 : vector<4x1xf32> to vector<4x64xf32>
    %583 = arith.cmpf oeq, %578, %582 : vector<4x64xf32>
    %584 = arith.extui %583 : vector<4x64xi1> to vector<4x64xi32>
    %585 = arith.sitofp %584 : vector<4x64xi32> to vector<4x64xf32>
    %586 = arith.truncf %585 : vector<4x64xf32> to vector<4x64xbf16>
    %cst_82 = arith.constant dense<0.000000e+00> : vector<4x320xf32>
    %587 = tpu.matmul %586, %335, %cst_82 {dimension_numbers = #tpu.dot_dimension_numbers<[1], [0], [0], [1], [0, 0, 1, 1], [], []>} : vector<4x64xbf16>, vector<64x320xbf16>, vector<4x320xf32> -> vector<4x320xf32>
    %588 = vector.extract_strided_slice %587 {offsets = [0, 0], sizes = [4, 256], strides = [1, 1]} : vector<4x320xf32> to vector<4x256xf32>
    %589 = vector.extract_strided_slice %587 {offsets = [0, 256], sizes = [4, 1], strides = [1, 1]} : vector<4x320xf32> to vector<4x1xf32>
    %c0_83 = arith.constant 0 : index
    %c6 = arith.constant 6 : index
    %590 = vector.load %arg8[%c0_83, %c6] : memref<4x8xf32, #tpu.memory_space<vmem>>, vector<4x1xf32>
    tpu.vector_store %arg8[%c0_83, %c6], %589 {strides = array<i32>} : memref<4x8xf32, #tpu.memory_space<vmem>>, vector<4x1xf32>,
    %591 = arith.addf %588, %576 : vector<4x256xf32>
    %592 = vector.extract_strided_slice %591 {offsets = [0, 0], sizes = [4, 128], strides = [1, 1]} : vector<4x256xf32> to vector<4x128xf32>
    %593 = arith.negf %592 : vector<4x128xf32>
    %594 = math.exp %593 : vector<4x128xf32>
    %cst_84 = arith.constant 1.000000e+00 : f32
    %595 = vector.broadcast %cst_84 : f32 to vector<4x128xf32>
    %596 = arith.addf %595, %594 : vector<4x128xf32>
    %597 = arith.divf %595, %596 : vector<4x128xf32>
    %598 = vector.extract_strided_slice %591 {offsets = [0, 128], sizes = [4, 128], strides = [1, 1]} : vector<4x256xf32> to vector<4x128xf32>
    %599 = math.tanh %598 : vector<4x128xf32>
    %600 = arith.negf %598 : vector<4x128xf32>
    %601 = math.exp %600 : vector<4x128xf32>
    %cst_85 = arith.constant 1.000000e+00 : f32
    %602 = vector.broadcast %cst_85 : f32 to vector<4x128xf32>
    %603 = arith.addf %602, %601 : vector<4x128xf32>
    %604 = arith.divf %602, %603 : vector<4x128xf32>
    %605 = vector.extract_strided_slice %597 {offsets = [0, 0], sizes = [4, 64], strides = [1, 1]} : vector<4x128xf32> to vector<4x64xf32>
    %606 = vector.extract_strided_slice %597 {offsets = [0, 64], sizes = [4, 64], strides = [1, 1]} : vector<4x128xf32> to vector<4x64xf32>
    %607 = vector.extract_strided_slice %599 {offsets = [0, 0], sizes = [4, 64], strides = [1, 1]} : vector<4x128xf32> to vector<4x64xf32>
    %608 = vector.extract_strided_slice %604 {offsets = [0, 64], sizes = [4, 64], strides = [1, 1]} : vector<4x128xf32> to vector<4x64xf32>
    %609 = arith.mulf %606, %571 : vector<4x64xf32>
    %610 = arith.mulf %605, %607 : vector<4x64xf32>
    %611 = arith.addf %609, %610 : vector<4x64xf32>
    %612 = math.tanh %611 : vector<4x64xf32>
    %613 = arith.mulf %608, %612 : vector<4x64xf32>
    %614 = arith.truncf %613 : vector<4x64xf32> to vector<4x64xbf16>
    %cst_86 = arith.constant dense<0.000000e+00> : vector<4x320xf32>
    %615 = tpu.matmul %614, %334, %cst_86 {dimension_numbers = #tpu.dot_dimension_numbers<[1], [0], [0], [1], [0, 0, 1, 1], [], []>} : vector<4x64xbf16>, vector<64x320xbf16>, vector<4x320xf32> -> vector<4x320xf32>
    %616 = vector.extract_strided_slice %615 {offsets = [0, 256], sizes = [4, 64], strides = [1, 1]} : vector<4x320xf32> to vector<4x64xf32>
    %617 = arith.addf %616, %338 : vector<4x64xf32>
    %c0_87 = arith.constant 0 : index
    %c448 = arith.constant 448 : index
    %618 = vector.load %arg7[%c0_87, %c448] : memref<4x512xf32, #tpu.memory_space<vmem>>, vector<4x64xf32>
    tpu.vector_store %arg7[%c0_87, %c448], %617 {strides = array<i32>} : memref<4x512xf32, #tpu.memory_space<vmem>>, vector<4x64xf32>,
    %cst_88 = arith.constant dense<0xFF800000> : vector<4xf32>
    %619 = vector.multi_reduction <maximumf>, %617, %cst_88 [1] : vector<4x64xf32> to vector<4xf32>
    %620 = vector.shape_cast %619 : vector<4xf32> to vector<4x1xf32>
    %621 = vector.broadcast %620 : vector<4x1xf32> to vector<4x64xf32>
    %622 = arith.cmpf oeq, %617, %621 : vector<4x64xf32>
    %623 = arith.extui %622 : vector<4x64xi1> to vector<4x64xi32>
    %624 = arith.sitofp %623 : vector<4x64xi32> to vector<4x64xf32>
    %625 = arith.truncf %624 : vector<4x64xf32> to vector<4x64xbf16>
    %cst_89 = arith.constant dense<0.000000e+00> : vector<4x320xf32>
    %626 = tpu.matmul %625, %335, %cst_89 {dimension_numbers = #tpu.dot_dimension_numbers<[1], [0], [0], [1], [0, 0, 1, 1], [], []>} : vector<4x64xbf16>, vector<64x320xbf16>, vector<4x320xf32> -> vector<4x320xf32>
    %627 = vector.extract_strided_slice %626 {offsets = [0, 256], sizes = [4, 1], strides = [1, 1]} : vector<4x320xf32> to vector<4x1xf32>
    %c0_90 = arith.constant 0 : index
    %c7 = arith.constant 7 : index
    %628 = vector.load %arg8[%c0_90, %c7] : memref<4x8xf32, #tpu.memory_space<vmem>>, vector<4x1xf32>
    tpu.vector_store %arg8[%c0_90, %c7], %627 {strides = array<i32>} : memref<4x8xf32, #tpu.memory_space<vmem>>, vector<4x1xf32>,
    return
  }
}

</mosaic_0001>

<llo_original>
// kernel: auto_encoder_d.1
$region0: #{auto_encoder_d.1}
  #allocation0 [shape = 'u32[]', space=smem, size = 0x4, offset = 0x4, fixed_abs, tag = 'smem constant byte address 0x4 - core index']
  #allocation1 [shape = 'u32[144,128]{1,0:T(1,128)}', space=vmem, size = 0x12000, scoped, tag = 'internal scratch']
  %s0 = inlined_call_operand.vmem [shape: s32[64,1], index: 0, kind: input, shape index: {}]
  %s1 = inlined_call_operand.vmem [shape: s32[8,1], index: 1, kind: input, shape index: {}]
  %s2 = inlined_call_operand.hbm [shape: bf16[128,128], index: 2, kind: input, shape index: {}]
  %s3 = inlined_call_operand.vmem [shape: bf16[32,256], index: 3, kind: input, shape index: {}]
  %s4 = inlined_call_operand.vmem [shape: bf16[64,320], index: 4, kind: input, shape index: {}]
  %s5 = inlined_call_operand.hbm [shape: bf16[64,320], index: 5, kind: input, shape index: {}]
  %s6 = inlined_call_operand.vmem [shape: f32[1,64], index: 6, kind: input, shape index: {}]
  %s7 = inlined_call_operand.vmem [shape: f32[4,512], index: 7, kind: output, shape index: {0}]
  %s8 = inlined_call_operand.hbm [shape: f32[4,8], index: 8, kind: output, shape index: {1}]
  %9 = xla_tuple %s7, %s8
  %s10 = sld [smem:[#allocation0]]
  $region54: #{auto_encoder_d.1} parent=0
    _
  %s12 = ssub.s32 1, %s10
  %s13 = scalar_select 0, %s12, %s10
  $region1: #{auto_encoder_d.1} parent=0
    #allocation2 [shape = 'u8[32768]{0}', space=vmem, size = 0x8000, scoped, tag = 'input window, operand 2, single buffered']
    #allocation3 [shape = 's32[1]{0}', space=sflag, size = 0x4, scoped, tag = 'scoped memory for auto_encoder_d.1']
    #allocation4 [shape = 's32[1]{0}', space=sflag, size = 0x4, scoped, tag = 'scoped memory for auto_encoder_d.1']
    #allocation5 [shape = 'u8[49152]{0}', space=vmem, size = 0xc000, scoped, tag = 'input window, operand 5, single buffered']
    #allocation6 [shape = 's32[1]{0}', space=sflag, size = 0x4, scoped, tag = 'scoped memory for auto_encoder_d.1']
    #allocation7 [shape = 'u8[2048]{0}', space=vmem, size = 0x800, scoped, tag = 'output window, operand 1, single buffered']
    %14 = vsyncpa [#allocation3], 0
    %15 = vsyncpa [#allocation6], 0
    %16 = vsyncpa [#allocation4], 0
    // Predicated region
    $region2: #{auto_encoder_d.1} parent=1 // pred_check
      _
    $region3: #{auto_encoder_d.1} parent=1 // pred_check_branch
      %18 = sbr.rel (0) target = $region5
    $region4: #{auto_encoder_d.1} parent=1 // pred_region
      _
    $region5: #{auto_encoder_d.1} parent=1 // pred_fallthru
      _
    // Predicated region
    $region6: #{auto_encoder_d.1} parent=1 // pred_check
      _
    $region7: #{auto_encoder_d.1} parent=1 // pred_check_branch
      %20 = sbr.rel (0) target = $region9
    $region8: #{auto_encoder_d.1} parent=1 // pred_region
      _
    $region9: #{auto_encoder_d.1} parent=1 // pred_fallthru
      _
    // Predicated region
    $region10: #{auto_encoder_d.1} parent=1 // pred_check
      _
    $region11: #{auto_encoder_d.1} parent=1 // pred_check_branch
      %22 = sbr.rel (0) target = $region13
    $region12: #{auto_encoder_d.1} parent=1 // pred_region
      %s24 = ssub.s32 1024, 1024
      %25 = vsyncadd [#allocation3], %s24
      %s26 = sshll.u32 [#allocation2], 4
      %s27 = int_to_ptr.vmem [resolvable:$true] %s26
      %32 = dma.hbm_to_vmem [thread:$0]  %s2, 1024, %s27, [#allocation3], 64, 64, 4
    $region13: #{auto_encoder_d.1} parent=1 // pred_fallthru
      _
    // Predicated region
    $region14: #{auto_encoder_d.1} parent=1 // pred_check
      _
    $region15: #{auto_encoder_d.1} parent=1 // pred_check_branch
      %34 = sbr.rel (0) target = $region17
    $region16: #{auto_encoder_d.1} parent=1 // pred_region
      _
    $region17: #{auto_encoder_d.1} parent=1 // pred_fallthru
      _
    // Predicated region
    $region18: #{auto_encoder_d.1} parent=1 // pred_check
      _
    $region19: #{auto_encoder_d.1} parent=1 // pred_check_branch
      %36 = sbr.rel (0) target = $region21
    $region20: #{auto_encoder_d.1} parent=1 // pred_region
      _
    $region21: #{auto_encoder_d.1} parent=1 // pred_fallthru
      _
    // Predicated region
    $region22: #{auto_encoder_d.1} parent=1 // pred_check
      _
    $region23: #{auto_encoder_d.1} parent=1 // pred_check_branch
      %38 = sbr.rel (0) target = $region25
    $region24: #{auto_encoder_d.1} parent=1 // pred_region
      %s40 = ssub.s32 1536, 1536
      %41 = vsyncadd [#allocation6], %s40
      %s42 = sshll.u32 [#allocation5], 4
      %s43 = int_to_ptr.vmem [resolvable:$true] %s42
      %48 = dma.hbm_to_vmem [thread:$0]  %s5, 1536, %s43, [#allocation6], 192, 192, 12
    $region25: #{auto_encoder_d.1} parent=1 // pred_fallthru
      _
    // Predicated region
    $region26: #{auto_encoder_d.1} parent=1 // pred_check
      _
    $region27: #{auto_encoder_d.1} parent=1 // pred_check_branch
      %50 = sbr.rel (0) target = $region29
    $region28: #{auto_encoder_d.1} parent=1 // pred_region
      _
    $region29: #{auto_encoder_d.1} parent=1 // pred_fallthru
      _
    // Predicated region
    $region30: #{auto_encoder_d.1} parent=1 // pred_check
      _
    $region31: #{auto_encoder_d.1} parent=1 // pred_check_branch
      %52 = sbr.rel (0) target = $region33
    $region32: #{auto_encoder_d.1} parent=1 // pred_region
      %53 = dma.done [#allocation3], 1024
    $region33: #{auto_encoder_d.1} parent=1 // pred_fallthru
      _
    // Predicated region
    $region34: #{auto_encoder_d.1} parent=1 // pred_check
      _
    $region35: #{auto_encoder_d.1} parent=1 // pred_check_branch
      %55 = sbr.rel (0) target = $region37
    $region36: #{auto_encoder_d.1} parent=1 // pred_region
      %56 = dma.done [#allocation6], 1536
    $region37: #{auto_encoder_d.1} parent=1 // pred_fallthru
      _
    %v58 = vld [vmem:[%s1] sm:$0xff]
    %v59 = vld [vmem:[%s0] sm:$0xff]
    %v60 = vld [vmem:[%s0 + $0x8] sm:$0xff]
    %v61 = vld [vmem:[%s0 + $0x10] sm:$0xff]
    %v62 = vld [vmem:[%s0 + $0x18] sm:$0xff]
    %v63 = vld [vmem:[%s0 + $0x20] sm:$0xff]
    %v64 = vld [vmem:[%s0 + $0x28] sm:$0xff]
    %v65 = vld [vmem:[%s0 + $0x30] sm:$0xff]
    %v66 = vld [vmem:[%s0 + $0x38] sm:$0xff]
    %v67 = vlaneseq
    %v68 = vand.u32 %v67, 127
    %69 = vset.pattern.permute.xlu0 0
    %70 = vperm.xlu0 %69, %v59
    %v71 = vpop.permute.xlu0 %70
    %72 = vset.pattern.permute.xlu0 0
    %73 = vperm.xlu0 %72, %v60
    %v74 = vpop.permute.xlu0 %73
    %75 = vset.pattern.permute.xlu0 0
    %76 = vperm.xlu0 %75, %v61
    %v77 = vpop.permute.xlu0 %76
    %78 = vset.pattern.permute.xlu0 0
    %79 = vperm.xlu0 %78, %v62
    %v80 = vpop.permute.xlu0 %79
    %81 = vset.pattern.permute.xlu0 0
    %82 = vperm.xlu0 %81, %v63
    %v83 = vpop.permute.xlu0 %82
    %84 = vset.pattern.permute.xlu0 0
    %85 = vperm.xlu0 %84, %v64
    %v86 = vpop.permute.xlu0 %85
    %87 = vset.pattern.permute.xlu0 0
    %88 = vperm.xlu0 %87, %v65
    %v89 = vpop.permute.xlu0 %88
    %90 = vset.pattern.permute.xlu0 0
    %91 = vperm.xlu0 %90, %v66
    %v92 = vpop.permute.xlu0 %91
    %vm93 = vcmp.eq.s32.totalorder %v71, %v68
    %vm94 = vcmp.eq.s32.totalorder %v74, %v68
    %vm95 = vcmp.eq.s32.totalorder %v77, %v68
    %vm96 = vcmp.eq.s32.totalorder %v80, %v68
    %vm97 = vcmp.eq.s32.totalorder %v83, %v68
    %vm98 = vcmp.eq.s32.totalorder %v86, %v68
    %vm99 = vcmp.eq.s32.totalorder %v89, %v68
    %vm100 = vcmp.eq.s32.totalorder %v92, %v68
    %v101 = vsel %vm93, 1, 0
    %v102 = vsel %vm94, 1, 0
    %v103 = vsel %vm95, 1, 0
    %v104 = vsel %vm96, 1, 0
    %v105 = vsel %vm97, 1, 0
    %v106 = vsel %vm98, 1, 0
    %v107 = vsel %vm99, 1, 0
    %v108 = vsel %vm100, 1, 0
    %v109 = vcvt.s32.f32 %v101
    %v110 = vcvt.s32.f32 %v102
    %v111 = vcvt.s32.f32 %v103
    %v112 = vcvt.s32.f32 %v104
    %v113 = vcvt.s32.f32 %v105
    %v114 = vcvt.s32.f32 %v106
    %v115 = vcvt.s32.f32 %v107
    %v116 = vcvt.s32.f32 %v108
    %v117 = vpack.c.bf16 %v110, %v109
    %v118 = vpack.c.bf16 %v112, %v111
    %v119 = vpack.c.bf16 %v114, %v113
    %v120 = vpack.c.bf16 %v116, %v115
    %v121 = vld [vmem:[#allocation2] sm:$0xf]
    %v122 = vld [vmem:[#allocation2 + $0x4] sm:$0xf]
    %v123 = vld [vmem:[#allocation2 + $0x8] sm:$0xf]
    %v124 = vld [vmem:[#allocation2 + $0xc] sm:$0xf]
    %v125 = vld [vmem:[#allocation2 + $0x10] sm:$0xf]
    %v126 = vld [vmem:[#allocation2 + $0x14] sm:$0xf]
    %v127 = vld [vmem:[#allocation2 + $0x18] sm:$0xf]
    %v128 = vld [vmem:[#allocation2 + $0x1c] sm:$0xf]
    %v129 = vld [vmem:[#allocation2 + $0x20] sm:$0xf]
    %v130 = vld [vmem:[#allocation2 + $0x24] sm:$0xf]
    %v131 = vld [vmem:[#allocation2 + $0x28] sm:$0xf]
    %v132 = vld [vmem:[#allocation2 + $0x2c] sm:$0xf]
    %v133 = vld [vmem:[#allocation2 + $0x30] sm:$0xf]
    %v134 = vld [vmem:[#allocation2 + $0x34] sm:$0xf]
    %v135 = vld [vmem:[#allocation2 + $0x38] sm:$0xf]
    %v136 = vld [vmem:[#allocation2 + $0x3c] sm:$0xf]
    %v153 = vunpack.c.l.b16 %v121
    %v154 = vunpack.c.l.b16 %v122
    %v155 = vunpack.c.l.b16 %v123
    %v156 = vunpack.c.l.b16 %v124
    %v157 = vunpack.c.l.b16 %v125
    %v158 = vunpack.c.l.b16 %v126
    %v159 = vunpack.c.l.b16 %v127
    %v160 = vunpack.c.l.b16 %v128
    %v161 = vunpack.c.l.b16 %v129
    %v162 = vunpack.c.l.b16 %v130
    %v163 = vunpack.c.l.b16 %v131
    %v164 = vunpack.c.l.b16 %v132
    %v165 = vunpack.c.l.b16 %v133
    %v166 = vunpack.c.l.b16 %v134
    %v167 = vunpack.c.l.b16 %v135
    %v168 = vunpack.c.l.b16 %v136
    %v169 = vpack.c.b16 %v154, %v153
    %v170 = vpack.c.b16 %v156, %v155
    %v171 = vpack.c.b16 %v158, %v157
    %v172 = vpack.c.b16 %v160, %v159
    %v173 = vpack.c.b16 %v162, %v161
    %v174 = vpack.c.b16 %v164, %v163
    %v175 = vpack.c.b16 %v166, %v165
    %v176 = vpack.c.b16 %v168, %v167
    %185 = vmatprep.subr.bf16.mxu0 0
    %186 = vmatpush1.bf16.msra.mxu0 %v169
    %187 = vmatprep.subr.bf16.mxu0 0
    %188 = vmatpush1.bf16.msra.mxu0 %v170
    %189 = vmatprep.subr.bf16.mxu0 0
    %190 = vmatpush1.bf16.msra.mxu0 %v171
    %191 = vmatprep.subr.bf16.mxu0 0
    %192 = vmatpush1.bf16.msra.mxu0 %v172
    %193 = vmatprep.subr.bf16.mxu0 0
    %194 = vmatpush1.bf16.msra.mxu0 %v173
    %195 = vmatprep.subr.bf16.mxu0 0
    %196 = vmatpush1.bf16.msra.mxu0 %v174
    %197 = vmatprep.subr.bf16.mxu0 0
    %198 = vmatpush1.bf16.msra.mxu0 %v175
    %199 = vmatprep.subr.bf16.mxu0 0
    %200 = vmatpush1.bf16.msra.mxu0 %v176
    %201 = vmatprep.subr.bf16.mxu0 0
    %202 = vmatpush1.bf16.msra.mxu0 0
    %203 = vmatprep.subr.bf16.mxu0 0
    %204 = vmatpush1.bf16.msra.mxu0 0
    %205 = vmatprep.subr.bf16.mxu0 0
    %206 = vmatpush1.bf16.msra.mxu0 0
    %207 = vmatprep.subr.bf16.mxu0 0
    %208 = vmatpush1.bf16.msra.mxu0 0
    %209 = vmatprep.subr.bf16.mxu0 0
    %210 = vmatpush1.bf16.msra.mxu0 0
    %211 = vmatprep.subr.bf16.mxu0 0
    %212 = vmatpush1.bf16.msra.mxu0 0
    %213 = vmatprep.subr.bf16.mxu0 0
    %214 = vmatpush1.bf16.msra.mxu0 0
    %215 = vmatprep.subr.bf16.mxu0 0
    %216 = vmatpush1.bf16.msra.mxu0 0
    %217 = vmatprep.mubr.bf16.mxu0 0
    %218 = vmatmul.mubr.bf16.gmra.mrb[0].mxu0 %v117
    %v219 = vpop.f32.mrb[0].mxu0
    %v220 = vadd.f32 0.0, %v219
    %v221 = vpop.f32.mrb[0].mxu0
    %v222 = vpop.f32.mrb[0].mxu0
    %v223 = vadd.f32 0.0, %v222
    %v224 = vpop.f32.mrb[0].mxu0
    %225 = vmatprep.mubr.bf16.mxu0 0
    %226 = vmatmul.mubr.bf16.gmra.mrb[0].mxu0 %v118
    %v227 = vpop.f32.mrb[0].mxu0
    %v228 = vadd.f32 0.0, %v227
    %v229 = vpop.f32.mrb[0].mxu0
    %v230 = vpop.f32.mrb[0].mxu0
    %v231 = vadd.f32 0.0, %v230
    %v232 = vpop.f32.mrb[0].mxu0
    %233 = vmatprep.mubr.bf16.mxu0 0
    %234 = vmatmul.mubr.bf16.gmra.mrb[0].mxu0 %v119
    %v235 = vpop.f32.mrb[0].mxu0
    %v236 = vadd.f32 0.0, %v235
    %v237 = vpop.f32.mrb[0].mxu0
    %v238 = vpop.f32.mrb[0].mxu0
    %v239 = vadd.f32 0.0, %v238
    %v240 = vpop.f32.mrb[0].mxu0
    %241 = vmatprep.mubr.bf16.mxu0 0
    %242 = vmatmul.mubr.bf16.gmra.mrb[0].mxu0 %v120
    %v243 = vpop.f32.mrb[0].mxu0
    %v244 = vadd.f32 0.0, %v243
    %v245 = vpop.f32.mrb[0].mxu0
    %v246 = vpop.f32.mrb[0].mxu0
    %v247 = vadd.f32 0.0, %v246
    %v248 = vpop.f32.mrb[0].mxu0
    %249 = vdwg.mxu0
    %v250 = vld [vmem:[%s3] sm:$0xff]
    %v251 = vld [vmem:[%s3 + $0x8] sm:$0xff]
    %v252 = vld [vmem:[%s3 + $0x10] sm:$0xff]
    %v253 = vld [vmem:[%s3 + $0x18] sm:$0xff]
    %v254 = vlaneseq
    %v255 = vshrl.u32 %v254, 7
    %vm256 = vcmp.lt.s32.totalorder %v255, 4
    %v257 = vsub.s32 7, %v68
    %v258 = vsel %vm256, %v68, %v257
    %259 = vset.pattern.permute.xlu0 0
    %260 = vperm.xlu0 %259, %v58
    %v261 = vpop.permute.xlu0 %260
    %vm262 = vcmp.lt.s32.totalorder %v258, %v261
    %v263 = vsel %vm262, 1, 0
    %v264 = vcvt.s32.f32 %v263
    %v265 = vsub.f32 1.0, %v264
    %v270 = vunpack.c.l.b16 %v250
    %v271 = vunpack.c.h.b16 %v250
    %v272 = vunpack.c.l.b16 %v251
    %v273 = vunpack.c.h.b16 %v251
    %v274 = vunpack.c.l.b16 %v252
    %v275 = vunpack.c.h.b16 %v252
    %v276 = vunpack.c.l.b16 %v253
    %v277 = vunpack.c.h.b16 %v253
    %v278 = vpack.c.b16 %v272, %v270
    %v279 = vpack.c.b16 %v273, %v271
    %v280 = vpack.c.b16 %v276, %v274
    %v281 = vpack.c.b16 %v277, %v275
    %vm286 = vcmask 261120
    %v288 = vsel %vm286, 0, 0
    %290 = vmatprep.subr.bf16.mxu0 %v279
    %291 = vmatpush1.bf16.msra.mxu0 %v278
    %292 = vmatprep.subr.bf16.mxu0 %v281
    %293 = vmatpush1.bf16.msra.mxu0 %v280
    %294 = vmatprep.subr.bf16.mxu0 0
    %295 = vmatpush1.bf16.msra.mxu0 0
    %296 = vmatprep.subr.bf16.mxu0 0
    %297 = vmatpush1.bf16.msra.mxu0 0
    %298 = vmatprep.subr.bf16.mxu0 0
    %299 = vmatpush1.bf16.msra.mxu0 0
    %300 = vmatprep.subr.bf16.mxu0 0
    %301 = vmatpush1.bf16.msra.mxu0 0
    %302 = vmatprep.subr.bf16.mxu0 0
    %303 = vmatpush1.bf16.msra.mxu0 0
    %304 = vmatprep.subr.bf16.mxu0 0
    %305 = vmatpush1.bf16.msra.mxu0 0
    %306 = vmatprep.subr.bf16.mxu0 0
    %307 = vmatpush1.bf16.msra.mxu0 0
    %308 = vmatprep.subr.bf16.mxu0 0
    %309 = vmatpush1.bf16.msra.mxu0 0
    %310 = vmatprep.subr.bf16.mxu0 0
    %311 = vmatpush1.bf16.msra.mxu0 0
    %312 = vmatprep.subr.bf16.mxu0 0
    %313 = vmatpush1.bf16.msra.mxu0 0
    %314 = vmatprep.subr.bf16.mxu0 0
    %315 = vmatpush1.bf16.msra.mxu0 0
    %316 = vmatprep.subr.bf16.mxu0 0
    %317 = vmatpush1.bf16.msra.mxu0 0
    %318 = vmatprep.subr.bf16.mxu0 0
    %319 = vmatpush1.bf16.msra.mxu0 0
    %320 = vmatprep.subr.bf16.mxu0 0
    %321 = vmatpush1.bf16.msra.mxu0 0
    %322 = vmatprep.mubr.bf16.mxu0 0
    %323 = vmatmul.mubr.bf16.gmra.mrb[0].mxu0 %v288
    %v324 = vpop.f32.mrb[0].mxu0
    %v325 = vadd.f32 0.0, %v324
    %v326 = vpop.f32.mrb[0].mxu0
    %v327 = vadd.f32 0.0, %v326
    %v328 = vpop.f32.mrb[0].mxu0
    %v329 = vpop.f32.mrb[0].mxu0
    %330 = vdwg.mxu0
    %v331 = vsel %vm256, 1, 0
    %vm332 = vcmp.eq.s32.totalorder %v331, 1
    %v333 = vsel %vm332, %v325, %v327
    %v334 = vadd.f32 %v220, %v333
    %v335 = vxor.u32 %v334, 2147483648
    %v336 = vmul.f32 %v335, 1.442695
    %v337 = vpow.pop %v336
    %v338 = vadd.f32 %v337, 1.0
    %v339 = vrcp.pop %v338
    %v340 = vmul.f32 1.0, %v339
    %v341 = vtanh.pop %v334
    %v342 = vmul.f32 %v340, 0.0
    %344 = vrot.lane.b32.xlu0 %v341, 64
    %v345 = vpop.permute.xlu0 %344
    %v347 = vmul.f32 %v340, %v345
    %349 = vrot.lane.b32.xlu0 %v347, 32
    %v350 = vpop.permute.xlu0 %349
    %v352 = vadd.f32 %v342, %v350
    %v353 = vtanh.pop %v352
    %355 = vrot.lane.b32.xlu0 %v353, 64
    %v356 = vpop.permute.xlu0 %355
    %v358 = vmul.f32 %v340, %v356
    %360 = vset.pattern.permute.xlu0 0
    %361 = vperm.xlu0 %360, %v264
    %v362 = vpop.permute.xlu0 %361
    %v364 = vmul.f32 %v362, %v358
    %366 = vset.pattern.permute.xlu0 0
    %367 = vperm.xlu0 %366, %v265
    %v368 = vpop.permute.xlu0 %367
    %v370 = vmul.f32 %v368, 0.0
    %v371 = vadd.f32 %v364, %v370
    %v372 = vmul.f32 %v362, %v352
    %v373 = vadd.f32 %v372, %v370
    %v374 = vpack.c.bf16 %v371, %v371
    %376 = vrot.lane.b32.xlu0 %v374, 32
    %v377 = vpop.permute.xlu0 %376
    %v379 = vsel %vm286, %v377, 0
    %381 = vmatprep.subr.bf16.mxu0 %v279
    %382 = vmatpush1.bf16.msra.mxu0 %v278
    %383 = vmatprep.subr.bf16.mxu0 %v281
    %384 = vmatpush1.bf16.msra.mxu0 %v280
    %385 = vmatprep.subr.bf16.mxu0 0
    %386 = vmatpush1.bf16.msra.mxu0 0
    %387 = vmatprep.subr.bf16.mxu0 0
    %388 = vmatpush1.bf16.msra.mxu0 0
    %389 = vmatprep.subr.bf16.mxu0 0
    %390 = vmatpush1.bf16.msra.mxu0 0
    %391 = vmatprep.subr.bf16.mxu0 0
    %392 = vmatpush1.bf16.msra.mxu0 0
    %393 = vmatprep.subr.bf16.mxu0 0
    %394 = vmatpush1.bf16.msra.mxu0 0
    %395 = vmatprep.subr.bf16.mxu0 0
    %396 = vmatpush1.bf16.msra.mxu0 0
    %397 = vmatprep.subr.bf16.mxu0 0
    %398 = vmatpush1.bf16.msra.mxu0 0
    %399 = vmatprep.subr.bf16.mxu0 0
    %400 = vmatpush1.bf16.msra.mxu0 0
    %401 = vmatprep.subr.bf16.mxu0 0
    %402 = vmatpush1.bf16.msra.mxu0 0
    %403 = vmatprep.subr.bf16.mxu0 0
    %404 = vmatpush1.bf16.msra.mxu0 0
    %405 = vmatprep.subr.bf16.mxu0 0
    %406 = vmatpush1.bf16.msra.mxu0 0
    %407 = vmatprep.subr.bf16.mxu0 0
    %408 = vmatpush1.bf16.msra.mxu0 0
    %409 = vmatprep.subr.bf16.mxu0 0
    %410 = vmatpush1.bf16.msra.mxu0 0
    %411 = vmatprep.subr.bf16.mxu0 0
    %412 = vmatpush1.bf16.msra.mxu0 0
    %413 = vmatprep.mubr.bf16.mxu0 0
    %414 = vmatmul.mubr.bf16.gmra.mrb[0].mxu0 %v379
    %v415 = vpop.f32.mrb[0].mxu0
    %v416 = vadd.f32 0.0, %v415
    %v417 = vpop.f32.mrb[0].mxu0
    %v418 = vadd.f32 0.0, %v417
    %v419 = vpop.f32.mrb[0].mxu0
    %v420 = vpop.f32.mrb[0].mxu0
    %421 = vdwg.mxu0
    %v422 = vsel %vm332, %v416, %v418
    %v423 = vadd.f32 %v223, %v422
    %v424 = vxor.u32 %v423, 2147483648
    %v425 = vmul.f32 %v424, 1.442695
    %v426 = vpow.pop %v425
    %v427 = vadd.f32 %v426, 1.0
    %v428 = vrcp.pop %v427
    %v429 = vmul.f32 1.0, %v428
    %v430 = vtanh.pop %v423
    %v431 = vmul.f32 %v429, %v373
    %433 = vrot.lane.b32.xlu0 %v430, 64
    %v434 = vpop.permute.xlu0 %433
    %v436 = vmul.f32 %v429, %v434
    %438 = vrot.lane.b32.xlu0 %v436, 32
    %v439 = vpop.permute.xlu0 %438
    %v441 = vadd.f32 %v431, %v439
    %v442 = vtanh.pop %v441
    %444 = vrot.lane.b32.xlu0 %v442, 64
    %v445 = vpop.permute.xlu0 %444
    %v447 = vmul.f32 %v429, %v445
    %448 = vset.pattern.permute.xlu0 1
    %449 = vperm.xlu0 %448, %v264
    %v450 = vpop.permute.xlu0 %449
    %v452 = vmul.f32 %v450, %v447
    %453 = vset.pattern.permute.xlu0 1
    %454 = vperm.xlu0 %453, %v265
    %v455 = vpop.permute.xlu0 %454
    %v457 = vmul.f32 %v455, %v371
    %v458 = vadd.f32 %v452, %v457
    %v459 = vmul.f32 %v450, %v441
    %v460 = vmul.f32 %v455, %v373
    %v461 = vadd.f32 %v459, %v460
    %v462 = vmax.f32 %v364, %v452
    %v463 = vpack.c.bf16 %v458, %v458
    %465 = vrot.lane.b32.xlu0 %v463, 32
    %v466 = vpop.permute.xlu0 %465
    %v468 = vsel %vm286, %v466, 0
    %470 = vmatprep.subr.bf16.mxu0 %v279
    %471 = vmatpush1.bf16.msra.mxu0 %v278
    %472 = vmatprep.subr.bf16.mxu0 %v281
    %473 = vmatpush1.bf16.msra.mxu0 %v280
    %474 = vmatprep.subr.bf16.mxu0 0
    %475 = vmatpush1.bf16.msra.mxu0 0
    %476 = vmatprep.subr.bf16.mxu0 0
    %477 = vmatpush1.bf16.msra.mxu0 0
    %478 = vmatprep.subr.bf16.mxu0 0
    %479 = vmatpush1.bf16.msra.mxu0 0
    %480 = vmatprep.subr.bf16.mxu0 0
    %481 = vmatpush1.bf16.msra.mxu0 0
    %482 = vmatprep.subr.bf16.mxu0 0
    %483 = vmatpush1.bf16.msra.mxu0 0
    %484 = vmatprep.subr.bf16.mxu0 0
    %485 = vmatpush1.bf16.msra.mxu0 0
    %486 = vmatprep.subr.bf16.mxu0 0
    %487 = vmatpush1.bf16.msra.mxu0 0
    %488 = vmatprep.subr.bf16.mxu0 0
    %489 = vmatpush1.bf16.msra.mxu0 0
    %490 = vmatprep.subr.bf16.mxu0 0
    %491 = vmatpush1.bf16.msra.mxu0 0
    %492 = vmatprep.subr.bf16.mxu0 0
    %493 = vmatpush1.bf16.msra.mxu0 0
    %494 = vmatprep.subr.bf16.mxu0 0
    %495 = vmatpush1.bf16.msra.mxu0 0
    %496 = vmatprep.subr.bf16.mxu0 0
    %497 = vmatpush1.bf16.msra.mxu0 0
    %498 = vmatprep.subr.bf16.mxu0 0
    %499 = vmatpush1.bf16.msra.mxu0 0
    %500 = vmatprep.subr.bf16.mxu0 0
    %501 = vmatpush1.bf16.msra.mxu0 0
    %502 = vmatprep.mubr.bf16.mxu0 0
    %503 = vmatmul.mubr.bf16.gmra.mrb[0].mxu0 %v468
    %v504 = vpop.f32.mrb[0].mxu0
    %v505 = vadd.f32 0.0, %v504
    %v506 = vpop.f32.mrb[0].mxu0
    %v507 = vadd.f32 0.0, %v506
    %v508 = vpop.f32.mrb[0].mxu0
    %v509 = vpop.f32.mrb[0].mxu0
    %510 = vdwg.mxu0
    %v511 = vsel %vm332, %v505, %v507
    %v512 = vadd.f32 %v228, %v511
    %v513 = vxor.u32 %v512, 2147483648
    %v514 = vmul.f32 %v513, 1.442695
    %v515 = vpow.pop %v514
    %v516 = vadd.f32 %v515, 1.0
    %v517 = vrcp.pop %v516
    %v518 = vmul.f32 1.0, %v517
    %v519 = vtanh.pop %v512
    %v520 = vmul.f32 %v518, %v461
    %522 = vrot.lane.b32.xlu0 %v519, 64
    %v523 = vpop.permute.xlu0 %522
    %v525 = vmul.f32 %v518, %v523
    %527 = vrot.lane.b32.xlu0 %v525, 32
    %v528 = vpop.permute.xlu0 %527
    %v530 = vadd.f32 %v520, %v528
    %v531 = vtanh.pop %v530
    %533 = vrot.lane.b32.xlu0 %v531, 64
    %v534 = vpop.permute.xlu0 %533
    %v536 = vmul.f32 %v518, %v534
    %537 = vset.pattern.permute.xlu0 2
    %538 = vperm.xlu0 %537, %v264
    %v539 = vpop.permute.xlu0 %538
    %v541 = vmul.f32 %v539, %v536
    %542 = vset.pattern.permute.xlu0 2
    %543 = vperm.xlu0 %542, %v265
    %v544 = vpop.permute.xlu0 %543
    %v546 = vmul.f32 %v544, %v458
    %v547 = vadd.f32 %v541, %v546
    %v548 = vmul.f32 %v539, %v530
    %v549 = vmul.f32 %v544, %v461
    %v550 = vadd.f32 %v548, %v549
    %v551 = vmax.f32 %v462, %v541
    %v552 = vpack.c.bf16 %v547, %v547
    %554 = vrot.lane.b32.xlu0 %v552, 32
    %v555 = vpop.permute.xlu0 %554
    %v557 = vsel %vm286, %v555, 0
    %559 = vmatprep.subr.bf16.mxu0 %v279
    %560 = vmatpush1.bf16.msra.mxu0 %v278
    %561 = vmatprep.subr.bf16.mxu0 %v281
    %562 = vmatpush1.bf16.msra.mxu0 %v280
    %563 = vmatprep.subr.bf16.mxu0 0
    %564 = vmatpush1.bf16.msra.mxu0 0
    %565 = vmatprep.subr.bf16.mxu0 0
    %566 = vmatpush1.bf16.msra.mxu0 0
    %567 = vmatprep.subr.bf16.mxu0 0
    %568 = vmatpush1.bf16.msra.mxu0 0
    %569 = vmatprep.subr.bf16.mxu0 0
    %570 = vmatpush1.bf16.msra.mxu0 0
    %571 = vmatprep.subr.bf16.mxu0 0
    %572 = vmatpush1.bf16.msra.mxu0 0
    %573 = vmatprep.subr.bf16.mxu0 0
    %574 = vmatpush1.bf16.msra.mxu0 0
    %575 = vmatprep.subr.bf16.mxu0 0
    %576 = vmatpush1.bf16.msra.mxu0 0
    %577 = vmatprep.subr.bf16.mxu0 0
    %578 = vmatpush1.bf16.msra.mxu0 0
    %579 = vmatprep.subr.bf16.mxu0 0
    %580 = vmatpush1.bf16.msra.mxu0 0
    %581 = vmatprep.subr.bf16.mxu0 0
    %582 = vmatpush1.bf16.msra.mxu0 0
    %583 = vmatprep.subr.bf16.mxu0 0
    %584 = vmatpush1.bf16.msra.mxu0 0
    %585 = vmatprep.subr.bf16.mxu0 0
    %586 = vmatpush1.bf16.msra.mxu0 0
    %587 = vmatprep.subr.bf16.mxu0 0
    %588 = vmatpush1.bf16.msra.mxu0 0
    %589 = vmatprep.subr.bf16.mxu0 0
    %590 = vmatpush1.bf16.msra.mxu0 0
    %591 = vmatprep.mubr.bf16.mxu0 0
    %592 = vmatmul.mubr.bf16.gmra.mrb[0].mxu0 %v557
    %v593 = vpop.f32.mrb[0].mxu0
    %v594 = vadd.f32 0.0, %v593
    %v595 = vpop.f32.mrb[0].mxu0
    %v596 = vadd.f32 0.0, %v595
    %v597 = vpop.f32.mrb[0].mxu0
    %v598 = vpop.f32.mrb[0].mxu0
    %599 = vdwg.mxu0
    %v600 = vsel %vm332, %v594, %v596
    %v601 = vadd.f32 %v231, %v600
    %v602 = vxor.u32 %v601, 2147483648
    %v603 = vmul.f32 %v602, 1.442695
    %v604 = vpow.pop %v603
    %v605 = vadd.f32 %v604, 1.0
    %v606 = vrcp.pop %v605
    %v607 = vmul.f32 1.0, %v606
    %v608 = vtanh.pop %v601
    %v609 = vmul.f32 %v607, %v550
    %611 = vrot.lane.b32.xlu0 %v608, 64
    %v612 = vpop.permute.xlu0 %611
    %v614 = vmul.f32 %v607, %v612
    %616 = vrot.lane.b32.xlu0 %v614, 32
    %v617 = vpop.permute.xlu0 %616
    %v619 = vadd.f32 %v609, %v617
    %v620 = vtanh.pop %v619
    %622 = vrot.lane.b32.xlu0 %v620, 64
    %v623 = vpop.permute.xlu0 %622
    %v625 = vmul.f32 %v607, %v623
    %626 = vset.pattern.permute.xlu0 3
    %627 = vperm.xlu0 %626, %v264
    %v628 = vpop.permute.xlu0 %627
    %v630 = vmul.f32 %v628, %v625
    %631 = vset.pattern.permute.xlu0 3
    %632 = vperm.xlu0 %631, %v265
    %v633 = vpop.permute.xlu0 %632
    %v635 = vmul.f32 %v633, %v547
    %v636 = vadd.f32 %v630, %v635
    %v637 = vmul.f32 %v628, %v619
    %v638 = vmul.f32 %v633, %v550
    %v639 = vadd.f32 %v637, %v638
    %v640 = vmax.f32 %v551, %v630
    %v641 = vpack.c.bf16 %v636, %v636
    %643 = vrot.lane.b32.xlu0 %v641, 32
    %v644 = vpop.permute.xlu0 %643
    %v646 = vsel %vm286, %v644, 0
    %648 = vmatprep.subr.bf16.mxu0 %v279
    %649 = vmatpush1.bf16.msra.mxu0 %v278
    %650 = vmatprep.subr.bf16.mxu0 %v281
    %651 = vmatpush1.bf16.msra.mxu0 %v280
    %652 = vmatprep.subr.bf16.mxu0 0
    %653 = vmatpush1.bf16.msra.mxu0 0
    %654 = vmatprep.subr.bf16.mxu0 0
    %655 = vmatpush1.bf16.msra.mxu0 0
    %656 = vmatprep.subr.bf16.mxu0 0
    %657 = vmatpush1.bf16.msra.mxu0 0
    %658 = vmatprep.subr.bf16.mxu0 0
    %659 = vmatpush1.bf16.msra.mxu0 0
    %660 = vmatprep.subr.bf16.mxu0 0
    %661 = vmatpush1.bf16.msra.mxu0 0
    %662 = vmatprep.subr.bf16.mxu0 0
    %663 = vmatpush1.bf16.msra.mxu0 0
    %664 = vmatprep.subr.bf16.mxu0 0
    %665 = vmatpush1.bf16.msra.mxu0 0
    %666 = vmatprep.subr.bf16.mxu0 0
    %667 = vmatpush1.bf16.msra.mxu0 0
    %668 = vmatprep.subr.bf16.mxu0 0
    %669 = vmatpush1.bf16.msra.mxu0 0
    %670 = vmatprep.subr.bf16.mxu0 0
    %671 = vmatpush1.bf16.msra.mxu0 0
    %672 = vmatprep.subr.bf16.mxu0 0
    %673 = vmatpush1.bf16.msra.mxu0 0
    %674 = vmatprep.subr.bf16.mxu0 0
    %675 = vmatpush1.bf16.msra.mxu0 0
    %676 = vmatprep.subr.bf16.mxu0 0
    %677 = vmatpush1.bf16.msra.mxu0 0
    %678 = vmatprep.subr.bf16.mxu0 0
    %679 = vmatpush1.bf16.msra.mxu0 0
    %680 = vmatprep.mubr.bf16.mxu0 0
    %681 = vmatmul.mubr.bf16.gmra.mrb[0].mxu0 %v646
    %v682 = vpop.f32.mrb[0].mxu0
    %v683 = vadd.f32 0.0, %v682
    %v684 = vpop.f32.mrb[0].mxu0
    %v685 = vadd.f32 0.0, %v684
    %v686 = vpop.f32.mrb[0].mxu0
    %v687 = vpop.f32.mrb[0].mxu0
    %688 = vdwg.mxu0
    %v689 = vsel %vm332, %v683, %v685
    %v690 = vadd.f32 %v236, %v689
    %v691 = vxor.u32 %v690, 2147483648
    %v692 = vmul.f32 %v691, 1.442695
    %v693 = vpow.pop %v692
    %v694 = vadd.f32 %v693, 1.0
    %v695 = vrcp.pop %v694
    %v696 = vmul.f32 1.0, %v695
    %v697 = vtanh.pop %v690
    %v698 = vmul.f32 %v696, %v639
    %700 = vrot.lane.b32.xlu0 %v697, 64
    %v701 = vpop.permute.xlu0 %700
    %v703 = vmul.f32 %v696, %v701
    %705 = vrot.lane.b32.xlu0 %v703, 32
    %v706 = vpop.permute.xlu0 %705
    %v708 = vadd.f32 %v698, %v706
    %v709 = vtanh.pop %v708
    %711 = vrot.lane.b32.xlu0 %v709, 64
    %v712 = vpop.permute.xlu0 %711
    %v714 = vmul.f32 %v696, %v712
    %715 = vset.pattern.permute.xlu0 4
    %716 = vperm.xlu0 %715, %v264
    %v717 = vpop.permute.xlu0 %716
    %v719 = vmul.f32 %v717, %v714
    %720 = vset.pattern.permute.xlu0 4
    %721 = vperm.xlu0 %720, %v265
    %v722 = vpop.permute.xlu0 %721
    %v724 = vmul.f32 %v722, %v636
    %v725 = vadd.f32 %v719, %v724
    %v726 = vmul.f32 %v717, %v708
    %v727 = vmul.f32 %v722, %v639
    %v728 = vadd.f32 %v726, %v727
    %v729 = vmax.f32 %v640, %v719
    %v730 = vpack.c.bf16 %v725, %v725
    %732 = vrot.lane.b32.xlu0 %v730, 32
    %v733 = vpop.permute.xlu0 %732
    %v735 = vsel %vm286, %v733, 0
    %737 = vmatprep.subr.bf16.mxu0 %v279
    %738 = vmatpush1.bf16.msra.mxu0 %v278
    %739 = vmatprep.subr.bf16.mxu0 %v281
    %740 = vmatpush1.bf16.msra.mxu0 %v280
    %741 = vmatprep.subr.bf16.mxu0 0
    %742 = vmatpush1.bf16.msra.mxu0 0
    %743 = vmatprep.subr.bf16.mxu0 0
    %744 = vmatpush1.bf16.msra.mxu0 0
    %745 = vmatprep.subr.bf16.mxu0 0
    %746 = vmatpush1.bf16.msra.mxu0 0
    %747 = vmatprep.subr.bf16.mxu0 0
    %748 = vmatpush1.bf16.msra.mxu0 0
    %749 = vmatprep.subr.bf16.mxu0 0
    %750 = vmatpush1.bf16.msra.mxu0 0
    %751 = vmatprep.subr.bf16.mxu0 0
    %752 = vmatpush1.bf16.msra.mxu0 0
    %753 = vmatprep.subr.bf16.mxu0 0
    %754 = vmatpush1.bf16.msra.mxu0 0
    %755 = vmatprep.subr.bf16.mxu0 0
    %756 = vmatpush1.bf16.msra.mxu0 0
    %757 = vmatprep.subr.bf16.mxu0 0
    %758 = vmatpush1.bf16.msra.mxu0 0
    %759 = vmatprep.subr.bf16.mxu0 0
    %760 = vmatpush1.bf16.msra.mxu0 0
    %761 = vmatprep.subr.bf16.mxu0 0
    %762 = vmatpush1.bf16.msra.mxu0 0
    %763 = vmatprep.subr.bf16.mxu0 0
    %764 = vmatpush1.bf16.msra.mxu0 0
    %765 = vmatprep.subr.bf16.mxu0 0
    %766 = vmatpush1.bf16.msra.mxu0 0
    %767 = vmatprep.subr.bf16.mxu0 0
    %768 = vmatpush1.bf16.msra.mxu0 0
    %769 = vmatprep.mubr.bf16.mxu0 0
    %770 = vmatmul.mubr.bf16.gmra.mrb[0].mxu0 %v735
    %v771 = vpop.f32.mrb[0].mxu0
    %v772 = vadd.f32 0.0, %v771
    %v773 = vpop.f32.mrb[0].mxu0
    %v774 = vadd.f32 0.0, %v773
    %v775 = vpop.f32.mrb[0].mxu0
    %v776 = vpop.f32.mrb[0].mxu0
    %777 = vdwg.mxu0
    %v778 = vsel %vm332, %v772, %v774
    %v779 = vadd.f32 %v239, %v778
    %v780 = vxor.u32 %v779, 2147483648
    %v781 = vmul.f32 %v780, 1.442695
    %v782 = vpow.pop %v781
    %v783 = vadd.f32 %v782, 1.0
    %v784 = vrcp.pop %v783
    %v785 = vmul.f32 1.0, %v784
    %v786 = vtanh.pop %v779
    %v787 = vmul.f32 %v785, %v728
    %789 = vrot.lane.b32.xlu0 %v786, 64
    %v790 = vpop.permute.xlu0 %789
    %v792 = vmul.f32 %v785, %v790
    %794 = vrot.lane.b32.xlu0 %v792, 32
    %v795 = vpop.permute.xlu0 %794
    %v797 = vadd.f32 %v787, %v795
    %v798 = vtanh.pop %v797
    %800 = vrot.lane.b32.xlu0 %v798, 64
    %v801 = vpop.permute.xlu0 %800
    %v803 = vmul.f32 %v785, %v801
    %804 = vset.pattern.permute.xlu0 5
    %805 = vperm.xlu0 %804, %v264
    %v806 = vpop.permute.xlu0 %805
    %v808 = vmul.f32 %v806, %v803
    %809 = vset.pattern.permute.xlu0 5
    %810 = vperm.xlu0 %809, %v265
    %v811 = vpop.permute.xlu0 %810
    %v813 = vmul.f32 %v811, %v725
    %v814 = vadd.f32 %v808, %v813
    %v815 = vmul.f32 %v806, %v797
    %v816 = vmul.f32 %v811, %v728
    %v817 = vadd.f32 %v815, %v816
    %v818 = vmax.f32 %v729, %v808
    %v819 = vpack.c.bf16 %v814, %v814
    %821 = vrot.lane.b32.xlu0 %v819, 32
    %v822 = vpop.permute.xlu0 %821
    %v824 = vsel %vm286, %v822, 0
    %826 = vmatprep.subr.bf16.mxu0 %v279
    %827 = vmatpush1.bf16.msra.mxu0 %v278
    %828 = vmatprep.subr.bf16.mxu0 %v281
    %829 = vmatpush1.bf16.msra.mxu0 %v280
    %830 = vmatprep.subr.bf16.mxu0 0
    %831 = vmatpush1.bf16.msra.mxu0 0
    %832 = vmatprep.subr.bf16.mxu0 0
    %833 = vmatpush1.bf16.msra.mxu0 0
    %834 = vmatprep.subr.bf16.mxu0 0
    %835 = vmatpush1.bf16.msra.mxu0 0
    %836 = vmatprep.subr.bf16.mxu0 0
    %837 = vmatpush1.bf16.msra.mxu0 0
    %838 = vmatprep.subr.bf16.mxu0 0
    %839 = vmatpush1.bf16.msra.mxu0 0
    %840 = vmatprep.subr.bf16.mxu0 0
    %841 = vmatpush1.bf16.msra.mxu0 0
    %842 = vmatprep.subr.bf16.mxu0 0
    %843 = vmatpush1.bf16.msra.mxu0 0
    %844 = vmatprep.subr.bf16.mxu0 0
    %845 = vmatpush1.bf16.msra.mxu0 0
    %846 = vmatprep.subr.bf16.mxu0 0
    %847 = vmatpush1.bf16.msra.mxu0 0
    %848 = vmatprep.subr.bf16.mxu0 0
    %849 = vmatpush1.bf16.msra.mxu0 0
    %850 = vmatprep.subr.bf16.mxu0 0
    %851 = vmatpush1.bf16.msra.mxu0 0
    %852 = vmatprep.subr.bf16.mxu0 0
    %853 = vmatpush1.bf16.msra.mxu0 0
    %854 = vmatprep.subr.bf16.mxu0 0
    %855 = vmatpush1.bf16.msra.mxu0 0
    %856 = vmatprep.subr.bf16.mxu0 0
    %857 = vmatpush1.bf16.msra.mxu0 0
    %858 = vmatprep.mubr.bf16.mxu0 0
    %859 = vmatmul.mubr.bf16.gmra.mrb[0].mxu0 %v824
    %v860 = vpop.f32.mrb[0].mxu0
    %v861 = vadd.f32 0.0, %v860
    %v862 = vpop.f32.mrb[0].mxu0
    %v863 = vadd.f32 0.0, %v862
    %v864 = vpop.f32.mrb[0].mxu0
    %v865 = vpop.f32.mrb[0].mxu0
    %866 = vdwg.mxu0
    %v867 = vsel %vm332, %v861, %v863
    %v868 = vadd.f32 %v244, %v867
    %v869 = vxor.u32 %v868, 2147483648
    %v870 = vmul.f32 %v869, 1.442695
    %v871 = vpow.pop %v870
    %v872 = vadd.f32 %v871, 1.0
    %v873 = vrcp.pop %v872
    %v874 = vmul.f32 1.0, %v873
    %v875 = vtanh.pop %v868
    %v876 = vmul.f32 %v874, %v817
    %878 = vrot.lane.b32.xlu0 %v875, 64
    %v879 = vpop.permute.xlu0 %878
    %v881 = vmul.f32 %v874, %v879
    %883 = vrot.lane.b32.xlu0 %v881, 32
    %v884 = vpop.permute.xlu0 %883
    %v886 = vadd.f32 %v876, %v884
    %v887 = vtanh.pop %v886
    %889 = vrot.lane.b32.xlu0 %v887, 64
    %v890 = vpop.permute.xlu0 %889
    %v892 = vmul.f32 %v874, %v890
    %893 = vset.pattern.permute.xlu0 6
    %894 = vperm.xlu0 %893, %v264
    %v895 = vpop.permute.xlu0 %894
    %v897 = vmul.f32 %v895, %v892
    %898 = vset.pattern.permute.xlu0 6
    %899 = vperm.xlu0 %898, %v265
    %v900 = vpop.permute.xlu0 %899
    %v902 = vmul.f32 %v900, %v814
    %v903 = vadd.f32 %v897, %v902
    %v904 = vmul.f32 %v895, %v886
    %v905 = vmul.f32 %v900, %v817
    %v906 = vadd.f32 %v904, %v905
    %v907 = vmax.f32 %v818, %v897
    %v908 = vpack.c.bf16 %v903, %v903
    %910 = vrot.lane.b32.xlu0 %v908, 32
    %v911 = vpop.permute.xlu0 %910
    %v913 = vsel %vm286, %v911, 0
    %915 = vmatprep.subr.bf16.mxu0 %v279
    %916 = vmatpush1.bf16.msra.mxu0 %v278
    %917 = vmatprep.subr.bf16.mxu0 %v281
    %918 = vmatpush1.bf16.msra.mxu0 %v280
    %919 = vmatprep.subr.bf16.mxu0 0
    %920 = vmatpush1.bf16.msra.mxu0 0
    %921 = vmatprep.subr.bf16.mxu0 0
    %922 = vmatpush1.bf16.msra.mxu0 0
    %923 = vmatprep.subr.bf16.mxu0 0
    %924 = vmatpush1.bf16.msra.mxu0 0
    %925 = vmatprep.subr.bf16.mxu0 0
    %926 = vmatpush1.bf16.msra.mxu0 0
    %927 = vmatprep.subr.bf16.mxu0 0
    %928 = vmatpush1.bf16.msra.mxu0 0
    %929 = vmatprep.subr.bf16.mxu0 0
    %930 = vmatpush1.bf16.msra.mxu0 0
    %931 = vmatprep.subr.bf16.mxu0 0
    %932 = vmatpush1.bf16.msra.mxu0 0
    %933 = vmatprep.subr.bf16.mxu0 0
    %934 = vmatpush1.bf16.msra.mxu0 0
    %935 = vmatprep.subr.bf16.mxu0 0
    %936 = vmatpush1.bf16.msra.mxu0 0
    %937 = vmatprep.subr.bf16.mxu0 0
    %938 = vmatpush1.bf16.msra.mxu0 0
    %939 = vmatprep.subr.bf16.mxu0 0
    %940 = vmatpush1.bf16.msra.mxu0 0
    %941 = vmatprep.subr.bf16.mxu0 0
    %942 = vmatpush1.bf16.msra.mxu0 0
    %943 = vmatprep.subr.bf16.mxu0 0
    %944 = vmatpush1.bf16.msra.mxu0 0
    %945 = vmatprep.subr.bf16.mxu0 0
    %946 = vmatpush1.bf16.msra.mxu0 0
    %947 = vmatprep.mubr.bf16.mxu0 0
    %948 = vmatmul.mubr.bf16.gmra.mrb[0].mxu0 %v913
    %v949 = vpop.f32.mrb[0].mxu0
    %v950 = vadd.f32 0.0, %v949
    %v951 = vpop.f32.mrb[0].mxu0
    %v952 = vadd.f32 0.0, %v951
    %v953 = vpop.f32.mrb[0].mxu0
    %v954 = vpop.f32.mrb[0].mxu0
    %955 = vdwg.mxu0
    %v956 = vsel %vm332, %v950, %v952
    %v957 = vadd.f32 %v247, %v956
    %v958 = vxor.u32 %v957, 2147483648
    %v959 = vmul.f32 %v958, 1.442695
    %v960 = vpow.pop %v959
    %v961 = vadd.f32 %v960, 1.0
    %v962 = vrcp.pop %v961
    %v963 = vmul.f32 1.0, %v962
    %v964 = vtanh.pop %v957
    %v965 = vmul.f32 %v963, %v906
    %967 = vrot.lane.b32.xlu0 %v964, 64
    %v968 = vpop.permute.xlu0 %967
    %v970 = vmul.f32 %v963, %v968
    %972 = vrot.lane.b32.xlu0 %v970, 32
    %v973 = vpop.permute.xlu0 %972
    %v975 = vadd.f32 %v965, %v973
    %v976 = vtanh.pop %v975
    %978 = vrot.lane.b32.xlu0 %v976, 64
    %v979 = vpop.permute.xlu0 %978
    %v981 = vmul.f32 %v963, %v979
    %982 = vset.pattern.permute.xlu0 7
    %983 = vperm.xlu0 %982, %v264
    %v984 = vpop.permute.xlu0 %983
    %v986 = vmul.f32 %v984, %v981
    %v987 = vmax.f32 %v907, %v986
    %989 = vrot.lane.b32.xlu0 %v987, 32
    %v990 = vpop.permute.xlu0 %989
    %v992 = vrot.slane %v987, 4
    %993 = vrot.lane.b32.xlu0 %v992, 64
    %v994 = vpop.permute.xlu0 %993
    %v996 = vsel %vm286, %v990, %v994
    %v997 = vld [vmem:[#allocation5] sm:$0xff]
    %v998 = vld [vmem:[#allocation5 + $0x8] sm:$0xf]
    %v999 = vld [vmem:[#allocation5 + $0xc] sm:$0xff]
    %v1000 = vld [vmem:[#allocation5 + $0x14] sm:$0xf]
    %v1001 = vld [vmem:[#allocation5 + $0x18] sm:$0xff]
    %v1002 = vld [vmem:[#allocation5 + $0x20] sm:$0xf]
    %v1003 = vld [vmem:[#allocation5 + $0x24] sm:$0xff]
    %v1004 = vld [vmem:[#allocation5 + $0x2c] sm:$0xf]
    %v1005 = vld [vmem:[#allocation5 + $0x30] sm:$0xff]
    %v1006 = vld [vmem:[#allocation5 + $0x38] sm:$0xf]
    %v1007 = vld [vmem:[#allocation5 + $0x3c] sm:$0xff]
    %v1008 = vld [vmem:[#allocation5 + $0x44] sm:$0xf]
    %v1009 = vld [vmem:[#allocation5 + $0x48] sm:$0xff]
    %v1010 = vld [vmem:[#allocation5 + $0x50] sm:$0xf]
    %v1011 = vld [vmem:[#allocation5 + $0x54] sm:$0xff]
    %v1012 = vld [vmem:[#allocation5 + $0x5c] sm:$0xf]
    %v1013 = vld [vmem:[%s4] sm:$0xff]
    %v1014 = vld [vmem:[%s4 + $0x8] sm:$0xf]
    %v1015 = vld [vmem:[%s4 + $0xc] sm:$0xff]
    %v1016 = vld [vmem:[%s4 + $0x14] sm:$0xf]
    %v1017 = vld [vmem:[%s4 + $0x18] sm:$0xff]
    %v1018 = vld [vmem:[%s4 + $0x20] sm:$0xf]
    %v1019 = vld [vmem:[%s4 + $0x24] sm:$0xff]
    %v1020 = vld [vmem:[%s4 + $0x2c] sm:$0xf]
    %v1021 = vld [vmem:[%s4 + $0x30] sm:$0xff]
    %v1022 = vld [vmem:[%s4 + $0x38] sm:$0xf]
    %v1023 = vld [vmem:[%s4 + $0x3c] sm:$0xff]
    %v1024 = vld [vmem:[%s4 + $0x44] sm:$0xf]
    %v1025 = vld [vmem:[%s4 + $0x48] sm:$0xff]
    %v1026 = vld [vmem:[%s4 + $0x50] sm:$0xf]
    %v1027 = vld [vmem:[%s4 + $0x54] sm:$0xff]
    %v1028 = vld [vmem:[%s4 + $0x5c] sm:$0xf]
    %v1029 = vld [vmem:[%s6] sm:$0x1]
    %v1031 = vlaneseq
    %v1032 = vshrl.u32 %v1031, 7
    %v1033 = vsub.s32 0, %v1032
    %v1034 = vrot.slane %v1029, %v1033
    %v1036 = vunpack.c.l.bf16 %v1013
    %v1037 = vunpack.c.h.bf16 %v1013
    %v1038 = vlaneseq
    %v1039 = vshrl.u32 %v1038, 7
    %v1040 = vsub.s32 1, %v1039
    %v1041 = vrot.slane %v1036, %v1040
    %v1042 = vlaneseq
    %v1043 = vshrl.u32 %v1042, 7
    %v1044 = vsub.s32 1, %v1043
    %v1045 = vrot.slane %v1037, %v1044
    %v1046 = vpack.c.bf16 %v996, %v996
    %v1055 = vunpack.c.l.b16 %v997
    %v1056 = vunpack.c.h.b16 %v997
    %v1057 = vunpack.c.l.b16 %v999
    %v1058 = vunpack.c.h.b16 %v999
    %v1059 = vunpack.c.l.b16 %v1001
    %v1060 = vunpack.c.h.b16 %v1001
    %v1061 = vunpack.c.l.b16 %v1003
    %v1062 = vunpack.c.h.b16 %v1003
    %v1063 = vunpack.c.l.b16 %v1005
    %v1064 = vunpack.c.h.b16 %v1005
    %v1065 = vunpack.c.l.b16 %v1007
    %v1066 = vunpack.c.h.b16 %v1007
    %v1067 = vunpack.c.l.b16 %v1009
    %v1068 = vunpack.c.h.b16 %v1009
    %v1069 = vunpack.c.l.b16 %v1011
    %v1070 = vunpack.c.h.b16 %v1011
    %v1071 = vpack.c.b16 %v1057, %v1055
    %v1072 = vpack.c.b16 %v1058, %v1056
    %v1073 = vpack.c.b16 %v1061, %v1059
    %v1074 = vpack.c.b16 %v1062, %v1060
    %v1075 = vpack.c.b16 %v1065, %v1063
    %v1076 = vpack.c.b16 %v1066, %v1064
    %v1077 = vpack.c.b16 %v1069, %v1067
    %v1078 = vpack.c.b16 %v1070, %v1068
    %vm1087 = vcmask 523264
    %v1089 = vsel %vm1087, %v1046, 0
    %1091 = vmatprep.subr.bf16.mxu0 %v1072
    %1092 = vmatpush1.bf16.msra.mxu0 %v1071
    %1093 = vmatprep.subr.bf16.mxu0 %v1074
    %1094 = vmatpush1.bf16.msra.mxu0 %v1073
    %1095 = vmatprep.subr.bf16.mxu0 %v1076
    %1096 = vmatpush1.bf16.msra.mxu0 %v1075
    %1097 = vmatprep.subr.bf16.mxu0 %v1078
    %1098 = vmatpush1.bf16.msra.mxu0 %v1077
    %1099 = vmatprep.subr.bf16.mxu0 0
    %1100 = vmatpush1.bf16.msra.mxu0 0
    %1101 = vmatprep.subr.bf16.mxu0 0
    %1102 = vmatpush1.bf16.msra.mxu0 0
    %1103 = vmatprep.subr.bf16.mxu0 0
    %1104 = vmatpush1.bf16.msra.mxu0 0
    %1105 = vmatprep.subr.bf16.mxu0 0
    %1106 = vmatpush1.bf16.msra.mxu0 0
    %1107 = vmatprep.subr.bf16.mxu0 0
    %1108 = vmatpush1.bf16.msra.mxu0 0
    %1109 = vmatprep.subr.bf16.mxu0 0
    %1110 = vmatpush1.bf16.msra.mxu0 0
    %1111 = vmatprep.subr.bf16.mxu0 0
    %1112 = vmatpush1.bf16.msra.mxu0 0
    %1113 = vmatprep.subr.bf16.mxu0 0
    %1114 = vmatpush1.bf16.msra.mxu0 0
    %1115 = vmatprep.subr.bf16.mxu0 0
    %1116 = vmatpush1.bf16.msra.mxu0 0
    %1117 = vmatprep.subr.bf16.mxu0 0
    %1118 = vmatpush1.bf16.msra.mxu0 0
    %1119 = vmatprep.subr.bf16.mxu0 0
    %1120 = vmatpush1.bf16.msra.mxu0 0
    %1121 = vmatprep.subr.bf16.mxu0 0
    %1122 = vmatpush1.bf16.msra.mxu0 0
    %1123 = vmatprep.mubr.bf16.mxu0 0
    %1124 = vmatmul.mubr.bf16.gmra.mrb[0].mxu0 %v1089
    %v1125 = vpop.f32.mrb[0].mxu0
    %v1126 = vadd.f32 0.0, %v1125
    %v1127 = vpop.f32.mrb[0].mxu0
    %v1128 = vadd.f32 0.0, %v1127
    %v1129 = vpop.f32.mrb[0].mxu0
    %v1130 = vpop.f32.mrb[0].mxu0
    %1131 = vdwg.mxu0
    %vm1132 = vcmask 519168
    %1133 = vst.msk [vmem:[%s7] sm:$0xf] %vm1132, 0.0
    %vm1134 = vcmask 3072
    %1135 = vst.msk [vmem:[#allocation7] sm:$0xf] %vm1134, 0.0
    %v1136 = vadd.f32 %v1041, %v1126
    %v1137 = vadd.f32 %v1045, %v1128
    %v1138 = vxor.u32 %v1136, 2147483648
    %v1139 = vmul.f32 %v1138, 1.442695
    %v1140 = vpow.pop %v1139
    %v1141 = vadd.f32 %v1140, 1.0
    %v1142 = vrcp.pop %v1141
    %v1143 = vmul.f32 1.0, %v1142
    %v1144 = vtanh.pop %v1137
    %v1145 = vxor.u32 %v1137, 2147483648
    %v1146 = vmul.f32 %v1145, 1.442695
    %v1147 = vpow.pop %v1146
    %v1148 = vadd.f32 %v1147, 1.0
    %v1149 = vrcp.pop %v1148
    %v1150 = vmul.f32 1.0, %v1149
    %v1151 = vmul.f32 %v1143, 0.0
    %v1152 = vmul.f32 %v1143, %v1144
    %1154 = vrot.lane.b32.xlu0 %v1152, 64
    %v1155 = vpop.permute.xlu0 %1154
    %v1157 = vadd.f32 %v1151, %v1155
    %v1158 = vtanh.pop %v1157
    %v1159 = vmul.f32 %v1150, %v1158
    %v1160 = vpack.c.bf16 %v1159, %v1159
    %1162 = vrot.lane.b32.xlu0 %v1160, 64
    %v1163 = vpop.permute.xlu0 %1162
    %v1172 = vunpack.c.l.b16 %v998
    %v1173 = vunpack.c.l.b16 %v1000
    %v1174 = vunpack.c.l.b16 %v1002
    %v1175 = vunpack.c.l.b16 %v1004
    %v1176 = vunpack.c.l.b16 %v1006
    %v1177 = vunpack.c.l.b16 %v1008
    %v1178 = vunpack.c.l.b16 %v1010
    %v1179 = vunpack.c.l.b16 %v1012
    %v1180 = vpack.c.b16 %v1173, %v1172
    %v1181 = vpack.c.b16 %v1175, %v1174
    %v1182 = vpack.c.b16 %v1177, %v1176
    %v1183 = vpack.c.b16 %v1179, %v1178
    %v1189 = vsel %vm1087, %v1163, 0
    %1191 = vmatprep.subr.bf16.mxu0 %v1072
    %1192 = vmatpush1.bf16.msra.mxu0 %v1071
    %1193 = vmatprep.subr.bf16.mxu0 %v1074
    %1194 = vmatpush1.bf16.msra.mxu0 %v1073
    %1195 = vmatprep.subr.bf16.mxu0 %v1076
    %1196 = vmatpush1.bf16.msra.mxu0 %v1075
    %1197 = vmatprep.subr.bf16.mxu0 %v1078
    %1198 = vmatpush1.bf16.msra.mxu0 %v1077
    %1199 = vmatprep.subr.bf16.mxu0 0
    %1200 = vmatpush1.bf16.msra.mxu0 0
    %1201 = vmatprep.subr.bf16.mxu0 0
    %1202 = vmatpush1.bf16.msra.mxu0 0
    %1203 = vmatprep.subr.bf16.mxu0 0
    %1204 = vmatpush1.bf16.msra.mxu0 0
    %1205 = vmatprep.subr.bf16.mxu0 0
    %1206 = vmatpush1.bf16.msra.mxu0 0
    %1207 = vmatprep.subr.bf16.mxu0 0
    %1208 = vmatpush1.bf16.msra.mxu0 0
    %1209 = vmatprep.subr.bf16.mxu0 0
    %1210 = vmatpush1.bf16.msra.mxu0 0
    %1211 = vmatprep.subr.bf16.mxu0 0
    %1212 = vmatpush1.bf16.msra.mxu0 0
    %1213 = vmatprep.subr.bf16.mxu0 0
    %1214 = vmatpush1.bf16.msra.mxu0 0
    %1215 = vmatprep.subr.bf16.mxu0 0
    %1216 = vmatpush1.bf16.msra.mxu0 0
    %1217 = vmatprep.subr.bf16.mxu0 0
    %1218 = vmatpush1.bf16.msra.mxu0 0
    %1219 = vmatprep.subr.bf16.mxu0 0
    %1220 = vmatpush1.bf16.msra.mxu0 0
    %1221 = vmatprep.subr.bf16.mxu0 0
    %1222 = vmatpush1.bf16.msra.mxu0 0
    %1223 = vmatprep.mubr.bf16.mxu0 0
    %1224 = vmatmul.mubr.bf16.gmra.mrb[0].mxu0 %v1189
    %v1225 = vpop.f32.mrb[0].mxu0
    %v1226 = vadd.f32 0.0, %v1225
    %v1227 = vpop.f32.mrb[0].mxu0
    %v1228 = vadd.f32 0.0, %v1227
    %v1229 = vpop.f32.mrb[0].mxu0
    %v1230 = vpop.f32.mrb[0].mxu0
    %1231 = vdwg.mxu0
    %1232 = vmatprep.subr.bf16.mxu0 0
    %1233 = vmatpush1.bf16.msra.mxu0 %v1180
    %1234 = vmatprep.subr.bf16.mxu0 0
    %1235 = vmatpush1.bf16.msra.mxu0 %v1181
    %1236 = vmatprep.subr.bf16.mxu0 0
    %1237 = vmatpush1.bf16.msra.mxu0 %v1182
    %1238 = vmatprep.subr.bf16.mxu0 0
    %1239 = vmatpush1.bf16.msra.mxu0 %v1183
    %1240 = vmatprep.subr.bf16.mxu0 0
    %1241 = vmatpush1.bf16.msra.mxu0 0
    %1242 = vmatprep.subr.bf16.mxu0 0
    %1243 = vmatpush1.bf16.msra.mxu0 0
    %1244 = vmatprep.subr.bf16.mxu0 0
    %1245 = vmatpush1.bf16.msra.mxu0 0
    %1246 = vmatprep.subr.bf16.mxu0 0
    %1247 = vmatpush1.bf16.msra.mxu0 0
    %1248 = vmatprep.subr.bf16.mxu0 0
    %1249 = vmatpush1.bf16.msra.mxu0 0
    %1250 = vmatprep.subr.bf16.mxu0 0
    %1251 = vmatpush1.bf16.msra.mxu0 0
    %1252 = vmatprep.subr.bf16.mxu0 0
    %1253 = vmatpush1.bf16.msra.mxu0 0
    %1254 = vmatprep.subr.bf16.mxu0 0
    %1255 = vmatpush1.bf16.msra.mxu0 0
    %1256 = vmatprep.subr.bf16.mxu0 0
    %1257 = vmatpush1.bf16.msra.mxu0 0
    %1258 = vmatprep.subr.bf16.mxu0 0
    %1259 = vmatpush1.bf16.msra.mxu0 0
    %1260 = vmatprep.subr.bf16.mxu0 0
    %1261 = vmatpush1.bf16.msra.mxu0 0
    %1262 = vmatprep.subr.bf16.mxu0 0
    %1263 = vmatpush1.bf16.msra.mxu0 0
    %1264 = vmatprep.mubr.bf16.mxu0 0
    %1265 = vmatmul.mubr.bf16.gmra.mrb[0].mxu0 %v1189
    %v1266 = vpop.f32.mrb[0].mxu0
    %v1267 = vadd.f32 0.0, %v1266
    %v1268 = vpop.f32.mrb[0].mxu0
    %v1269 = vpop.f32.mrb[0].mxu0
    %v1270 = vpop.f32.mrb[0].mxu0
    %1271 = vdwg.mxu0
    %v1272 = vadd.f32 %v1267, %v1034
    %1274 = vrot.lane.b32.xlu0 %v1272, 64
    %v1275 = vpop.permute.xlu0 %1274
    %vm1277 = vcmask 1043968
    %1278 = vst.msk [vmem:[%s7] sm:$0xf] %vm1277, %v1275
    %v1279 = vsel %vm1132, %v1272, -inf
    %1280 = vmax.xlane.f32.xlu0 %v1279
    %v1281 = vpop.xlane.xlu0 %1280
    %vm1282 = vcmp.eq.f32.partialorder %v1272, %v1281
    %v1283 = vsel %vm1282, 1, 0
    %v1284 = vcvt.s32.f32 %v1283
    %v1285 = vpack.c.bf16 %v1284, %v1284
    %v1302 = vunpack.c.l.b16 %v1013
    %v1303 = vunpack.c.h.b16 %v1013
    %v1304 = vunpack.c.l.b16 %v1014
    %v1305 = vunpack.c.l.b16 %v1015
    %v1306 = vunpack.c.h.b16 %v1015
    %v1307 = vunpack.c.l.b16 %v1016
    %v1308 = vunpack.c.l.b16 %v1017
    %v1309 = vunpack.c.h.b16 %v1017
    %v1310 = vunpack.c.l.b16 %v1018
    %v1311 = vunpack.c.l.b16 %v1019
    %v1312 = vunpack.c.h.b16 %v1019
    %v1313 = vunpack.c.l.b16 %v1020
    %v1314 = vunpack.c.l.b16 %v1021
    %v1315 = vunpack.c.h.b16 %v1021
    %v1316 = vunpack.c.l.b16 %v1022
    %v1317 = vunpack.c.l.b16 %v1023
    %v1318 = vunpack.c.h.b16 %v1023
    %v1319 = vunpack.c.l.b16 %v1024
    %v1320 = vunpack.c.l.b16 %v1025
    %v1321 = vunpack.c.h.b16 %v1025
    %v1322 = vunpack.c.l.b16 %v1026
    %v1323 = vunpack.c.l.b16 %v1027
    %v1324 = vunpack.c.h.b16 %v1027
    %v1325 = vunpack.c.l.b16 %v1028
    %v1326 = vpack.c.b16 %v1305, %v1302
    %v1327 = vpack.c.b16 %v1306, %v1303
    %v1328 = vpack.c.b16 %v1307, %v1304
    %v1329 = vpack.c.b16 %v1311, %v1308
    %v1330 = vpack.c.b16 %v1312, %v1309
    %v1331 = vpack.c.b16 %v1313, %v1310
    %v1332 = vpack.c.b16 %v1317, %v1314
    %v1333 = vpack.c.b16 %v1318, %v1315
    %v1334 = vpack.c.b16 %v1319, %v1316
    %v1335 = vpack.c.b16 %v1323, %v1320
    %v1336 = vpack.c.b16 %v1324, %v1321
    %v1337 = vpack.c.b16 %v1325, %v1322
    %v1351 = vsel %vm1087, %v1285, 0
    %1353 = vmatprep.subr.bf16.mxu0 %v1327
    %1354 = vmatpush1.bf16.msra.mxu0 %v1326
    %1355 = vmatprep.subr.bf16.mxu0 %v1330
    %1356 = vmatpush1.bf16.msra.mxu0 %v1329
    %1357 = vmatprep.subr.bf16.mxu0 %v1333
    %1358 = vmatpush1.bf16.msra.mxu0 %v1332
    %1359 = vmatprep.subr.bf16.mxu0 %v1336
    %1360 = vmatpush1.bf16.msra.mxu0 %v1335
    %1361 = vmatprep.subr.bf16.mxu0 0
    %1362 = vmatpush1.bf16.msra.mxu0 0
    %1363 = vmatprep.subr.bf16.mxu0 0
    %1364 = vmatpush1.bf16.msra.mxu0 0
    %1365 = vmatprep.subr.bf16.mxu0 0
    %1366 = vmatpush1.bf16.msra.mxu0 0
    %1367 = vmatprep.subr.bf16.mxu0 0
    %1368 = vmatpush1.bf16.msra.mxu0 0
    %1369 = vmatprep.subr.bf16.mxu0 0
    %1370 = vmatpush1.bf16.msra.mxu0 0
    %1371 = vmatprep.subr.bf16.mxu0 0
    %1372 = vmatpush1.bf16.msra.mxu0 0
    %1373 = vmatprep.subr.bf16.mxu0 0
    %1374 = vmatpush1.bf16.msra.mxu0 0
    %1375 = vmatprep.subr.bf16.mxu0 0
    %1376 = vmatpush1.bf16.msra.mxu0 0
    %1377 = vmatprep.subr.bf16.mxu0 0
    %1378 = vmatpush1.bf16.msra.mxu0 0
    %1379 = vmatprep.subr.bf16.mxu0 0
    %1380 = vmatpush1.bf16.msra.mxu0 0
    %1381 = vmatprep.subr.bf16.mxu0 0
    %1382 = vmatpush1.bf16.msra.mxu0 0
    %1383 = vmatprep.subr.bf16.mxu0 0
    %1384 = vmatpush1.bf16.msra.mxu0 0
    %1385 = vmatprep.mubr.bf16.mxu0 0
    %1386 = vmatmul.mubr.bf16.gmra.mrb[0].mxu0 %v1351
    %v1387 = vpop.f32.mrb[0].mxu0
    %v1388 = vadd.f32 0.0, %v1387
    %v1389 = vpop.f32.mrb[0].mxu0
    %v1390 = vadd.f32 0.0, %v1389
    %v1391 = vpop.f32.mrb[0].mxu0
    %v1392 = vpop.f32.mrb[0].mxu0
    %1393 = vdwg.mxu0
    %1394 = vmatprep.subr.bf16.mxu0 0
    %1395 = vmatpush1.bf16.msra.mxu0 %v1328
    %1396 = vmatprep.subr.bf16.mxu0 0
    %1397 = vmatpush1.bf16.msra.mxu0 %v1331
    %1398 = vmatprep.subr.bf16.mxu0 0
    %1399 = vmatpush1.bf16.msra.mxu0 %v1334
    %1400 = vmatprep.subr.bf16.mxu0 0
    %1401 = vmatpush1.bf16.msra.mxu0 %v1337
    %1402 = vmatprep.subr.bf16.mxu0 0
    %1403 = vmatpush1.bf16.msra.mxu0 0
    %1404 = vmatprep.subr.bf16.mxu0 0
    %1405 = vmatpush1.bf16.msra.mxu0 0
    %1406 = vmatprep.subr.bf16.mxu0 0
    %1407 = vmatpush1.bf16.msra.mxu0 0
    %1408 = vmatprep.subr.bf16.mxu0 0
    %1409 = vmatpush1.bf16.msra.mxu0 0
    %1410 = vmatprep.subr.bf16.mxu0 0
    %1411 = vmatpush1.bf16.msra.mxu0 0
    %1412 = vmatprep.subr.bf16.mxu0 0
    %1413 = vmatpush1.bf16.msra.mxu0 0
    %1414 = vmatprep.subr.bf16.mxu0 0
    %1415 = vmatpush1.bf16.msra.mxu0 0
    %1416 = vmatprep.subr.bf16.mxu0 0
    %1417 = vmatpush1.bf16.msra.mxu0 0
    %1418 = vmatprep.subr.bf16.mxu0 0
    %1419 = vmatpush1.bf16.msra.mxu0 0
    %1420 = vmatprep.subr.bf16.mxu0 0
    %1421 = vmatpush1.bf16.msra.mxu0 0
    %1422 = vmatprep.subr.bf16.mxu0 0
    %1423 = vmatpush1.bf16.msra.mxu0 0
    %1424 = vmatprep.subr.bf16.mxu0 0
    %1425 = vmatpush1.bf16.msra.mxu0 0
    %1426 = vmatprep.mubr.bf16.mxu0 0
    %1427 = vmatmul.mubr.bf16.gmra.mrb[0].mxu0 %v1351
    %v1428 = vpop.f32.mrb[0].mxu0
    %v1429 = vadd.f32 0.0, %v1428
    %v1430 = vpop.f32.mrb[0].mxu0
    %v1431 = vpop.f32.mrb[0].mxu0
    %v1432 = vpop.f32.mrb[0].mxu0
    %1433 = vdwg.mxu0
    %1435 = vrot.lane.b32.xlu0 %v1429, 1
    %v1436 = vpop.permute.xlu0 %1435
    %vm1438 = vcmask 11272
    %1439 = vst.msk [vmem:[#allocation7] sm:$0xf] %vm1438, %v1436
    %v1440 = vadd.f32 %v1388, %v1226
    %v1441 = vadd.f32 %v1390, %v1228
    %v1442 = vxor.u32 %v1440, 2147483648
    %v1443 = vmul.f32 %v1442, 1.442695
    %v1444 = vpow.pop %v1443
    %v1445 = vadd.f32 %v1444, 1.0
    %v1446 = vrcp.pop %v1445
    %v1447 = vmul.f32 1.0, %v1446
    %v1448 = vtanh.pop %v1441
    %v1449 = vxor.u32 %v1441, 2147483648
    %v1450 = vmul.f32 %v1449, 1.442695
    %v1451 = vpow.pop %v1450
    %v1452 = vadd.f32 %v1451, 1.0
    %v1453 = vrcp.pop %v1452
    %v1454 = vmul.f32 1.0, %v1453
    %v1455 = vmul.f32 %v1447, %v1157
    %v1456 = vmul.f32 %v1447, %v1448
    %1458 = vrot.lane.b32.xlu0 %v1456, 64
    %v1459 = vpop.permute.xlu0 %1458
    %v1461 = vadd.f32 %v1455, %v1459
    %v1462 = vtanh.pop %v1461
    %v1463 = vmul.f32 %v1454, %v1462
    %v1464 = vpack.c.bf16 %v1463, %v1463
    %1466 = vrot.lane.b32.xlu0 %v1464, 64
    %v1467 = vpop.permute.xlu0 %1466
    %v1469 = vsel %vm1087, %v1467, 0
    %1471 = vmatprep.subr.bf16.mxu0 %v1072
    %1472 = vmatpush1.bf16.msra.mxu0 %v1071
    %1473 = vmatprep.subr.bf16.mxu0 %v1074
    %1474 = vmatpush1.bf16.msra.mxu0 %v1073
    %1475 = vmatprep.subr.bf16.mxu0 %v1076
    %1476 = vmatpush1.bf16.msra.mxu0 %v1075
    %1477 = vmatprep.subr.bf16.mxu0 %v1078
    %1478 = vmatpush1.bf16.msra.mxu0 %v1077
    %1479 = vmatprep.subr.bf16.mxu0 0
    %1480 = vmatpush1.bf16.msra.mxu0 0
    %1481 = vmatprep.subr.bf16.mxu0 0
    %1482 = vmatpush1.bf16.msra.mxu0 0
    %1483 = vmatprep.subr.bf16.mxu0 0
    %1484 = vmatpush1.bf16.msra.mxu0 0
    %1485 = vmatprep.subr.bf16.mxu0 0
    %1486 = vmatpush1.bf16.msra.mxu0 0
    %1487 = vmatprep.subr.bf16.mxu0 0
    %1488 = vmatpush1.bf16.msra.mxu0 0
    %1489 = vmatprep.subr.bf16.mxu0 0
    %1490 = vmatpush1.bf16.msra.mxu0 0
    %1491 = vmatprep.subr.bf16.mxu0 0
    %1492 = vmatpush1.bf16.msra.mxu0 0
    %1493 = vmatprep.subr.bf16.mxu0 0
    %1494 = vmatpush1.bf16.msra.mxu0 0
    %1495 = vmatprep.subr.bf16.mxu0 0
    %1496 = vmatpush1.bf16.msra.mxu0 0
    %1497 = vmatprep.subr.bf16.mxu0 0
    %1498 = vmatpush1.bf16.msra.mxu0 0
    %1499 = vmatprep.subr.bf16.mxu0 0
    %1500 = vmatpush1.bf16.msra.mxu0 0
    %1501 = vmatprep.subr.bf16.mxu0 0
    %1502 = vmatpush1.bf16.msra.mxu0 0
    %1503 = vmatprep.mubr.bf16.mxu0 0
    %1504 = vmatmul.mubr.bf16.gmra.mrb[0].mxu0 %v1469
    %v1505 = vpop.f32.mrb[0].mxu0
    %v1506 = vadd.f32 0.0, %v1505
    %v1507 = vpop.f32.mrb[0].mxu0
    %v1508 = vadd.f32 0.0, %v1507
    %v1509 = vpop.f32.mrb[0].mxu0
    %v1510 = vpop.f32.mrb[0].mxu0
    %1511 = vdwg.mxu0
    %1512 = vmatprep.subr.bf16.mxu0 0
    %1513 = vmatpush1.bf16.msra.mxu0 %v1180
    %1514 = vmatprep.subr.bf16.mxu0 0
    %1515 = vmatpush1.bf16.msra.mxu0 %v1181
    %1516 = vmatprep.subr.bf16.mxu0 0
    %1517 = vmatpush1.bf16.msra.mxu0 %v1182
    %1518 = vmatprep.subr.bf16.mxu0 0
    %1519 = vmatpush1.bf16.msra.mxu0 %v1183
    %1520 = vmatprep.subr.bf16.mxu0 0
    %1521 = vmatpush1.bf16.msra.mxu0 0
    %1522 = vmatprep.subr.bf16.mxu0 0
    %1523 = vmatpush1.bf16.msra.mxu0 0
    %1524 = vmatprep.subr.bf16.mxu0 0
    %1525 = vmatpush1.bf16.msra.mxu0 0
    %1526 = vmatprep.subr.bf16.mxu0 0
    %1527 = vmatpush1.bf16.msra.mxu0 0
    %1528 = vmatprep.subr.bf16.mxu0 0
    %1529 = vmatpush1.bf16.msra.mxu0 0
    %1530 = vmatprep.subr.bf16.mxu0 0
    %1531 = vmatpush1.bf16.msra.mxu0 0
    %1532 = vmatprep.subr.bf16.mxu0 0
    %1533 = vmatpush1.bf16.msra.mxu0 0
    %1534 = vmatprep.subr.bf16.mxu0 0
    %1535 = vmatpush1.bf16.msra.mxu0 0
    %1536 = vmatprep.subr.bf16.mxu0 0
    %1537 = vmatpush1.bf16.msra.mxu0 0
    %1538 = vmatprep.subr.bf16.mxu0 0
    %1539 = vmatpush1.bf16.msra.mxu0 0
    %1540 = vmatprep.subr.bf16.mxu0 0
    %1541 = vmatpush1.bf16.msra.mxu0 0
    %1542 = vmatprep.subr.bf16.mxu0 0
    %1543 = vmatpush1.bf16.msra.mxu0 0
    %1544 = vmatprep.mubr.bf16.mxu0 0
    %1545 = vmatmul.mubr.bf16.gmra.mrb[0].mxu0 %v1469
    %v1546 = vpop.f32.mrb[0].mxu0
    %v1547 = vadd.f32 0.0, %v1546
    %v1548 = vpop.f32.mrb[0].mxu0
    %v1549 = vpop.f32.mrb[0].mxu0
    %v1550 = vpop.f32.mrb[0].mxu0
    %1551 = vdwg.mxu0
    %v1552 = vadd.f32 %v1547, %v1034
    %1553 = vst.msk [vmem:[%s7 + $0x4] sm:$0xf] %vm1132, %v1552
    %v1554 = vsel %vm1132, %v1552, -inf
    %1555 = vmax.xlane.f32.xlu0 %v1554
    %v1556 = vpop.xlane.xlu0 %1555
    %vm1557 = vcmp.eq.f32.partialorder %v1552, %v1556
    %v1558 = vsel %vm1557, 1, 0
    %v1559 = vcvt.s32.f32 %v1558
    %v1560 = vpack.c.bf16 %v1559, %v1559
    %v1562 = vsel %vm1087, %v1560, 0
    %1564 = vmatprep.subr.bf16.mxu0 %v1327
    %1565 = vmatpush1.bf16.msra.mxu0 %v1326
    %1566 = vmatprep.subr.bf16.mxu0 %v1330
    %1567 = vmatpush1.bf16.msra.mxu0 %v1329
    %1568 = vmatprep.subr.bf16.mxu0 %v1333
    %1569 = vmatpush1.bf16.msra.mxu0 %v1332
    %1570 = vmatprep.subr.bf16.mxu0 %v1336
    %1571 = vmatpush1.bf16.msra.mxu0 %v1335
    %1572 = vmatprep.subr.bf16.mxu0 0
    %1573 = vmatpush1.bf16.msra.mxu0 0
    %1574 = vmatprep.subr.bf16.mxu0 0
    %1575 = vmatpush1.bf16.msra.mxu0 0
    %1576 = vmatprep.subr.bf16.mxu0 0
    %1577 = vmatpush1.bf16.msra.mxu0 0
    %1578 = vmatprep.subr.bf16.mxu0 0
    %1579 = vmatpush1.bf16.msra.mxu0 0
    %1580 = vmatprep.subr.bf16.mxu0 0
    %1581 = vmatpush1.bf16.msra.mxu0 0
    %1582 = vmatprep.subr.bf16.mxu0 0
    %1583 = vmatpush1.bf16.msra.mxu0 0
    %1584 = vmatprep.subr.bf16.mxu0 0
    %1585 = vmatpush1.bf16.msra.mxu0 0
    %1586 = vmatprep.subr.bf16.mxu0 0
    %1587 = vmatpush1.bf16.msra.mxu0 0
    %1588 = vmatprep.subr.bf16.mxu0 0
    %1589 = vmatpush1.bf16.msra.mxu0 0
    %1590 = vmatprep.subr.bf16.mxu0 0
    %1591 = vmatpush1.bf16.msra.mxu0 0
    %1592 = vmatprep.subr.bf16.mxu0 0
    %1593 = vmatpush1.bf16.msra.mxu0 0
    %1594 = vmatprep.subr.bf16.mxu0 0
    %1595 = vmatpush1.bf16.msra.mxu0 0
    %1596 = vmatprep.mubr.bf16.mxu0 0
    %1597 = vmatmul.mubr.bf16.gmra.mrb[0].mxu0 %v1562
    %v1598 = vpop.f32.mrb[0].mxu0
    %v1599 = vadd.f32 0.0, %v1598
    %v1600 = vpop.f32.mrb[0].mxu0
    %v1601 = vadd.f32 0.0, %v1600
    %v1602 = vpop.f32.mrb[0].mxu0
    %v1603 = vpop.f32.mrb[0].mxu0
    %1604 = vdwg.mxu0
    %1605 = vmatprep.subr.bf16.mxu0 0
    %1606 = vmatpush1.bf16.msra.mxu0 %v1328
    %1607 = vmatprep.subr.bf16.mxu0 0
    %1608 = vmatpush1.bf16.msra.mxu0 %v1331
    %1609 = vmatprep.subr.bf16.mxu0 0
    %1610 = vmatpush1.bf16.msra.mxu0 %v1334
    %1611 = vmatprep.subr.bf16.mxu0 0
    %1612 = vmatpush1.bf16.msra.mxu0 %v1337
    %1613 = vmatprep.subr.bf16.mxu0 0
    %1614 = vmatpush1.bf16.msra.mxu0 0
    %1615 = vmatprep.subr.bf16.mxu0 0
    %1616 = vmatpush1.bf16.msra.mxu0 0
    %1617 = vmatprep.subr.bf16.mxu0 0
    %1618 = vmatpush1.bf16.msra.mxu0 0
    %1619 = vmatprep.subr.bf16.mxu0 0
    %1620 = vmatpush1.bf16.msra.mxu0 0
    %1621 = vmatprep.subr.bf16.mxu0 0
    %1622 = vmatpush1.bf16.msra.mxu0 0
    %1623 = vmatprep.subr.bf16.mxu0 0
    %1624 = vmatpush1.bf16.msra.mxu0 0
    %1625 = vmatprep.subr.bf16.mxu0 0
    %1626 = vmatpush1.bf16.msra.mxu0 0
    %1627 = vmatprep.subr.bf16.mxu0 0
    %1628 = vmatpush1.bf16.msra.mxu0 0
    %1629 = vmatprep.subr.bf16.mxu0 0
    %1630 = vmatpush1.bf16.msra.mxu0 0
    %1631 = vmatprep.subr.bf16.mxu0 0
    %1632 = vmatpush1.bf16.msra.mxu0 0
    %1633 = vmatprep.subr.bf16.mxu0 0
    %1634 = vmatpush1.bf16.msra.mxu0 0
    %1635 = vmatprep.subr.bf16.mxu0 0
    %1636 = vmatpush1.bf16.msra.mxu0 0
    %1637 = vmatprep.mubr.bf16.mxu0 0
    %1638 = vmatmul.mubr.bf16.gmra.mrb[0].mxu0 %v1562
    %v1639 = vpop.f32.mrb[0].mxu0
    %v1640 = vadd.f32 0.0, %v1639
    %v1641 = vpop.f32.mrb[0].mxu0
    %v1642 = vpop.f32.mrb[0].mxu0
    %v1643 = vpop.f32.mrb[0].mxu0
    %1644 = vdwg.mxu0
    %1646 = vrot.lane.b32.xlu0 %v1640, 2
    %v1647 = vpop.permute.xlu0 %1646
    %vm1649 = vcmask 19472
    %1650 = vst.msk [vmem:[#allocation7] sm:$0xf] %vm1649, %v1647
    %v1651 = vadd.f32 %v1599, %v1506
    %v1652 = vadd.f32 %v1601, %v1508
    %v1653 = vxor.u32 %v1651, 2147483648
    %v1654 = vmul.f32 %v1653, 1.442695
    %v1655 = vpow.pop %v1654
    %v1656 = vadd.f32 %v1655, 1.0
    %v1657 = vrcp.pop %v1656
    %v1658 = vmul.f32 1.0, %v1657
    %v1659 = vtanh.pop %v1652
    %v1660 = vxor.u32 %v1652, 2147483648
    %v1661 = vmul.f32 %v1660, 1.442695
    %v1662 = vpow.pop %v1661
    %v1663 = vadd.f32 %v1662, 1.0
    %v1664 = vrcp.pop %v1663
    %v1665 = vmul.f32 1.0, %v1664
    %v1666 = vmul.f32 %v1658, %v1461
    %v1667 = vmul.f32 %v1658, %v1659
    %1669 = vrot.lane.b32.xlu0 %v1667, 64
    %v1670 = vpop.permute.xlu0 %1669
    %v1672 = vadd.f32 %v1666, %v1670
    %v1673 = vtanh.pop %v1672
    %v1674 = vmul.f32 %v1665, %v1673
    %v1675 = vpack.c.bf16 %v1674, %v1674
    %1677 = vrot.lane.b32.xlu0 %v1675, 64
    %v1678 = vpop.permute.xlu0 %1677
    %v1680 = vsel %vm1087, %v1678, 0
    %1682 = vmatprep.subr.bf16.mxu0 %v1072
    %1683 = vmatpush1.bf16.msra.mxu0 %v1071
    %1684 = vmatprep.subr.bf16.mxu0 %v1074
    %1685 = vmatpush1.bf16.msra.mxu0 %v1073
    %1686 = vmatprep.subr.bf16.mxu0 %v1076
    %1687 = vmatpush1.bf16.msra.mxu0 %v1075
    %1688 = vmatprep.subr.bf16.mxu0 %v1078
    %1689 = vmatpush1.bf16.msra.mxu0 %v1077
    %1690 = vmatprep.subr.bf16.mxu0 0
    %1691 = vmatpush1.bf16.msra.mxu0 0
    %1692 = vmatprep.subr.bf16.mxu0 0
    %1693 = vmatpush1.bf16.msra.mxu0 0
    %1694 = vmatprep.subr.bf16.mxu0 0
    %1695 = vmatpush1.bf16.msra.mxu0 0
    %1696 = vmatprep.subr.bf16.mxu0 0
    %1697 = vmatpush1.bf16.msra.mxu0 0
    %1698 = vmatprep.subr.bf16.mxu0 0
    %1699 = vmatpush1.bf16.msra.mxu0 0
    %1700 = vmatprep.subr.bf16.mxu0 0
    %1701 = vmatpush1.bf16.msra.mxu0 0
    %1702 = vmatprep.subr.bf16.mxu0 0
    %1703 = vmatpush1.bf16.msra.mxu0 0
    %1704 = vmatprep.subr.bf16.mxu0 0
    %1705 = vmatpush1.bf16.msra.mxu0 0
    %1706 = vmatprep.subr.bf16.mxu0 0
    %1707 = vmatpush1.bf16.msra.mxu0 0
    %1708 = vmatprep.subr.bf16.mxu0 0
    %1709 = vmatpush1.bf16.msra.mxu0 0
    %1710 = vmatprep.subr.bf16.mxu0 0
    %1711 = vmatpush1.bf16.msra.mxu0 0
    %1712 = vmatprep.subr.bf16.mxu0 0
    %1713 = vmatpush1.bf16.msra.mxu0 0
    %1714 = vmatprep.mubr.bf16.mxu0 0
    %1715 = vmatmul.mubr.bf16.gmra.mrb[0].mxu0 %v1680
    %v1716 = vpop.f32.mrb[0].mxu0
    %v1717 = vadd.f32 0.0, %v1716
    %v1718 = vpop.f32.mrb[0].mxu0
    %v1719 = vadd.f32 0.0, %v1718
    %v1720 = vpop.f32.mrb[0].mxu0
    %v1721 = vpop.f32.mrb[0].mxu0
    %1722 = vdwg.mxu0
    %1723 = vmatprep.subr.bf16.mxu0 0
    %1724 = vmatpush1.bf16.msra.mxu0 %v1180
    %1725 = vmatprep.subr.bf16.mxu0 0
    %1726 = vmatpush1.bf16.msra.mxu0 %v1181
    %1727 = vmatprep.subr.bf16.mxu0 0
    %1728 = vmatpush1.bf16.msra.mxu0 %v1182
    %1729 = vmatprep.subr.bf16.mxu0 0
    %1730 = vmatpush1.bf16.msra.mxu0 %v1183
    %1731 = vmatprep.subr.bf16.mxu0 0
    %1732 = vmatpush1.bf16.msra.mxu0 0
    %1733 = vmatprep.subr.bf16.mxu0 0
    %1734 = vmatpush1.bf16.msra.mxu0 0
    %1735 = vmatprep.subr.bf16.mxu0 0
    %1736 = vmatpush1.bf16.msra.mxu0 0
    %1737 = vmatprep.subr.bf16.mxu0 0
    %1738 = vmatpush1.bf16.msra.mxu0 0
    %1739 = vmatprep.subr.bf16.mxu0 0
    %1740 = vmatpush1.bf16.msra.mxu0 0
    %1741 = vmatprep.subr.bf16.mxu0 0
    %1742 = vmatpush1.bf16.msra.mxu0 0
    %1743 = vmatprep.subr.bf16.mxu0 0
    %1744 = vmatpush1.bf16.msra.mxu0 0
    %1745 = vmatprep.subr.bf16.mxu0 0
    %1746 = vmatpush1.bf16.msra.mxu0 0
    %1747 = vmatprep.subr.bf16.mxu0 0
    %1748 = vmatpush1.bf16.msra.mxu0 0
    %1749 = vmatprep.subr.bf16.mxu0 0
    %1750 = vmatpush1.bf16.msra.mxu0 0
    %1751 = vmatprep.subr.bf16.mxu0 0
    %1752 = vmatpush1.bf16.msra.mxu0 0
    %1753 = vmatprep.subr.bf16.mxu0 0
    %1754 = vmatpush1.bf16.msra.mxu0 0
    %1755 = vmatprep.mubr.bf16.mxu0 0
    %1756 = vmatmul.mubr.bf16.gmra.mrb[0].mxu0 %v1680
    %v1757 = vpop.f32.mrb[0].mxu0
    %v1758 = vadd.f32 0.0, %v1757
    %v1759 = vpop.f32.mrb[0].mxu0
    %v1760 = vpop.f32.mrb[0].mxu0
    %v1761 = vpop.f32.mrb[0].mxu0
    %1762 = vdwg.mxu0
    %v1763 = vadd.f32 %v1758, %v1034
    %1765 = vrot.lane.b32.xlu0 %v1763, 64
    %v1766 = vpop.permute.xlu0 %1765
    %1768 = vst.msk [vmem:[%s7 + $0x4] sm:$0xf] %vm1277, %v1766
    %v1769 = vsel %vm1132, %v1763, -inf
    %1770 = vmax.xlane.f32.xlu0 %v1769
    %v1771 = vpop.xlane.xlu0 %1770
    %vm1772 = vcmp.eq.f32.partialorder %v1763, %v1771
    %v1773 = vsel %vm1772, 1, 0
    %v1774 = vcvt.s32.f32 %v1773
    %v1775 = vpack.c.bf16 %v1774, %v1774
    %v1777 = vsel %vm1087, %v1775, 0
    %1779 = vmatprep.subr.bf16.mxu0 %v1327
    %1780 = vmatpush1.bf16.msra.mxu0 %v1326
    %1781 = vmatprep.subr.bf16.mxu0 %v1330
    %1782 = vmatpush1.bf16.msra.mxu0 %v1329
    %1783 = vmatprep.subr.bf16.mxu0 %v1333
    %1784 = vmatpush1.bf16.msra.mxu0 %v1332
    %1785 = vmatprep.subr.bf16.mxu0 %v1336
    %1786 = vmatpush1.bf16.msra.mxu0 %v1335
    %1787 = vmatprep.subr.bf16.mxu0 0
    %1788 = vmatpush1.bf16.msra.mxu0 0
    %1789 = vmatprep.subr.bf16.mxu0 0
    %1790 = vmatpush1.bf16.msra.mxu0 0
    %1791 = vmatprep.subr.bf16.mxu0 0
    %1792 = vmatpush1.bf16.msra.mxu0 0
    %1793 = vmatprep.subr.bf16.mxu0 0
    %1794 = vmatpush1.bf16.msra.mxu0 0
    %1795 = vmatprep.subr.bf16.mxu0 0
    %1796 = vmatpush1.bf16.msra.mxu0 0
    %1797 = vmatprep.subr.bf16.mxu0 0
    %1798 = vmatpush1.bf16.msra.mxu0 0
    %1799 = vmatprep.subr.bf16.mxu0 0
    %1800 = vmatpush1.bf16.msra.mxu0 0
    %1801 = vmatprep.subr.bf16.mxu0 0
    %1802 = vmatpush1.bf16.msra.mxu0 0
    %1803 = vmatprep.subr.bf16.mxu0 0
    %1804 = vmatpush1.bf16.msra.mxu0 0
    %1805 = vmatprep.subr.bf16.mxu0 0
    %1806 = vmatpush1.bf16.msra.mxu0 0
    %1807 = vmatprep.subr.bf16.mxu0 0
    %1808 = vmatpush1.bf16.msra.mxu0 0
    %1809 = vmatprep.subr.bf16.mxu0 0
    %1810 = vmatpush1.bf16.msra.mxu0 0
    %1811 = vmatprep.mubr.bf16.mxu0 0
    %1812 = vmatmul.mubr.bf16.gmra.mrb[0].mxu0 %v1777
    %v1813 = vpop.f32.mrb[0].mxu0
    %v1814 = vadd.f32 0.0, %v1813
    %v1815 = vpop.f32.mrb[0].mxu0
    %v1816 = vadd.f32 0.0, %v1815
    %v1817 = vpop.f32.mrb[0].mxu0
    %v1818 = vpop.f32.mrb[0].mxu0
    %1819 = vdwg.mxu0
    %1820 = vmatprep.subr.bf16.mxu0 0
    %1821 = vmatpush1.bf16.msra.mxu0 %v1328
    %1822 = vmatprep.subr.bf16.mxu0 0
    %1823 = vmatpush1.bf16.msra.mxu0 %v1331
    %1824 = vmatprep.subr.bf16.mxu0 0
    %1825 = vmatpush1.bf16.msra.mxu0 %v1334
    %1826 = vmatprep.subr.bf16.mxu0 0
    %1827 = vmatpush1.bf16.msra.mxu0 %v1337
    %1828 = vmatprep.subr.bf16.mxu0 0
    %1829 = vmatpush1.bf16.msra.mxu0 0
    %1830 = vmatprep.subr.bf16.mxu0 0
    %1831 = vmatpush1.bf16.msra.mxu0 0
    %1832 = vmatprep.subr.bf16.mxu0 0
    %1833 = vmatpush1.bf16.msra.mxu0 0
    %1834 = vmatprep.subr.bf16.mxu0 0
    %1835 = vmatpush1.bf16.msra.mxu0 0
    %1836 = vmatprep.subr.bf16.mxu0 0
    %1837 = vmatpush1.bf16.msra.mxu0 0
    %1838 = vmatprep.subr.bf16.mxu0 0
    %1839 = vmatpush1.bf16.msra.mxu0 0
    %1840 = vmatprep.subr.bf16.mxu0 0
    %1841 = vmatpush1.bf16.msra.mxu0 0
    %1842 = vmatprep.subr.bf16.mxu0 0
    %1843 = vmatpush1.bf16.msra.mxu0 0
    %1844 = vmatprep.subr.bf16.mxu0 0
    %1845 = vmatpush1.bf16.msra.mxu0 0
    %1846 = vmatprep.subr.bf16.mxu0 0
    %1847 = vmatpush1.bf16.msra.mxu0 0
    %1848 = vmatprep.subr.bf16.mxu0 0
    %1849 = vmatpush1.bf16.msra.mxu0 0
    %1850 = vmatprep.subr.bf16.mxu0 0
    %1851 = vmatpush1.bf16.msra.mxu0 0
    %1852 = vmatprep.mubr.bf16.mxu0 0
    %1853 = vmatmul.mubr.bf16.gmra.mrb[0].mxu0 %v1777
    %v1854 = vpop.f32.mrb[0].mxu0
    %v1855 = vadd.f32 0.0, %v1854
    %v1856 = vpop.f32.mrb[0].mxu0
    %v1857 = vpop.f32.mrb[0].mxu0
    %v1858 = vpop.f32.mrb[0].mxu0
    %1859 = vdwg.mxu0
    %1861 = vrot.lane.b32.xlu0 %v1855, 3
    %v1862 = vpop.permute.xlu0 %1861
    %vm1864 = vcmask 27672
    %1865 = vst.msk [vmem:[#allocation7] sm:$0xf] %vm1864, %v1862
    %v1866 = vadd.f32 %v1814, %v1717
    %v1867 = vadd.f32 %v1816, %v1719
    %v1868 = vxor.u32 %v1866, 2147483648
    %v1869 = vmul.f32 %v1868, 1.442695
    %v1870 = vpow.pop %v1869
    %v1871 = vadd.f32 %v1870, 1.0
    %v1872 = vrcp.pop %v1871
    %v1873 = vmul.f32 1.0, %v1872
    %v1874 = vtanh.pop %v1867
    %v1875 = vxor.u32 %v1867, 2147483648
    %v1876 = vmul.f32 %v1875, 1.442695
    %v1877 = vpow.pop %v1876
    %v1878 = vadd.f32 %v1877, 1.0
    %v1879 = vrcp.pop %v1878
    %v1880 = vmul.f32 1.0, %v1879
    %v1881 = vmul.f32 %v1873, %v1672
    %v1882 = vmul.f32 %v1873, %v1874
    %1884 = vrot.lane.b32.xlu0 %v1882, 64
    %v1885 = vpop.permute.xlu0 %1884
    %v1887 = vadd.f32 %v1881, %v1885
    %v1888 = vtanh.pop %v1887
    %v1889 = vmul.f32 %v1880, %v1888
    %v1890 = vpack.c.bf16 %v1889, %v1889
    %1892 = vrot.lane.b32.xlu0 %v1890, 64
    %v1893 = vpop.permute.xlu0 %1892
    %v1895 = vsel %vm1087, %v1893, 0
    %1897 = vmatprep.subr.bf16.mxu0 %v1072
    %1898 = vmatpush1.bf16.msra.mxu0 %v1071
    %1899 = vmatprep.subr.bf16.mxu0 %v1074
    %1900 = vmatpush1.bf16.msra.mxu0 %v1073
    %1901 = vmatprep.subr.bf16.mxu0 %v1076
    %1902 = vmatpush1.bf16.msra.mxu0 %v1075
    %1903 = vmatprep.subr.bf16.mxu0 %v1078
    %1904 = vmatpush1.bf16.msra.mxu0 %v1077
    %1905 = vmatprep.subr.bf16.mxu0 0
    %1906 = vmatpush1.bf16.msra.mxu0 0
    %1907 = vmatprep.subr.bf16.mxu0 0
    %1908 = vmatpush1.bf16.msra.mxu0 0
    %1909 = vmatprep.subr.bf16.mxu0 0
    %1910 = vmatpush1.bf16.msra.mxu0 0
    %1911 = vmatprep.subr.bf16.mxu0 0
    %1912 = vmatpush1.bf16.msra.mxu0 0
    %1913 = vmatprep.subr.bf16.mxu0 0
    %1914 = vmatpush1.bf16.msra.mxu0 0
    %1915 = vmatprep.subr.bf16.mxu0 0
    %1916 = vmatpush1.bf16.msra.mxu0 0
    %1917 = vmatprep.subr.bf16.mxu0 0
    %1918 = vmatpush1.bf16.msra.mxu0 0
    %1919 = vmatprep.subr.bf16.mxu0 0
    %1920 = vmatpush1.bf16.msra.mxu0 0
    %1921 = vmatprep.subr.bf16.mxu0 0
    %1922 = vmatpush1.bf16.msra.mxu0 0
    %1923 = vmatprep.subr.bf16.mxu0 0
    %1924 = vmatpush1.bf16.msra.mxu0 0
    %1925 = vmatprep.subr.bf16.mxu0 0
    %1926 = vmatpush1.bf16.msra.mxu0 0
    %1927 = vmatprep.subr.bf16.mxu0 0
    %1928 = vmatpush1.bf16.msra.mxu0 0
    %1929 = vmatprep.mubr.bf16.mxu0 0
    %1930 = vmatmul.mubr.bf16.gmra.mrb[0].mxu0 %v1895
    %v1931 = vpop.f32.mrb[0].mxu0
    %v1932 = vadd.f32 0.0, %v1931
    %v1933 = vpop.f32.mrb[0].mxu0
    %v1934 = vadd.f32 0.0, %v1933
    %v1935 = vpop.f32.mrb[0].mxu0
    %v1936 = vpop.f32.mrb[0].mxu0
    %1937 = vdwg.mxu0
    %1938 = vmatprep.subr.bf16.mxu0 0
    %1939 = vmatpush1.bf16.msra.mxu0 %v1180
    %1940 = vmatprep.subr.bf16.mxu0 0
    %1941 = vmatpush1.bf16.msra.mxu0 %v1181
    %1942 = vmatprep.subr.bf16.mxu0 0
    %1943 = vmatpush1.bf16.msra.mxu0 %v1182
    %1944 = vmatprep.subr.bf16.mxu0 0
    %1945 = vmatpush1.bf16.msra.mxu0 %v1183
    %1946 = vmatprep.subr.bf16.mxu0 0
    %1947 = vmatpush1.bf16.msra.mxu0 0
    %1948 = vmatprep.subr.bf16.mxu0 0
    %1949 = vmatpush1.bf16.msra.mxu0 0
    %1950 = vmatprep.subr.bf16.mxu0 0
    %1951 = vmatpush1.bf16.msra.mxu0 0
    %1952 = vmatprep.subr.bf16.mxu0 0
    %1953 = vmatpush1.bf16.msra.mxu0 0
    %1954 = vmatprep.subr.bf16.mxu0 0
    %1955 = vmatpush1.bf16.msra.mxu0 0
    %1956 = vmatprep.subr.bf16.mxu0 0
    %1957 = vmatpush1.bf16.msra.mxu0 0
    %1958 = vmatprep.subr.bf16.mxu0 0
    %1959 = vmatpush1.bf16.msra.mxu0 0
    %1960 = vmatprep.subr.bf16.mxu0 0
    %1961 = vmatpush1.bf16.msra.mxu0 0
    %1962 = vmatprep.subr.bf16.mxu0 0
    %1963 = vmatpush1.bf16.msra.mxu0 0
    %1964 = vmatprep.subr.bf16.mxu0 0
    %1965 = vmatpush1.bf16.msra.mxu0 0
    %1966 = vmatprep.subr.bf16.mxu0 0
    %1967 = vmatpush1.bf16.msra.mxu0 0
    %1968 = vmatprep.subr.bf16.mxu0 0
    %1969 = vmatpush1.bf16.msra.mxu0 0
    %1970 = vmatprep.mubr.bf16.mxu0 0
    %1971 = vmatmul.mubr.bf16.gmra.mrb[0].mxu0 %v1895
    %v1972 = vpop.f32.mrb[0].mxu0
    %v1973 = vadd.f32 0.0, %v1972
    %v1974 = vpop.f32.mrb[0].mxu0
    %v1975 = vpop.f32.mrb[0].mxu0
    %v1976 = vpop.f32.mrb[0].mxu0
    %1977 = vdwg.mxu0
    %v1978 = vadd.f32 %v1973, %v1034
    %1979 = vst.msk [vmem:[%s7 + $0x8] sm:$0xf] %vm1132, %v1978
    %v1980 = vsel %vm1132, %v1978, -inf
    %1981 = vmax.xlane.f32.xlu0 %v1980
    %v1982 = vpop.xlane.xlu0 %1981
    %vm1983 = vcmp.eq.f32.partialorder %v1978, %v1982
    %v1984 = vsel %vm1983, 1, 0
    %v1985 = vcvt.s32.f32 %v1984
    %v1986 = vpack.c.bf16 %v1985, %v1985
    %v1988 = vsel %vm1087, %v1986, 0
    %1990 = vmatprep.subr.bf16.mxu0 %v1327
    %1991 = vmatpush1.bf16.msra.mxu0 %v1326
    %1992 = vmatprep.subr.bf16.mxu0 %v1330
    %1993 = vmatpush1.bf16.msra.mxu0 %v1329
    %1994 = vmatprep.subr.bf16.mxu0 %v1333
    %1995 = vmatpush1.bf16.msra.mxu0 %v1332
    %1996 = vmatprep.subr.bf16.mxu0 %v1336
    %1997 = vmatpush1.bf16.msra.mxu0 %v1335
    %1998 = vmatprep.subr.bf16.mxu0 0
    %1999 = vmatpush1.bf16.msra.mxu0 0
    %2000 = vmatprep.subr.bf16.mxu0 0
    %2001 = vmatpush1.bf16.msra.mxu0 0
    %2002 = vmatprep.subr.bf16.mxu0 0
    %2003 = vmatpush1.bf16.msra.mxu0 0
    %2004 = vmatprep.subr.bf16.mxu0 0
    %2005 = vmatpush1.bf16.msra.mxu0 0
    %2006 = vmatprep.subr.bf16.mxu0 0
    %2007 = vmatpush1.bf16.msra.mxu0 0
    %2008 = vmatprep.subr.bf16.mxu0 0
    %2009 = vmatpush1.bf16.msra.mxu0 0
    %2010 = vmatprep.subr.bf16.mxu0 0
    %2011 = vmatpush1.bf16.msra.mxu0 0
    %2012 = vmatprep.subr.bf16.mxu0 0
    %2013 = vmatpush1.bf16.msra.mxu0 0
    %2014 = vmatprep.subr.bf16.mxu0 0
    %2015 = vmatpush1.bf16.msra.mxu0 0
    %2016 = vmatprep.subr.bf16.mxu0 0
    %2017 = vmatpush1.bf16.msra.mxu0 0
    %2018 = vmatprep.subr.bf16.mxu0 0
    %2019 = vmatpush1.bf16.msra.mxu0 0
    %2020 = vmatprep.subr.bf16.mxu0 0
    %2021 = vmatpush1.bf16.msra.mxu0 0
    %2022 = vmatprep.mubr.bf16.mxu0 0
    %2023 = vmatmul.mubr.bf16.gmra.mrb[0].mxu0 %v1988
    %v2024 = vpop.f32.mrb[0].mxu0
    %v2025 = vadd.f32 0.0, %v2024
    %v2026 = vpop.f32.mrb[0].mxu0
    %v2027 = vadd.f32 0.0, %v2026
    %v2028 = vpop.f32.mrb[0].mxu0
    %v2029 = vpop.f32.mrb[0].mxu0
    %2030 = vdwg.mxu0
    %2031 = vmatprep.subr.bf16.mxu0 0
    %2032 = vmatpush1.bf16.msra.mxu0 %v1328
    %2033 = vmatprep.subr.bf16.mxu0 0
    %2034 = vmatpush1.bf16.msra.mxu0 %v1331
    %2035 = vmatprep.subr.bf16.mxu0 0
    %2036 = vmatpush1.bf16.msra.mxu0 %v1334
    %2037 = vmatprep.subr.bf16.mxu0 0
    %2038 = vmatpush1.bf16.msra.mxu0 %v1337
    %2039 = vmatprep.subr.bf16.mxu0 0
    %2040 = vmatpush1.bf16.msra.mxu0 0
    %2041 = vmatprep.subr.bf16.mxu0 0
    %2042 = vmatpush1.bf16.msra.mxu0 0
    %2043 = vmatprep.subr.bf16.mxu0 0
    %2044 = vmatpush1.bf16.msra.mxu0 0
    %2045 = vmatprep.subr.bf16.mxu0 0
    %2046 = vmatpush1.bf16.msra.mxu0 0
    %2047 = vmatprep.subr.bf16.mxu0 0
    %2048 = vmatpush1.bf16.msra.mxu0 0
    %2049 = vmatprep.subr.bf16.mxu0 0
    %2050 = vmatpush1.bf16.msra.mxu0 0
    %2051 = vmatprep.subr.bf16.mxu0 0
    %2052 = vmatpush1.bf16.msra.mxu0 0
    %2053 = vmatprep.subr.bf16.mxu0 0
    %2054 = vmatpush1.bf16.msra.mxu0 0
    %2055 = vmatprep.subr.bf16.mxu0 0
    %2056 = vmatpush1.bf16.msra.mxu0 0
    %2057 = vmatprep.subr.bf16.mxu0 0
    %2058 = vmatpush1.bf16.msra.mxu0 0
    %2059 = vmatprep.subr.bf16.mxu0 0
    %2060 = vmatpush1.bf16.msra.mxu0 0
    %2061 = vmatprep.subr.bf16.mxu0 0
    %2062 = vmatpush1.bf16.msra.mxu0 0
    %2063 = vmatprep.mubr.bf16.mxu0 0
    %2064 = vmatmul.mubr.bf16.gmra.mrb[0].mxu0 %v1988
    %v2065 = vpop.f32.mrb[0].mxu0
    %v2066 = vadd.f32 0.0, %v2065
    %v2067 = vpop.f32.mrb[0].mxu0
    %v2068 = vpop.f32.mrb[0].mxu0
    %v2069 = vpop.f32.mrb[0].mxu0
    %2070 = vdwg.mxu0
    %2072 = vrot.lane.b32.xlu0 %v2066, 4
    %v2073 = vpop.permute.xlu0 %2072
    %vm2075 = vcmask 35872
    %2076 = vst.msk [vmem:[#allocation7] sm:$0xf] %vm2075, %v2073
    %v2077 = vadd.f32 %v2025, %v1932
    %v2078 = vadd.f32 %v2027, %v1934
    %v2079 = vxor.u32 %v2077, 2147483648
    %v2080 = vmul.f32 %v2079, 1.442695
    %v2081 = vpow.pop %v2080
    %v2082 = vadd.f32 %v2081, 1.0
    %v2083 = vrcp.pop %v2082
    %v2084 = vmul.f32 1.0, %v2083
    %v2085 = vtanh.pop %v2078
    %v2086 = vxor.u32 %v2078, 2147483648
    %v2087 = vmul.f32 %v2086, 1.442695
    %v2088 = vpow.pop %v2087
    %v2089 = vadd.f32 %v2088, 1.0
    %v2090 = vrcp.pop %v2089
    %v2091 = vmul.f32 1.0, %v2090
    %v2092 = vmul.f32 %v2084, %v1887
    %v2093 = vmul.f32 %v2084, %v2085
    %2095 = vrot.lane.b32.xlu0 %v2093, 64
    %v2096 = vpop.permute.xlu0 %2095
    %v2098 = vadd.f32 %v2092, %v2096
    %v2099 = vtanh.pop %v2098
    %v2100 = vmul.f32 %v2091, %v2099
    %v2101 = vpack.c.bf16 %v2100, %v2100
    %2103 = vrot.lane.b32.xlu0 %v2101, 64
    %v2104 = vpop.permute.xlu0 %2103
    %v2106 = vsel %vm1087, %v2104, 0
    %2108 = vmatprep.subr.bf16.mxu0 %v1072
    %2109 = vmatpush1.bf16.msra.mxu0 %v1071
    %2110 = vmatprep.subr.bf16.mxu0 %v1074
    %2111 = vmatpush1.bf16.msra.mxu0 %v1073
    %2112 = vmatprep.subr.bf16.mxu0 %v1076
    %2113 = vmatpush1.bf16.msra.mxu0 %v1075
    %2114 = vmatprep.subr.bf16.mxu0 %v1078
    %2115 = vmatpush1.bf16.msra.mxu0 %v1077
    %2116 = vmatprep.subr.bf16.mxu0 0
    %2117 = vmatpush1.bf16.msra.mxu0 0
    %2118 = vmatprep.subr.bf16.mxu0 0
    %2119 = vmatpush1.bf16.msra.mxu0 0
    %2120 = vmatprep.subr.bf16.mxu0 0
    %2121 = vmatpush1.bf16.msra.mxu0 0
    %2122 = vmatprep.subr.bf16.mxu0 0
    %2123 = vmatpush1.bf16.msra.mxu0 0
    %2124 = vmatprep.subr.bf16.mxu0 0
    %2125 = vmatpush1.bf16.msra.mxu0 0
    %2126 = vmatprep.subr.bf16.mxu0 0
    %2127 = vmatpush1.bf16.msra.mxu0 0
    %2128 = vmatprep.subr.bf16.mxu0 0
    %2129 = vmatpush1.bf16.msra.mxu0 0
    %2130 = vmatprep.subr.bf16.mxu0 0
    %2131 = vmatpush1.bf16.msra.mxu0 0
    %2132 = vmatprep.subr.bf16.mxu0 0
    %2133 = vmatpush1.bf16.msra.mxu0 0
    %2134 = vmatprep.subr.bf16.mxu0 0
    %2135 = vmatpush1.bf16.msra.mxu0 0
    %2136 = vmatprep.subr.bf16.mxu0 0
    %2137 = vmatpush1.bf16.msra.mxu0 0
    %2138 = vmatprep.subr.bf16.mxu0 0
    %2139 = vmatpush1.bf16.msra.mxu0 0
    %2140 = vmatprep.mubr.bf16.mxu0 0
    %2141 = vmatmul.mubr.bf16.gmra.mrb[0].mxu0 %v2106
    %v2142 = vpop.f32.mrb[0].mxu0
    %v2143 = vadd.f32 0.0, %v2142
    %v2144 = vpop.f32.mrb[0].mxu0
    %v2145 = vadd.f32 0.0, %v2144
    %v2146 = vpop.f32.mrb[0].mxu0
    %v2147 = vpop.f32.mrb[0].mxu0
    %2148 = vdwg.mxu0
    %2149 = vmatprep.subr.bf16.mxu0 0
    %2150 = vmatpush1.bf16.msra.mxu0 %v1180
    %2151 = vmatprep.subr.bf16.mxu0 0
    %2152 = vmatpush1.bf16.msra.mxu0 %v1181
    %2153 = vmatprep.subr.bf16.mxu0 0
    %2154 = vmatpush1.bf16.msra.mxu0 %v1182
    %2155 = vmatprep.subr.bf16.mxu0 0
    %2156 = vmatpush1.bf16.msra.mxu0 %v1183
    %2157 = vmatprep.subr.bf16.mxu0 0
    %2158 = vmatpush1.bf16.msra.mxu0 0
    %2159 = vmatprep.subr.bf16.mxu0 0
    %2160 = vmatpush1.bf16.msra.mxu0 0
    %2161 = vmatprep.subr.bf16.mxu0 0
    %2162 = vmatpush1.bf16.msra.mxu0 0
    %2163 = vmatprep.subr.bf16.mxu0 0
    %2164 = vmatpush1.bf16.msra.mxu0 0
    %2165 = vmatprep.subr.bf16.mxu0 0
    %2166 = vmatpush1.bf16.msra.mxu0 0
    %2167 = vmatprep.subr.bf16.mxu0 0
    %2168 = vmatpush1.bf16.msra.mxu0 0
    %2169 = vmatprep.subr.bf16.mxu0 0
    %2170 = vmatpush1.bf16.msra.mxu0 0
    %2171 = vmatprep.subr.bf16.mxu0 0
    %2172 = vmatpush1.bf16.msra.mxu0 0
    %2173 = vmatprep.subr.bf16.mxu0 0
    %2174 = vmatpush1.bf16.msra.mxu0 0
    %2175 = vmatprep.subr.bf16.mxu0 0
    %2176 = vmatpush1.bf16.msra.mxu0 0
    %2177 = vmatprep.subr.bf16.mxu0 0
    %2178 = vmatpush1.bf16.msra.mxu0 0
    %2179 = vmatprep.subr.bf16.mxu0 0
    %2180 = vmatpush1.bf16.msra.mxu0 0
    %2181 = vmatprep.mubr.bf16.mxu0 0
    %2182 = vmatmul.mubr.bf16.gmra.mrb[0].mxu0 %v2106
    %v2183 = vpop.f32.mrb[0].mxu0
    %v2184 = vadd.f32 0.0, %v2183
    %v2185 = vpop.f32.mrb[0].mxu0
    %v2186 = vpop.f32.mrb[0].mxu0
    %v2187 = vpop.f32.mrb[0].mxu0
    %2188 = vdwg.mxu0
    %v2189 = vadd.f32 %v2184, %v1034
    %2191 = vrot.lane.b32.xlu0 %v2189, 64
    %v2192 = vpop.permute.xlu0 %2191
    %2194 = vst.msk [vmem:[%s7 + $0x8] sm:$0xf] %vm1277, %v2192
    %v2195 = vsel %vm1132, %v2189, -inf
    %2196 = vmax.xlane.f32.xlu0 %v2195
    %v2197 = vpop.xlane.xlu0 %2196
    %vm2198 = vcmp.eq.f32.partialorder %v2189, %v2197
    %v2199 = vsel %vm2198, 1, 0
    %v2200 = vcvt.s32.f32 %v2199
    %v2201 = vpack.c.bf16 %v2200, %v2200
    %v2203 = vsel %vm1087, %v2201, 0
    %2205 = vmatprep.subr.bf16.mxu0 %v1327
    %2206 = vmatpush1.bf16.msra.mxu0 %v1326
    %2207 = vmatprep.subr.bf16.mxu0 %v1330
    %2208 = vmatpush1.bf16.msra.mxu0 %v1329
    %2209 = vmatprep.subr.bf16.mxu0 %v1333
    %2210 = vmatpush1.bf16.msra.mxu0 %v1332
    %2211 = vmatprep.subr.bf16.mxu0 %v1336
    %2212 = vmatpush1.bf16.msra.mxu0 %v1335
    %2213 = vmatprep.subr.bf16.mxu0 0
    %2214 = vmatpush1.bf16.msra.mxu0 0
    %2215 = vmatprep.subr.bf16.mxu0 0
    %2216 = vmatpush1.bf16.msra.mxu0 0
    %2217 = vmatprep.subr.bf16.mxu0 0
    %2218 = vmatpush1.bf16.msra.mxu0 0
    %2219 = vmatprep.subr.bf16.mxu0 0
    %2220 = vmatpush1.bf16.msra.mxu0 0
    %2221 = vmatprep.subr.bf16.mxu0 0
    %2222 = vmatpush1.bf16.msra.mxu0 0
    %2223 = vmatprep.subr.bf16.mxu0 0
    %2224 = vmatpush1.bf16.msra.mxu0 0
    %2225 = vmatprep.subr.bf16.mxu0 0
    %2226 = vmatpush1.bf16.msra.mxu0 0
    %2227 = vmatprep.subr.bf16.mxu0 0
    %2228 = vmatpush1.bf16.msra.mxu0 0
    %2229 = vmatprep.subr.bf16.mxu0 0
    %2230 = vmatpush1.bf16.msra.mxu0 0
    %2231 = vmatprep.subr.bf16.mxu0 0
    %2232 = vmatpush1.bf16.msra.mxu0 0
    %2233 = vmatprep.subr.bf16.mxu0 0
    %2234 = vmatpush1.bf16.msra.mxu0 0
    %2235 = vmatprep.subr.bf16.mxu0 0
    %2236 = vmatpush1.bf16.msra.mxu0 0
    %2237 = vmatprep.mubr.bf16.mxu0 0
    %2238 = vmatmul.mubr.bf16.gmra.mrb[0].mxu0 %v2203
    %v2239 = vpop.f32.mrb[0].mxu0
    %v2240 = vadd.f32 0.0, %v2239
    %v2241 = vpop.f32.mrb[0].mxu0
    %v2242 = vadd.f32 0.0, %v2241
    %v2243 = vpop.f32.mrb[0].mxu0
    %v2244 = vpop.f32.mrb[0].mxu0
    %2245 = vdwg.mxu0
    %2246 = vmatprep.subr.bf16.mxu0 0
    %2247 = vmatpush1.bf16.msra.mxu0 %v1328
    %2248 = vmatprep.subr.bf16.mxu0 0
    %2249 = vmatpush1.bf16.msra.mxu0 %v1331
    %2250 = vmatprep.subr.bf16.mxu0 0
    %2251 = vmatpush1.bf16.msra.mxu0 %v1334
    %2252 = vmatprep.subr.bf16.mxu0 0
    %2253 = vmatpush1.bf16.msra.mxu0 %v1337
    %2254 = vmatprep.subr.bf16.mxu0 0
    %2255 = vmatpush1.bf16.msra.mxu0 0
    %2256 = vmatprep.subr.bf16.mxu0 0
    %2257 = vmatpush1.bf16.msra.mxu0 0
    %2258 = vmatprep.subr.bf16.mxu0 0
    %2259 = vmatpush1.bf16.msra.mxu0 0
    %2260 = vmatprep.subr.bf16.mxu0 0
    %2261 = vmatpush1.bf16.msra.mxu0 0
    %2262 = vmatprep.subr.bf16.mxu0 0
    %2263 = vmatpush1.bf16.msra.mxu0 0
    %2264 = vmatprep.subr.bf16.mxu0 0
    %2265 = vmatpush1.bf16.msra.mxu0 0
    %2266 = vmatprep.subr.bf16.mxu0 0
    %2267 = vmatpush1.bf16.msra.mxu0 0
    %2268 = vmatprep.subr.bf16.mxu0 0
    %2269 = vmatpush1.bf16.msra.mxu0 0
    %2270 = vmatprep.subr.bf16.mxu0 0
    %2271 = vmatpush1.bf16.msra.mxu0 0
    %2272 = vmatprep.subr.bf16.mxu0 0
    %2273 = vmatpush1.bf16.msra.mxu0 0
    %2274 = vmatprep.subr.bf16.mxu0 0
    %2275 = vmatpush1.bf16.msra.mxu0 0
    %2276 = vmatprep.subr.bf16.mxu0 0
    %2277 = vmatpush1.bf16.msra.mxu0 0
    %2278 = vmatprep.mubr.bf16.mxu0 0
    %2279 = vmatmul.mubr.bf16.gmra.mrb[0].mxu0 %v2203
    %v2280 = vpop.f32.mrb[0].mxu0
    %v2281 = vadd.f32 0.0, %v2280
    %v2282 = vpop.f32.mrb[0].mxu0
    %v2283 = vpop.f32.mrb[0].mxu0
    %v2284 = vpop.f32.mrb[0].mxu0
    %2285 = vdwg.mxu0
    %2287 = vrot.lane.b32.xlu0 %v2281, 5
    %v2288 = vpop.permute.xlu0 %2287
    %vm2290 = vcmask 44072
    %2291 = vst.msk [vmem:[#allocation7] sm:$0xf] %vm2290, %v2288
    %v2292 = vadd.f32 %v2240, %v2143
    %v2293 = vadd.f32 %v2242, %v2145
    %v2294 = vxor.u32 %v2292, 2147483648
    %v2295 = vmul.f32 %v2294, 1.442695
    %v2296 = vpow.pop %v2295
    %v2297 = vadd.f32 %v2296, 1.0
    %v2298 = vrcp.pop %v2297
    %v2299 = vmul.f32 1.0, %v2298
    %v2300 = vtanh.pop %v2293
    %v2301 = vxor.u32 %v2293, 2147483648
    %v2302 = vmul.f32 %v2301, 1.442695
    %v2303 = vpow.pop %v2302
    %v2304 = vadd.f32 %v2303, 1.0
    %v2305 = vrcp.pop %v2304
    %v2306 = vmul.f32 1.0, %v2305
    %v2307 = vmul.f32 %v2299, %v2098
    %v2308 = vmul.f32 %v2299, %v2300
    %2310 = vrot.lane.b32.xlu0 %v2308, 64
    %v2311 = vpop.permute.xlu0 %2310
    %v2313 = vadd.f32 %v2307, %v2311
    %v2314 = vtanh.pop %v2313
    %v2315 = vmul.f32 %v2306, %v2314
    %v2316 = vpack.c.bf16 %v2315, %v2315
    %2318 = vrot.lane.b32.xlu0 %v2316, 64
    %v2319 = vpop.permute.xlu0 %2318
    %v2321 = vsel %vm1087, %v2319, 0
    %2323 = vmatprep.subr.bf16.mxu0 %v1072
    %2324 = vmatpush1.bf16.msra.mxu0 %v1071
    %2325 = vmatprep.subr.bf16.mxu0 %v1074
    %2326 = vmatpush1.bf16.msra.mxu0 %v1073
    %2327 = vmatprep.subr.bf16.mxu0 %v1076
    %2328 = vmatpush1.bf16.msra.mxu0 %v1075
    %2329 = vmatprep.subr.bf16.mxu0 %v1078
    %2330 = vmatpush1.bf16.msra.mxu0 %v1077
    %2331 = vmatprep.subr.bf16.mxu0 0
    %2332 = vmatpush1.bf16.msra.mxu0 0
    %2333 = vmatprep.subr.bf16.mxu0 0
    %2334 = vmatpush1.bf16.msra.mxu0 0
    %2335 = vmatprep.subr.bf16.mxu0 0
    %2336 = vmatpush1.bf16.msra.mxu0 0
    %2337 = vmatprep.subr.bf16.mxu0 0
    %2338 = vmatpush1.bf16.msra.mxu0 0
    %2339 = vmatprep.subr.bf16.mxu0 0
    %2340 = vmatpush1.bf16.msra.mxu0 0
    %2341 = vmatprep.subr.bf16.mxu0 0
    %2342 = vmatpush1.bf16.msra.mxu0 0
    %2343 = vmatprep.subr.bf16.mxu0 0
    %2344 = vmatpush1.bf16.msra.mxu0 0
    %2345 = vmatprep.subr.bf16.mxu0 0
    %2346 = vmatpush1.bf16.msra.mxu0 0
    %2347 = vmatprep.subr.bf16.mxu0 0
    %2348 = vmatpush1.bf16.msra.mxu0 0
    %2349 = vmatprep.subr.bf16.mxu0 0
    %2350 = vmatpush1.bf16.msra.mxu0 0
    %2351 = vmatprep.subr.bf16.mxu0 0
    %2352 = vmatpush1.bf16.msra.mxu0 0
    %2353 = vmatprep.subr.bf16.mxu0 0
    %2354 = vmatpush1.bf16.msra.mxu0 0
    %2355 = vmatprep.mubr.bf16.mxu0 0
    %2356 = vmatmul.mubr.bf16.gmra.mrb[0].mxu0 %v2321
    %v2357 = vpop.f32.mrb[0].mxu0
    %v2358 = vadd.f32 0.0, %v2357
    %v2359 = vpop.f32.mrb[0].mxu0
    %v2360 = vadd.f32 0.0, %v2359
    %v2361 = vpop.f32.mrb[0].mxu0
    %v2362 = vpop.f32.mrb[0].mxu0
    %2363 = vdwg.mxu0
    %2364 = vmatprep.subr.bf16.mxu0 0
    %2365 = vmatpush1.bf16.msra.mxu0 %v1180
    %2366 = vmatprep.subr.bf16.mxu0 0
    %2367 = vmatpush1.bf16.msra.mxu0 %v1181
    %2368 = vmatprep.subr.bf16.mxu0 0
    %2369 = vmatpush1.bf16.msra.mxu0 %v1182
    %2370 = vmatprep.subr.bf16.mxu0 0
    %2371 = vmatpush1.bf16.msra.mxu0 %v1183
    %2372 = vmatprep.subr.bf16.mxu0 0
    %2373 = vmatpush1.bf16.msra.mxu0 0
    %2374 = vmatprep.subr.bf16.mxu0 0
    %2375 = vmatpush1.bf16.msra.mxu0 0
    %2376 = vmatprep.subr.bf16.mxu0 0
    %2377 = vmatpush1.bf16.msra.mxu0 0
    %2378 = vmatprep.subr.bf16.mxu0 0
    %2379 = vmatpush1.bf16.msra.mxu0 0
    %2380 = vmatprep.subr.bf16.mxu0 0
    %2381 = vmatpush1.bf16.msra.mxu0 0
    %2382 = vmatprep.subr.bf16.mxu0 0
    %2383 = vmatpush1.bf16.msra.mxu0 0
    %2384 = vmatprep.subr.bf16.mxu0 0
    %2385 = vmatpush1.bf16.msra.mxu0 0
    %2386 = vmatprep.subr.bf16.mxu0 0
    %2387 = vmatpush1.bf16.msra.mxu0 0
    %2388 = vmatprep.subr.bf16.mxu0 0
    %2389 = vmatpush1.bf16.msra.mxu0 0
    %2390 = vmatprep.subr.bf16.mxu0 0
    %2391 = vmatpush1.bf16.msra.mxu0 0
    %2392 = vmatprep.subr.bf16.mxu0 0
    %2393 = vmatpush1.bf16.msra.mxu0 0
    %2394 = vmatprep.subr.bf16.mxu0 0
    %2395 = vmatpush1.bf16.msra.mxu0 0
    %2396 = vmatprep.mubr.bf16.mxu0 0
    %2397 = vmatmul.mubr.bf16.gmra.mrb[0].mxu0 %v2321
    %v2398 = vpop.f32.mrb[0].mxu0
    %v2399 = vadd.f32 0.0, %v2398
    %v2400 = vpop.f32.mrb[0].mxu0
    %v2401 = vpop.f32.mrb[0].mxu0
    %v2402 = vpop.f32.mrb[0].mxu0
    %2403 = vdwg.mxu0
    %v2404 = vadd.f32 %v2399, %v1034
    %2405 = vst.msk [vmem:[%s7 + $0xc] sm:$0xf] %vm1132, %v2404
    %v2406 = vsel %vm1132, %v2404, -inf
    %2407 = vmax.xlane.f32.xlu0 %v2406
    %v2408 = vpop.xlane.xlu0 %2407
    %vm2409 = vcmp.eq.f32.partialorder %v2404, %v2408
    %v2410 = vsel %vm2409, 1, 0
    %v2411 = vcvt.s32.f32 %v2410
    %v2412 = vpack.c.bf16 %v2411, %v2411
    %v2414 = vsel %vm1087, %v2412, 0
    %2416 = vmatprep.subr.bf16.mxu0 %v1327
    %2417 = vmatpush1.bf16.msra.mxu0 %v1326
    %2418 = vmatprep.subr.bf16.mxu0 %v1330
    %2419 = vmatpush1.bf16.msra.mxu0 %v1329
    %2420 = vmatprep.subr.bf16.mxu0 %v1333
    %2421 = vmatpush1.bf16.msra.mxu0 %v1332
    %2422 = vmatprep.subr.bf16.mxu0 %v1336
    %2423 = vmatpush1.bf16.msra.mxu0 %v1335
    %2424 = vmatprep.subr.bf16.mxu0 0
    %2425 = vmatpush1.bf16.msra.mxu0 0
    %2426 = vmatprep.subr.bf16.mxu0 0
    %2427 = vmatpush1.bf16.msra.mxu0 0
    %2428 = vmatprep.subr.bf16.mxu0 0
    %2429 = vmatpush1.bf16.msra.mxu0 0
    %2430 = vmatprep.subr.bf16.mxu0 0
    %2431 = vmatpush1.bf16.msra.mxu0 0
    %2432 = vmatprep.subr.bf16.mxu0 0
    %2433 = vmatpush1.bf16.msra.mxu0 0
    %2434 = vmatprep.subr.bf16.mxu0 0
    %2435 = vmatpush1.bf16.msra.mxu0 0
    %2436 = vmatprep.subr.bf16.mxu0 0
    %2437 = vmatpush1.bf16.msra.mxu0 0
    %2438 = vmatprep.subr.bf16.mxu0 0
    %2439 = vmatpush1.bf16.msra.mxu0 0
    %2440 = vmatprep.subr.bf16.mxu0 0
    %2441 = vmatpush1.bf16.msra.mxu0 0
    %2442 = vmatprep.subr.bf16.mxu0 0
    %2443 = vmatpush1.bf16.msra.mxu0 0
    %2444 = vmatprep.subr.bf16.mxu0 0
    %2445 = vmatpush1.bf16.msra.mxu0 0
    %2446 = vmatprep.subr.bf16.mxu0 0
    %2447 = vmatpush1.bf16.msra.mxu0 0
    %2448 = vmatprep.mubr.bf16.mxu0 0
    %2449 = vmatmul.mubr.bf16.gmra.mrb[0].mxu0 %v2414
    %v2450 = vpop.f32.mrb[0].mxu0
    %v2451 = vadd.f32 0.0, %v2450
    %v2452 = vpop.f32.mrb[0].mxu0
    %v2453 = vadd.f32 0.0, %v2452
    %v2454 = vpop.f32.mrb[0].mxu0
    %v2455 = vpop.f32.mrb[0].mxu0
    %2456 = vdwg.mxu0
    %2457 = vmatprep.subr.bf16.mxu0 0
    %2458 = vmatpush1.bf16.msra.mxu0 %v1328
    %2459 = vmatprep.subr.bf16.mxu0 0
    %2460 = vmatpush1.bf16.msra.mxu0 %v1331
    %2461 = vmatprep.subr.bf16.mxu0 0
    %2462 = vmatpush1.bf16.msra.mxu0 %v1334
    %2463 = vmatprep.subr.bf16.mxu0 0
    %2464 = vmatpush1.bf16.msra.mxu0 %v1337
    %2465 = vmatprep.subr.bf16.mxu0 0
    %2466 = vmatpush1.bf16.msra.mxu0 0
    %2467 = vmatprep.subr.bf16.mxu0 0
    %2468 = vmatpush1.bf16.msra.mxu0 0
    %2469 = vmatprep.subr.bf16.mxu0 0
    %2470 = vmatpush1.bf16.msra.mxu0 0
    %2471 = vmatprep.subr.bf16.mxu0 0
    %2472 = vmatpush1.bf16.msra.mxu0 0
    %2473 = vmatprep.subr.bf16.mxu0 0
    %2474 = vmatpush1.bf16.msra.mxu0 0
    %2475 = vmatprep.subr.bf16.mxu0 0
    %2476 = vmatpush1.bf16.msra.mxu0 0
    %2477 = vmatprep.subr.bf16.mxu0 0
    %2478 = vmatpush1.bf16.msra.mxu0 0
    %2479 = vmatprep.subr.bf16.mxu0 0
    %2480 = vmatpush1.bf16.msra.mxu0 0
    %2481 = vmatprep.subr.bf16.mxu0 0
    %2482 = vmatpush1.bf16.msra.mxu0 0
    %2483 = vmatprep.subr.bf16.mxu0 0
    %2484 = vmatpush1.bf16.msra.mxu0 0
    %2485 = vmatprep.subr.bf16.mxu0 0
    %2486 = vmatpush1.bf16.msra.mxu0 0
    %2487 = vmatprep.subr.bf16.mxu0 0
    %2488 = vmatpush1.bf16.msra.mxu0 0
    %2489 = vmatprep.mubr.bf16.mxu0 0
    %2490 = vmatmul.mubr.bf16.gmra.mrb[0].mxu0 %v2414
    %v2491 = vpop.f32.mrb[0].mxu0
    %v2492 = vadd.f32 0.0, %v2491
    %v2493 = vpop.f32.mrb[0].mxu0
    %v2494 = vpop.f32.mrb[0].mxu0
    %v2495 = vpop.f32.mrb[0].mxu0
    %2496 = vdwg.mxu0
    %2498 = vrot.lane.b32.xlu0 %v2492, 6
    %v2499 = vpop.permute.xlu0 %2498
    %vm2501 = vcmask 52272
    %2502 = vst.msk [vmem:[#allocation7] sm:$0xf] %vm2501, %v2499
    %v2503 = vadd.f32 %v2451, %v2358
    %v2504 = vadd.f32 %v2453, %v2360
    %v2505 = vxor.u32 %v2503, 2147483648
    %v2506 = vmul.f32 %v2505, 1.442695
    %v2507 = vpow.pop %v2506
    %v2508 = vadd.f32 %v2507, 1.0
    %v2509 = vrcp.pop %v2508
    %v2510 = vmul.f32 1.0, %v2509
    %v2511 = vtanh.pop %v2504
    %v2512 = vxor.u32 %v2504, 2147483648
    %v2513 = vmul.f32 %v2512, 1.442695
    %v2514 = vpow.pop %v2513
    %v2515 = vadd.f32 %v2514, 1.0
    %v2516 = vrcp.pop %v2515
    %v2517 = vmul.f32 1.0, %v2516
    %v2518 = vmul.f32 %v2510, %v2313
    %v2519 = vmul.f32 %v2510, %v2511
    %2521 = vrot.lane.b32.xlu0 %v2519, 64
    %v2522 = vpop.permute.xlu0 %2521
    %v2524 = vadd.f32 %v2518, %v2522
    %v2525 = vtanh.pop %v2524
    %v2526 = vmul.f32 %v2517, %v2525
    %v2527 = vpack.c.bf16 %v2526, %v2526
    %2529 = vrot.lane.b32.xlu0 %v2527, 64
    %v2530 = vpop.permute.xlu0 %2529
    %v2532 = vsel %vm1087, %v2530, 0
    %2534 = vmatprep.subr.bf16.mxu0 0
    %2535 = vmatpush1.bf16.msra.mxu0 %v1180
    %2536 = vmatprep.subr.bf16.mxu0 0
    %2537 = vmatpush1.bf16.msra.mxu0 %v1181
    %2538 = vmatprep.subr.bf16.mxu0 0
    %2539 = vmatpush1.bf16.msra.mxu0 %v1182
    %2540 = vmatprep.subr.bf16.mxu0 0
    %2541 = vmatpush1.bf16.msra.mxu0 %v1183
    %2542 = vmatprep.subr.bf16.mxu0 0
    %2543 = vmatpush1.bf16.msra.mxu0 0
    %2544 = vmatprep.subr.bf16.mxu0 0
    %2545 = vmatpush1.bf16.msra.mxu0 0
    %2546 = vmatprep.subr.bf16.mxu0 0
    %2547 = vmatpush1.bf16.msra.mxu0 0
    %2548 = vmatprep.subr.bf16.mxu0 0
    %2549 = vmatpush1.bf16.msra.mxu0 0
    %2550 = vmatprep.subr.bf16.mxu0 0
    %2551 = vmatpush1.bf16.msra.mxu0 0
    %2552 = vmatprep.subr.bf16.mxu0 0
    %2553 = vmatpush1.bf16.msra.mxu0 0
    %2554 = vmatprep.subr.bf16.mxu0 0
    %2555 = vmatpush1.bf16.msra.mxu0 0
    %2556 = vmatprep.subr.bf16.mxu0 0
    %2557 = vmatpush1.bf16.msra.mxu0 0
    %2558 = vmatprep.subr.bf16.mxu0 0
    %2559 = vmatpush1.bf16.msra.mxu0 0
    %2560 = vmatprep.subr.bf16.mxu0 0
    %2561 = vmatpush1.bf16.msra.mxu0 0
    %2562 = vmatprep.subr.bf16.mxu0 0
    %2563 = vmatpush1.bf16.msra.mxu0 0
    %2564 = vmatprep.subr.bf16.mxu0 0
    %2565 = vmatpush1.bf16.msra.mxu0 0
    %2566 = vmatprep.mubr.bf16.mxu0 0
    %2567 = vmatmul.mubr.bf16.gmra.mrb[0].mxu0 %v2532
    %v2568 = vpop.f32.mrb[0].mxu0
    %v2569 = vadd.f32 0.0, %v2568
    %v2570 = vpop.f32.mrb[0].mxu0
    %v2571 = vpop.f32.mrb[0].mxu0
    %v2572 = vpop.f32.mrb[0].mxu0
    %2573 = vdwg.mxu0
    %v2574 = vadd.f32 %v2569, %v1034
    %2576 = vrot.lane.b32.xlu0 %v2574, 64
    %v2577 = vpop.permute.xlu0 %2576
    %2579 = vst.msk [vmem:[%s7 + $0xc] sm:$0xf] %vm1277, %v2577
    %v2580 = vsel %vm1132, %v2574, -inf
    %2581 = vmax.xlane.f32.xlu0 %v2580
    %v2582 = vpop.xlane.xlu0 %2581
    %vm2583 = vcmp.eq.f32.partialorder %v2574, %v2582
    %v2584 = vsel %vm2583, 1, 0
    %v2585 = vcvt.s32.f32 %v2584
    %v2586 = vpack.c.bf16 %v2585, %v2585
    %v2588 = vsel %vm1087, %v2586, 0
    %2590 = vmatprep.subr.bf16.mxu0 0
    %2591 = vmatpush1.bf16.msra.mxu0 %v1328
    %2592 = vmatprep.subr.bf16.mxu0 0
    %2593 = vmatpush1.bf16.msra.mxu0 %v1331
    %2594 = vmatprep.subr.bf16.mxu0 0
    %2595 = vmatpush1.bf16.msra.mxu0 %v1334
    %2596 = vmatprep.subr.bf16.mxu0 0
    %2597 = vmatpush1.bf16.msra.mxu0 %v1337
    %2598 = vmatprep.subr.bf16.mxu0 0
    %2599 = vmatpush1.bf16.msra.mxu0 0
    %2600 = vmatprep.subr.bf16.mxu0 0
    %2601 = vmatpush1.bf16.msra.mxu0 0
    %2602 = vmatprep.subr.bf16.mxu0 0
    %2603 = vmatpush1.bf16.msra.mxu0 0
    %2604 = vmatprep.subr.bf16.mxu0 0
    %2605 = vmatpush1.bf16.msra.mxu0 0
    %2606 = vmatprep.subr.bf16.mxu0 0
    %2607 = vmatpush1.bf16.msra.mxu0 0
    %2608 = vmatprep.subr.bf16.mxu0 0
    %2609 = vmatpush1.bf16.msra.mxu0 0
    %2610 = vmatprep.subr.bf16.mxu0 0
    %2611 = vmatpush1.bf16.msra.mxu0 0
    %2612 = vmatprep.subr.bf16.mxu0 0
    %2613 = vmatpush1.bf16.msra.mxu0 0
    %2614 = vmatprep.subr.bf16.mxu0 0
    %2615 = vmatpush1.bf16.msra.mxu0 0
    %2616 = vmatprep.subr.bf16.mxu0 0
    %2617 = vmatpush1.bf16.msra.mxu0 0
    %2618 = vmatprep.subr.bf16.mxu0 0
    %2619 = vmatpush1.bf16.msra.mxu0 0
    %2620 = vmatprep.subr.bf16.mxu0 0
    %2621 = vmatpush1.bf16.msra.mxu0 0
    %2622 = vmatprep.mubr.bf16.mxu0 0
    %2623 = vmatmul.mubr.bf16.gmra.mrb[0].mxu0 %v2588
    %v2624 = vpop.f32.mrb[0].mxu0
    %v2625 = vadd.f32 0.0, %v2624
    %v2626 = vpop.f32.mrb[0].mxu0
    %v2627 = vpop.f32.mrb[0].mxu0
    %v2628 = vpop.f32.mrb[0].mxu0
    %2629 = vdwg.mxu0
    %2631 = vrot.lane.b32.xlu0 %v2625, 7
    %v2632 = vpop.permute.xlu0 %2631
    %vm2634 = vcmask 60472
    %2635 = vst.msk [vmem:[#allocation7] sm:$0xf] %vm2634, %v2632
    // Predicated region
    $region38: #{auto_encoder_d.1} parent=1 // pred_check
      _
    $region39: #{auto_encoder_d.1} parent=1 // pred_check_branch
      %2637 = sbr.rel (0) target = $region41
    $region40: #{auto_encoder_d.1} parent=1 // pred_region
      _
    $region41: #{auto_encoder_d.1} parent=1 // pred_fallthru
      _
    // Predicated region
    $region42: #{auto_encoder_d.1} parent=1 // pred_check
      _
    $region43: #{auto_encoder_d.1} parent=1 // pred_check_branch
      %2639 = sbr.rel (0) target = $region45
    $region44: #{auto_encoder_d.1} parent=1 // pred_region
      %s2641 = ssub.s32 64, 64
      %2642 = vsyncadd [#allocation4], %s2641
      %s2644 = sshll.u32 [#allocation7], 4
      %s2645 = int_to_ptr.vmem [resolvable:$true] %s2644
      %2647 = dma.vmem_to_hbm [thread:$0]  %s2645, 64, %s8, [#allocation4]
    $region45: #{auto_encoder_d.1} parent=1 // pred_fallthru
      _
    // Predicated region
    $region46: #{auto_encoder_d.1} parent=1 // pred_check
      _
    $region47: #{auto_encoder_d.1} parent=1 // pred_check_branch
      %2649 = sbr.rel (0) target = $region49
    $region48: #{auto_encoder_d.1} parent=1 // pred_region
      _
    $region49: #{auto_encoder_d.1} parent=1 // pred_fallthru
      _
    // Predicated region
    $region50: #{auto_encoder_d.1} parent=1 // pred_check
      _
    $region51: #{auto_encoder_d.1} parent=1 // pred_check_branch
      %2651 = sbr.rel (0) target = $region53
    $region52: #{auto_encoder_d.1} parent=1 // pred_region
      %2652 = dma.done [#allocation4], 64
    $region53: #{auto_encoder_d.1} parent=1 // pred_fallthru
      _
    %2653 = vsyncpa [#allocation3], 1
    %2654 = vsyncpa [#allocation6], 1
    %2655 = vsyncpa [#allocation4], 1

</llo_original>
